<compile_context>
chip_gen: v7x
topology: tpu7x:2x2x1
jax: 0.10.0
libtpu: 0.0.40
codegen_flags: <defaults>
</compile_context>

<pallas_src>
import math
from functools import lru_cache, partial

import jax
import jax.numpy as jnp
import numpy as np
from jax import lax
from jax.experimental import pallas as pl
from jax.experimental.pallas import tpu as pltpu

PAD_ID = 0
NEG_INF = -1e9
LN_EPS = 1e-5

# bf16 weights + activations in HBM (halves DMA bytes, removes VPU casts);
# all matmuls accumulate in f32, all elementwise epilogues run in f32.
_W_DTYPE = jnp.bfloat16
_ACT_DTYPE = jnp.bfloat16


def _detect_vmem_bytes():
    try:
        info = pltpu.get_tpu_info()
        v = getattr(info, "vmem_capacity_bytes", None)
        if v:
            return int(v)
    except Exception:
        pass
    return 64 * 1024 * 1024  # conservative (v7x-sized) fallback


_VMEM_BYTES = _detect_vmem_bytes()
if _VMEM_BYTES >= 128 * 1024 * 1024:      # v5e / v6e: 128 MiB physical VMEM
    _VMEM_LIMIT_BYTES = 96 * 1024 * 1024
    _TM_PREFS = (512, 256, 128)
    _TN_PREFS = (1024, 512, 256, 128)
    _TK_PREFS = (1024, 512, 256, 128)
else:                                      # v7x: 64 MiB physical VMEM
    _VMEM_LIMIT_BYTES = 32 * 1024 * 1024
    _TM_PREFS = (256, 128)
    _TN_PREFS = (512, 256, 128)
    _TK_PREFS = (512, 256, 128)

_TQ_PREFS = (512, 256, 128)


def _compiler_params(sem):
    return pltpu.CompilerParams(dimension_semantics=sem,
                                vmem_limit_bytes=_VMEM_LIMIT_BYTES)


def _choose_tile(dim, prefs, force_lane=False):
    """Pick (tile, padded_extent) for one dimension.

    - if a preferred tile divides the dim: use it, no padding
    - small dims (<=128) use the full extent (legal block shape), unless
      `force_lane` (output/lane dims) in which case we pad to 128 so stores
      are unmasked and lane-dense
    - otherwise pad up to a multiple of 128 and tile that
    """
    for t in prefs:
        if dim % t == 0:
            return t, dim
    if dim > 128 or (force_lane and dim % 128 != 0):
        padded = pl.cdiv(dim, 128) * 128
        for t in prefs:
            if padded % t == 0:
                return t, padded
        return 128, padded
    return dim, dim


def _pick_divisor(dim, prefs):
    for t in prefs:
        if dim % t == 0:
            return t
    return dim


def _pad_dim(x, axis, target):
    if x.shape[axis] == target:
        return x
    pads = [(0, 0)] * x.ndim
    pads[axis] = (0, target - x.shape[axis])
    return jnp.pad(x, pads)


# ----------------------------- tiled linear kernels -----------------------------

def _linear_kernel_scratch(x_ref, w_ref, b_ref, o_ref, acc_ref, *, relu):
    """bf16 output: accumulate in a f32 VMEM scratch, cast on finalize."""
    k = pl.program_id(2)

    @pl.when(k == 0)
    def _():
        acc_ref[...] = jnp.zeros_like(acc_ref)

    acc_ref[...] += jnp.dot(x_ref[...], w_ref[...],
                            preferred_element_type=jnp.float32)

    @pl.when(k == pl.num_programs(2) - 1)
    def _():
        y = acc_ref[...] + b_ref[...]
        if relu:
            y = jnp.maximum(y, 0.0)
        o_ref[...] = y.astype(o_ref.dtype)


def _linear_kernel_direct(x_ref, w_ref, b_ref, o_ref, *, relu):
    """f32 output: accumulate directly into o_ref (resident across k), no scratch."""
    k = pl.program_id(2)

    @pl.when(k == 0)
    def _():
        o_ref[...] = jnp.zeros_like(o_ref)

    o_ref[...] += jnp.dot(x_ref[...], w_ref[...],
                          preferred_element_type=jnp.float32)

    @pl.when(k == pl.num_programs(2) - 1)
    def _():
        y = o_ref[...] + b_ref[...]
        if relu:
            y = jnp.maximum(y, 0.0)
        o_ref[...] = y


def linear(x2d, w, b, relu=False, out_dtype=_ACT_DTYPE):
    """(M,K)@(K,N)+b (optional ReLU), tiled over (M,N,K) with K accumulation.

    Non-divisible dims are zero-padded to tile multiples (output lane dim always
    padded to a multiple of 128 for lane-dense stores) and sliced back.
    """
    M, K = x2d.shape
    N = w.shape[1]
    tm, Mp = _choose_tile(M, _TM_PREFS)
    tn, Np = _choose_tile(N, _TN_PREFS, force_lane=True)
    tk, Kp = _choose_tile(K, _TK_PREFS)

    xp = _pad_dim(_pad_dim(x2d, 0, Mp), 1, Kp)
    wp = _pad_dim(_pad_dim(w, 0, Kp), 1, Np)
    bp = _pad_dim(b.reshape(1, -1), 1, Np)

    grid = (Mp // tm, Np // tn, Kp // tk)
    if jnp.dtype(out_dtype) == jnp.dtype(jnp.float32):
        kernel = partial(_linear_kernel_direct, relu=relu)
        scratch = []
    else:
        kernel = partial(_linear_kernel_scratch, relu=relu)
        scratch = [pltpu.VMEM((tm, tn), jnp.float32)]

    out = pl.pallas_call(
        kernel,
        grid=grid,
        in_specs=[
            pl.BlockSpec((tm, tk), lambda i, j, k: (i, k)),
            pl.BlockSpec((tk, tn), lambda i, j, k: (k, j)),
            pl.BlockSpec((1, tn), lambda i, j, k: (0, j)),
        ],
        out_specs=pl.BlockSpec((tm, tn), lambda i, j, k: (i, j)),
        out_shape=jax.ShapeDtypeStruct((Mp, Np), out_dtype),
        scratch_shapes=scratch,
        compiler_params=_compiler_params(("parallel", "parallel", "arbitrary")),
    )(xp, wp, bp)

    if (Mp, Np) != (M, N):
        out = out[:M, :N]
    return out


def _linear_addln_kernel(x_ref, w_ref, b_ref, r_ref, g_ref, bb_ref, o_ref, acc_ref):
    k = pl.program_id(1)

    @pl.when(k == 0)
    def _():
        acc_ref[...] = jnp.zeros_like(acc_ref)

    acc_ref[...] += jnp.dot(x_ref[...], w_ref[...],
                            preferred_element_type=jnp.float32)

    @pl.when(k == pl.num_programs(1) - 1)
    def _():
        # fused epilogue: bias + residual add + LayerNorm over full E (f32)
        h = acc_ref[...] + b_ref[...] + r_ref[...].astype(jnp.float32)
        mean = jnp.mean(h, axis=-1, keepdims=True)
        c = h - mean
        var = jnp.mean(c * c, axis=-1, keepdims=True)
        y = c * lax.rsqrt(var + LN_EPS) * g_ref[...] + bb_ref[...]
        o_ref[...] = y.astype(o_ref.dtype)


def linear_add_ln(x2d, w, b, res2d, gamma, beta, out_dtype=_ACT_DTYPE):
    """out = LayerNorm(res + x @ w + b); LN spans the full output width E."""
    M, K = x2d.shape
    E = w.shape[1]
    tm, Mp = _choose_tile(M, _TM_PREFS)
    tk, Kp = _choose_tile(K, _TK_PREFS)

    xp = _pad_dim(_pad_dim(x2d, 0, Mp), 1, Kp)
    wp = _pad_dim(w, 0, Kp)
    rp = _pad_dim(res2d, 0, Mp)

    grid = (Mp // tm, Kp // tk)
    out = pl.pallas_call(
        _linear_addln_kernel,
        grid=grid,
        in_specs=[
            pl.BlockSpec((tm, tk), lambda i, k: (i, k)),
            pl.BlockSpec((tk, E), lambda i, k: (k, 0)),
            pl.BlockSpec((1, E), lambda i, k: (0, 0)),
            pl.BlockSpec((tm, E), lambda i, k: (i, 0)),
            pl.BlockSpec((1, E), lambda i, k: (0, 0)),
            pl.BlockSpec((1, E), lambda i, k: (0, 0)),
        ],
        out_specs=pl.BlockSpec((tm, E), lambda i, k: (i, 0)),
        out_shape=jax.ShapeDtypeStruct((Mp, E), out_dtype),
        scratch_shapes=[pltpu.VMEM((tm, E), jnp.float32)],
        compiler_params=_compiler_params(("parallel", "arbitrary")),
    )(xp, wp, b.reshape(1, E), rp, gamma.reshape(1, E), beta.reshape(1, E))

    if Mp != M:
        out = out[:M]
    return out


# ----------------------------- attention kernels -----------------------------

def _attention_body(get_q, get_k, get_v, kbias_ref, o_ref, *, nhead, causal,
                    tq, Lk, E, q_start):
    Dh = E // nhead
    # (tq, Lk) additive mask built in-kernel: key-padding bias broadcast + causal iota
    bias = jnp.broadcast_to(kbias_ref[0], (tq, Lk))
    if causal:
        row = q_start + lax.broadcasted_iota(jnp.int32, (tq, Lk), 0)
        col = lax.broadcasted_iota(jnp.int32, (tq, Lk), 1)
        bias = bias + jnp.where(col > row, NEG_INF, 0.0).astype(jnp.float32)
    # TODO(synk): for lane-aligned head slices (Dh < 128), switch w_qkv to a
    # head-major / 128-lane-grouped column layout and grid over head groups.
    for h in range(nhead):            # static unroll over heads
        qh = get_q(h)                 # (tq, Dh) bf16; 1/sqrt(Dh) folded into Wq
        kh = get_k(h)                 # (Lk, Dh) bf16
        vh = get_v(h)                 # (Lk, Dh) bf16
        s = lax.dot_general(qh, kh, (((1,), (1,)), ((), ())),
                            preferred_element_type=jnp.float32)
        s = s + bias
        s = s - jnp.max(s, axis=-1, keepdims=True)
        p = jnp.exp(s)
        p = p * pl.reciprocal(jnp.sum(p, axis=-1, keepdims=True), approx=True)
        oh = jnp.dot(p.astype(vh.dtype), vh, preferred_element_type=jnp.float32)
        # store this head immediately (bounded vreg pressure, no concat/XLU shuffle)
        o_ref[0, :, pl.ds(h * Dh, Dh)] = oh.astype(o_ref.dtype)


def _self_attn_kernel(q_ref, kv_ref, kbias_ref, o_ref, *, nhead, causal, tq):
    _, Lk, three_e = kv_ref.shape
    E = three_e // 3
    Dh = E // nhead
    q_start = pl.program_id(1) * tq
    _attention_body(
        lambda h: q_ref[0, :, pl.ds(h * Dh, Dh)],
        lambda h: kv_ref[0, :, pl.ds(E + h * Dh, Dh)],
        lambda h: kv_ref[0, :, pl.ds(2 * E + h * Dh, Dh)],
        kbias_ref, o_ref, nhead=nhead, causal=causal,
        tq=tq, Lk=Lk, E=E, q_start=q_start)


def _cross_attn_kernel(q_ref, kv_ref, kbias_ref, o_ref, *, nhead, tq):
    _, _, E = q_ref.shape
    _, Lk, _ = kv_ref.shape
    Dh = E // nhead
    _attention_body(
        lambda h: q_ref[0, :, pl.ds(h * Dh, Dh)],
        lambda h: kv_ref[0, :, pl.ds(h * Dh, Dh)],
        lambda h: kv_ref[0, :, pl.ds(E + h * Dh, Dh)],
        kbias_ref, o_ref, nhead=nhead, causal=False,
        tq=tq, Lk=Lk, E=E, q_start=0)


def self_attention(qkv, key_bias, nhead, causal):
    """qkv: (N, L, 3E) bf16 fused projections; key_bias: (N, 1, L) additive f32.
    Grid is (batch, Lq-blocks) — both parallel (feeds both v7x TensorCores).
    The qkv tensor is passed twice: Lq-blocked for Q rows, full-L for K/V; the
    full K/V block index is constant across the inner axis so it is DMA'd once
    per batch element."""
    N, L, three_e = qkv.shape
    E = three_e // 3
    tq = _pick_divisor(L, _TQ_PREFS)
    # TODO(synk): for very long sequences, add an "arbitrary" Lk-block axis with
    # online softmax (flash-style m/l/acc scratch) so VMEM stays O(tq*Dh + tq*tk).
    return pl.pallas_call(
        partial(_self_attn_kernel, nhead=nhead, causal=causal, tq=tq),
        grid=(N, L // tq),
        in_specs=[
            pl.BlockSpec((1, tq, three_e), lambda b, qi: (b, qi, 0)),   # Q rows
            pl.BlockSpec((1, L, three_e), lambda b, qi: (b, 0, 0)),     # K/V (full L)
            pl.BlockSpec((1, 1, L), lambda b, qi: (b, 0, 0)),
        ],
        out_specs=pl.BlockSpec((1, tq, E), lambda b, qi: (b, qi, 0)),
        out_shape=jax.ShapeDtypeStruct((N, L, E), _ACT_DTYPE),
        compiler_params=_compiler_params(("parallel", "parallel")),
    )(qkv, qkv, key_bias)


def cross_attention(q, kv, key_bias, nhead):
    """q: (N, Lq, E) bf16; kv: (N, Lk, 2E) bf16 fused K|V; key_bias: (N, 1, Lk) f32."""
    N, Lq, E = q.shape
    _, Lk, two_e = kv.shape
    tq = _pick_divisor(Lq, _TQ_PREFS)
    return pl.pallas_call(
        partial(_cross_attn_kernel, nhead=nhead, tq=tq),
        grid=(N, Lq // tq),
        in_specs=[
            pl.BlockSpec((1, tq, E), lambda b, qi: (b, qi, 0)),
            pl.BlockSpec((1, Lk, two_e), lambda b, qi: (b, 0, 0)),
            pl.BlockSpec((1, 1, Lk), lambda b, qi: (b, 0, 0)),
        ],
        out_specs=pl.BlockSpec((1, tq, E), lambda b, qi: (b, qi, 0)),
        out_shape=jax.ShapeDtypeStruct((N, Lq, E), _ACT_DTYPE),
        compiler_params=_compiler_params(("parallel", "parallel")),
    )(q, kv, key_bias)


# ----------------------------- model glue (JAX) -----------------------------

@lru_cache(maxsize=None)
def _pe_table(L, E):
    """Sinusoidal PE table, computed once host-side per (L, E)."""
    pos = np.arange(L, dtype=np.float32)[:, None]
    idx = np.arange(0, E, 2, dtype=np.float32)
    div = np.exp(-math.log(10000.0) * idx / E)
    ang = pos * div                                            # (L, E//2)
    pe = np.stack([np.sin(ang), np.cos(ang)], axis=-1).reshape(L, E)
    return jnp.asarray(pe, dtype=jnp.float32)


def positional_embedding(tokens, table, E):
    x = jnp.take(table, tokens, axis=0) * math.sqrt(E)
    x = x + _pe_table(tokens.shape[1], E)[None]
    return x.astype(_ACT_DTYPE)


def key_padding_bias(tokens):
    """(N, 1, Lk) additive bias: NEG_INF at PAD positions, else 0.
    Only O(N*Lk) bytes; the full (Lq,Lk) mask is generated in-kernel."""
    return jnp.where(tokens == PAD_ID, NEG_INF, 0.0).astype(jnp.float32)[:, None, :]


def encoder_layer(x2, N, L, p, key_bias, nhead):
    """Post-norm encoder layer on flattened (N*L, E) bf16 activations."""
    E = x2.shape[1]
    qkv = linear(x2, p["self"]["w_qkv"], p["self"]["b_qkv"]).reshape(N, L, 3 * E)
    a = self_attention(qkv, key_bias, nhead, causal=False).reshape(-1, E)
    x2 = linear_add_ln(a, p["self"]["wo"], p["self"]["bo"], x2, p["ln1_g"], p["ln1_b"])
    f = linear(x2, p["w1"], p["b1"], relu=True)
    x2 = linear_add_ln(f, p["w2"], p["b2"], x2, p["ln2_g"], p["ln2_b"])
    return x2


def decoder_layer(x2, N, T, mem2, S, p, tgt_bias, mem_bias, nhead):
    """Post-norm decoder layer on flattened (N*T, E) bf16 activations."""
    E = x2.shape[1]
    qkv = linear(x2, p["self"]["w_qkv"], p["self"]["b_qkv"]).reshape(N, T, 3 * E)
    a = self_attention(qkv, tgt_bias, nhead, causal=True).reshape(-1, E)
    x2 = linear_add_ln(a, p["self"]["wo"], p["self"]["bo"], x2, p["ln1_g"], p["ln1_b"])
    q = linear(x2, p["cross"]["w_q"], p["cross"]["b_q"]).reshape(N, T, E)
    kv = linear(mem2, p["cross"]["w_kv"], p["cross"]["b_kv"]).reshape(N, S, 2 * E)
    c = cross_attention(q, kv, mem_bias, nhead).reshape(-1, E)
    x2 = linear_add_ln(c, p["cross"]["wo"], p["cross"]["bo"], x2, p["ln2_g"], p["ln2_b"])
    f = linear(x2, p["w1"], p["b1"], relu=True)
    x2 = linear_add_ln(f, p["w2"], p["b2"], x2, p["ln3_g"], p["ln3_b"])
    return x2


def transformer_forward(params, sources, targets, *, nhead):
    E = params["src_emb"].shape[1]
    N, S = sources.shape
    _, T = targets.shape

    src_bias = key_padding_bias(sources)   # encoder self-attn + decoder cross-attn keys
    tgt_bias = key_padding_bias(targets)   # decoder self-attn keys (+ causal, in-kernel)

    h = positional_embedding(sources, params["src_emb"], E).reshape(-1, E)
    for lyr in params["enc_layers"]:
        h = encoder_layer(h, N, S, lyr, src_bias, nhead)
    memory = h                              # (N*S, E) bf16

    d = positional_embedding(targets, params["tgt_emb"], E).reshape(-1, E)
    for lyr in params["dec_layers"]:
        d = decoder_layer(d, N, T, memory, S, lyr, tgt_bias, src_bias, nhead)

    # Generator: linear() pads tgt_vocab up to a multiple of 128 internally
    # (lane-dense stores) and slices the logits back; logits kept in f32.
    out = linear(d, params["gen_w"], params["gen_b"], out_dtype=jnp.float32)
    return out.reshape(N, T, params["gen_w"].shape[1])


# ----------------------------- deterministic init -----------------------------

def xavier(key, shape):
    limit = math.sqrt(6.0 / (shape[0] + shape[1]))
    return jax.random.uniform(key, shape, jnp.float32, -limit, limit)


def init_mha(key, E, nhead):
    Dh = E // nhead
    scale = 1.0 / math.sqrt(Dh)             # folded into the Q projection weight
    ks = jax.random.split(key, 4)
    wq, wk, wv, wo = (xavier(k, (E, E)) for k in ks)
    z = jnp.zeros((E,), jnp.float32)
    return {
        # fused projections (biases are zero at init, so scaling only Wq is exact)
        "w_qkv": jnp.concatenate([wq * scale, wk, wv], axis=1).astype(_W_DTYPE),
        "b_qkv": jnp.zeros((3 * E,), jnp.float32),
        "w_q": (wq * scale).astype(_W_DTYPE), "b_q": z,
        "w_kv": jnp.concatenate([wk, wv], axis=1).astype(_W_DTYPE),
        "b_kv": jnp.zeros((2 * E,), jnp.float32),
        "wo": wo.astype(_W_DTYPE), "bo": z,
    }


def init_enc_layer(key, E, nhead, nhid):
    k1, k2, k3 = jax.random.split(key, 3)
    ones, zeros = jnp.ones((E,), jnp.float32), jnp.zeros((E,), jnp.float32)
    return {"self": init_mha(k1, E, nhead),
            "w1": xavier(k2, (E, nhid)).astype(_W_DTYPE),
            "b1": jnp.zeros((nhid,), jnp.float32),
            "w2": xavier(k3, (nhid, E)).astype(_W_DTYPE), "b2": zeros,
            "ln1_g": ones, "ln1_b": zeros, "ln2_g": ones, "ln2_b": zeros}


def init_dec_layer(key, E, nhead, nhid):
    k1, k2, k3, k4 = jax.random.split(key, 4)
    ones, zeros = jnp.ones((E,), jnp.float32), jnp.zeros((E,), jnp.float32)
    return {"self": init_mha(k1, E, nhead), "cross": init_mha(k2, E, nhead),
            "w1": xavier(k3, (E, nhid)).astype(_W_DTYPE),
            "b1": jnp.zeros((nhid,), jnp.float32),
            "w2": xavier(k4, (nhid, E)).astype(_W_DTYPE), "b2": zeros,
            "ln1_g": ones, "ln1_b": zeros, "ln2_g": ones, "ln2_b": zeros,
            "ln3_g": ones, "ln3_b": zeros}


def init_params(key, src_vocab, tgt_vocab, d_model, nhead, nhid, nlayers):
    keys = jax.random.split(key, 3 + 2 * nlayers)
    return {
        "src_emb": xavier(keys[0], (src_vocab, d_model)),   # gathered in JAX; kept f32
        "tgt_emb": xavier(keys[1], (tgt_vocab, d_model)),
        "gen_w": xavier(keys[2], (d_model, tgt_vocab)).astype(_W_DTYPE),
        "gen_b": jnp.zeros((tgt_vocab,), jnp.float32),
        "enc_layers": [init_enc_layer(keys[3 + i], d_model, nhead, nhid)
                       for i in range(nlayers)],
        "dec_layers": [init_dec_layer(keys[3 + nlayers + i], d_model, nhead, nhid)
                       for i in range(nlayers)],
    }


# ----------------------------- main -----------------------------

if __name__ == "__main__":
    src_vocab_len, tgt_vocab_len = 50, 40
    d_model, nhead, nhid, nlayers = 32, 4, 64, 2
    N, S, T = 2, 8, 8

    key = jax.random.PRNGKey(0)
    pkey, skey, tkey = jax.random.split(key, 3)
    params = init_params(pkey, src_vocab_len, tgt_vocab_len, d_model, nhead, nhid, nlayers)

    sources = jax.random.randint(skey, (N, S), 1, src_vocab_len, dtype=jnp.int32)
    targets = jax.random.randint(tkey, (N, T), 1, tgt_vocab_len, dtype=jnp.int32)
    # introduce a few PAD (=0) tokens to exercise key-padding masks
    sources = sources.at[0, -2:].set(PAD_ID)
    targets = targets.at[1, -1].set(PAD_ID)

    fwd = jax.jit(partial(transformer_forward, nhead=nhead))
    out = jax.block_until_ready(fwd(params, sources, targets))

    assert out.shape == (N, T, tgt_vocab_len), out.shape
    assert bool(jnp.all(jnp.isfinite(out)))
    print("KERNEL_OK")
</pallas_src>

<mosaic_0001>
module attributes {stable_mosaic.version = 11 : i64} {
  func.func @_linear_kernel_scratch(%arg0: i32, %arg1: i32, %arg2: i32, %arg3: memref<16x32xbf16, #tpu.memory_space<vmem>>, %arg4: memref<32x128xbf16, #tpu.memory_space<vmem>>, %arg5: memref<1x128xf32, #tpu.memory_space<vmem>>, %arg6: memref<16x128xbf16, #tpu.memory_space<vmem>>, %arg7: memref<16x128xf32, #tpu.memory_space<vmem>>) attributes {dimension_semantics = [#tpu.dimension_semantics<parallel>, #tpu.dimension_semantics<parallel>, #tpu.dimension_semantics<arbitrary>], iteration_bounds = array<i64: 1, 1, 1>, scalar_prefetch = 0 : i64, scratch_operands = 1 : i64, tpu.core_type = #tpu.core_type<tc>, window_params = [{transform_indices = @transform_0, window_bounds = array<i64: 16, 32>}, {transform_indices = @transform_1, window_bounds = array<i64: 32, 128>}, {transform_indices = @transform_2, window_bounds = array<i64: 1, 128>}, {transform_indices = @transform_3, window_bounds = array<i64: 16, 128>}]} {
    %c0_i32 = arith.constant 0 : i32
    %0 = arith.cmpi eq, %arg2, %c0_i32 : i32
    %1 = arith.extui %0 : i1 to i32
    %c0_i32_0 = arith.constant 0 : i32
    %2 = arith.cmpi ne, %1, %c0_i32_0 : i32
    scf.if %2 {
      %cst_10 = arith.constant 0.000000e+00 : f32
      %12 = vector.broadcast %cst_10 : f32 to vector<16x128xf32>
      %c0_11 = arith.constant 0 : index
      %c0_12 = arith.constant 0 : index
      %13 = vector.load %arg7[%c0_11, %c0_12] : memref<16x128xf32, #tpu.memory_space<vmem>>, vector<16x128xf32>
      tpu.vector_store %arg7[%c0_11, %c0_12], %12 {strides = array<i32>} : memref<16x128xf32, #tpu.memory_space<vmem>>, vector<16x128xf32>,
    } else {
    }
    %c0 = arith.constant 0 : index
    %c0_1 = arith.constant 0 : index
    %3 = vector.load %arg7[%c0, %c0_1] : memref<16x128xf32, #tpu.memory_space<vmem>>, vector<16x128xf32>
    %c0_2 = arith.constant 0 : index
    %c0_3 = arith.constant 0 : index
    %4 = vector.load %arg3[%c0_2, %c0_3] : memref<16x32xbf16, #tpu.memory_space<vmem>>, vector<16x32xbf16>
    %c0_4 = arith.constant 0 : index
    %c0_5 = arith.constant 0 : index
    %5 = vector.load %arg4[%c0_4, %c0_5] : memref<32x128xbf16, #tpu.memory_space<vmem>>, vector<32x128xbf16>
    %cst = arith.constant dense<0.000000e+00> : vector<16x128xf32>
    %6 = tpu.matmul %4, %5, %cst {dimension_numbers = #tpu.dot_dimension_numbers<[1], [0], [0], [1], [0, 0, 1, 1], [], []>} : vector<16x32xbf16>, vector<32x128xbf16>, vector<16x128xf32> -> vector<16x128xf32>
    %7 = arith.addf %3, %6 : vector<16x128xf32>
    %c0_6 = arith.constant 0 : index
    %c0_7 = arith.constant 0 : index
    %8 = vector.load %arg7[%c0_6, %c0_7] : memref<16x128xf32, #tpu.memory_space<vmem>>, vector<16x128xf32>
    tpu.vector_store %arg7[%c0_6, %c0_7], %7 {strides = array<i32>} : memref<16x128xf32, #tpu.memory_space<vmem>>, vector<16x128xf32>,
    %c0_i32_8 = arith.constant 0 : i32
    %9 = arith.cmpi eq, %arg2, %c0_i32_8 : i32
    %10 = arith.extui %9 : i1 to i32
    %c0_i32_9 = arith.constant 0 : i32
    %11 = arith.cmpi ne, %10, %c0_i32_9 : i32
    scf.if %11 {
      %c0_10 = arith.constant 0 : index
      %c0_11 = arith.constant 0 : index
      %12 = vector.load %arg7[%c0_10, %c0_11] : memref<16x128xf32, #tpu.memory_space<vmem>>, vector<16x128xf32>
      %c0_12 = arith.constant 0 : index
      %c0_13 = arith.constant 0 : index
      %13 = vector.load %arg5[%c0_12, %c0_13] : memref<1x128xf32, #tpu.memory_space<vmem>>, vector<1x128xf32>
      %14 = vector.broadcast %13 : vector<1x128xf32> to vector<16x128xf32>
      %15 = arith.addf %12, %14 : vector<16x128xf32>
      %16 = arith.truncf %15 : vector<16x128xf32> to vector<16x128xbf16>
      %c0_14 = arith.constant 0 : index
      %c0_15 = arith.constant 0 : index
      %17 = vector.load %arg6[%c0_14, %c0_15] : memref<16x128xbf16, #tpu.memory_space<vmem>>, vector<16x128xbf16>
      tpu.vector_store %arg6[%c0_14, %c0_15], %16 {strides = array<i32>} : memref<16x128xbf16, #tpu.memory_space<vmem>>, vector<16x128xbf16>,
    } else {
    }
    return
  }
  func.func @transform_0(%arg0: i32, %arg1: i32, %arg2: i32) -> (i32, i32) {
    %c0_i32 = arith.constant 0 : i32
    return %arg0, %arg2 : i32, i32
  }
  func.func @transform_1(%arg0: i32, %arg1: i32, %arg2: i32) -> (i32, i32) {
    %c0_i32 = arith.constant 0 : i32
    return %arg2, %arg1 : i32, i32
  }
  func.func @transform_2(%arg0: i32, %arg1: i32, %arg2: i32) -> (i32, i32) {
    %c0_i32 = arith.constant 0 : i32
    %c0_i32_0 = arith.constant 0 : i32
    return %c0_i32, %arg1 : i32, i32
  }
  func.func @transform_3(%arg0: i32, %arg1: i32, %arg2: i32) -> (i32, i32) {
    %c0_i32 = arith.constant 0 : i32
    return %arg0, %arg1 : i32, i32
  }
}

module attributes {stable_mosaic.version = 11 : i64} {
  func.func @_linear_addln_kernel(%arg0: i32, %arg1: i32, %arg2: memref<16x32xbf16, #tpu.memory_space<vmem>>, %arg3: memref<32x32xbf16, #tpu.memory_space<vmem>>, %arg4: memref<1x32xf32, #tpu.memory_space<vmem>>, %arg5: memref<16x32xbf16, #tpu.memory_space<vmem>>, %arg6: memref<1x32xf32, #tpu.memory_space<vmem>>, %arg7: memref<1x32xf32, #tpu.memory_space<vmem>>, %arg8: memref<16x32xbf16, #tpu.memory_space<vmem>>, %arg9: memref<16x32xf32, #tpu.memory_space<vmem>>) attributes {dimension_semantics = [#tpu.dimension_semantics<parallel>, #tpu.dimension_semantics<arbitrary>], iteration_bounds = array<i64: 1, 1>, scalar_prefetch = 0 : i64, scratch_operands = 1 : i64, tpu.core_type = #tpu.core_type<tc>, window_params = [{transform_indices = @transform_0, window_bounds = array<i64: 16, 32>}, {transform_indices = @transform_1, window_bounds = array<i64: 32, 32>}, {pipeline_mode = #tpu.pipeline_mode<synchronous>, transform_indices = @transform_2, window_bounds = array<i64: 1, 32>}, {transform_indices = @transform_3, window_bounds = array<i64: 16, 32>}, {pipeline_mode = #tpu.pipeline_mode<synchronous>, transform_indices = @transform_4, window_bounds = array<i64: 1, 32>}, {pipeline_mode = #tpu.pipeline_mode<synchronous>, transform_indices = @transform_5, window_bounds = array<i64: 1, 32>}, {transform_indices = @transform_6, window_bounds = array<i64: 16, 32>}]} {
    %c0_i32 = arith.constant 0 : i32
    %0 = arith.cmpi eq, %arg1, %c0_i32 : i32
    %1 = arith.extui %0 : i1 to i32
    %c0_i32_0 = arith.constant 0 : i32
    %2 = arith.cmpi ne, %1, %c0_i32_0 : i32
    scf.if %2 {
      %cst_10 = arith.constant 0.000000e+00 : f32
      %12 = vector.broadcast %cst_10 : f32 to vector<16x32xf32>
      %c0_11 = arith.constant 0 : index
      %c0_12 = arith.constant 0 : index
      %13 = vector.load %arg9[%c0_11, %c0_12] : memref<16x32xf32, #tpu.memory_space<vmem>>, vector<16x32xf32>
      tpu.vector_store %arg9[%c0_11, %c0_12], %12 {strides = array<i32>} : memref<16x32xf32, #tpu.memory_space<vmem>>, vector<16x32xf32>,
    } else {
    }
    %c0 = arith.constant 0 : index
    %c0_1 = arith.constant 0 : index
    %3 = vector.load %arg9[%c0, %c0_1] : memref<16x32xf32, #tpu.memory_space<vmem>>, vector<16x32xf32>
    %c0_2 = arith.constant 0 : index
    %c0_3 = arith.constant 0 : index
    %4 = vector.load %arg2[%c0_2, %c0_3] : memref<16x32xbf16, #tpu.memory_space<vmem>>, vector<16x32xbf16>
    %c0_4 = arith.constant 0 : index
    %c0_5 = arith.constant 0 : index
    %5 = vector.load %arg3[%c0_4, %c0_5] : memref<32x32xbf16, #tpu.memory_space<vmem>>, vector<32x32xbf16>
    %cst = arith.constant dense<0.000000e+00> : vector<16x32xf32>
    %6 = tpu.matmul %4, %5, %cst {dimension_numbers = #tpu.dot_dimension_numbers<[1], [0], [0], [1], [0, 0, 1, 1], [], []>} : vector<16x32xbf16>, vector<32x32xbf16>, vector<16x32xf32> -> vector<16x32xf32>
    %7 = arith.addf %3, %6 : vector<16x32xf32>
    %c0_6 = arith.constant 0 : index
    %c0_7 = arith.constant 0 : index
    %8 = vector.load %arg9[%c0_6, %c0_7] : memref<16x32xf32, #tpu.memory_space<vmem>>, vector<16x32xf32>
    tpu.vector_store %arg9[%c0_6, %c0_7], %7 {strides = array<i32>} : memref<16x32xf32, #tpu.memory_space<vmem>>, vector<16x32xf32>,
    %c0_i32_8 = arith.constant 0 : i32
    %9 = arith.cmpi eq, %arg1, %c0_i32_8 : i32
    %10 = arith.extui %9 : i1 to i32
    %c0_i32_9 = arith.constant 0 : i32
    %11 = arith.cmpi ne, %10, %c0_i32_9 : i32
    scf.if %11 {
      %c0_10 = arith.constant 0 : index
      %c0_11 = arith.constant 0 : index
      %12 = vector.load %arg9[%c0_10, %c0_11] : memref<16x32xf32, #tpu.memory_space<vmem>>, vector<16x32xf32>
      %c0_12 = arith.constant 0 : index
      %c0_13 = arith.constant 0 : index
      %13 = vector.load %arg4[%c0_12, %c0_13] : memref<1x32xf32, #tpu.memory_space<vmem>>, vector<1x32xf32>
      %14 = vector.broadcast %13 : vector<1x32xf32> to vector<16x32xf32>
      %15 = arith.addf %12, %14 : vector<16x32xf32>
      %c0_14 = arith.constant 0 : index
      %c0_15 = arith.constant 0 : index
      %16 = vector.load %arg5[%c0_14, %c0_15] : memref<16x32xbf16, #tpu.memory_space<vmem>>, vector<16x32xbf16>
      %17 = arith.extf %16 : vector<16x32xbf16> to vector<16x32xf32>
      %18 = arith.addf %15, %17 : vector<16x32xf32>
      %cst_16 = arith.constant dense<0.000000e+00> : vector<16xf32>
      %19 = vector.multi_reduction <add>, %18, %cst_16 [1] : vector<16x32xf32> to vector<16xf32>
      %20 = vector.shape_cast %19 : vector<16xf32> to vector<16x1xf32>
      %cst_17 = arith.constant 3.200000e+01 : f32
      %21 = vector.broadcast %cst_17 : f32 to vector<16x1xf32>
      %22 = arith.divf %20, %21 : vector<16x1xf32>
      %23 = vector.broadcast %22 : vector<16x1xf32> to vector<16x32xf32>
      %24 = arith.subf %18, %23 : vector<16x32xf32>
      %25 = arith.mulf %24, %24 : vector<16x32xf32>
      %cst_18 = arith.constant dense<0.000000e+00> : vector<16xf32>
      %26 = vector.multi_reduction <add>, %25, %cst_18 [1] : vector<16x32xf32> to vector<16xf32>
      %27 = vector.shape_cast %26 : vector<16xf32> to vector<16x1xf32>
      %cst_19 = arith.constant 3.200000e+01 : f32
      %28 = vector.broadcast %cst_19 : f32 to vector<16x1xf32>
      %29 = arith.divf %27, %28 : vector<16x1xf32>
      %cst_20 = arith.constant 9.99999974E-6 : f32
      %30 = vector.broadcast %cst_20 : f32 to vector<16x1xf32>
      %31 = arith.addf %29, %30 : vector<16x1xf32>
      %32 = math.rsqrt %31 : vector<16x1xf32>
      %33 = vector.broadcast %32 : vector<16x1xf32> to vector<16x32xf32>
      %34 = arith.mulf %24, %33 : vector<16x32xf32>
      %c0_21 = arith.constant 0 : index
      %c0_22 = arith.constant 0 : index
      %35 = vector.load %arg6[%c0_21, %c0_22] : memref<1x32xf32, #tpu.memory_space<vmem>>, vector<1x32xf32>
      %36 = vector.broadcast %35 : vector<1x32xf32> to vector<16x32xf32>
      %37 = arith.mulf %34, %36 : vector<16x32xf32>
      %c0_23 = arith.constant 0 : index
      %c0_24 = arith.constant 0 : index
      %38 = vector.load %arg7[%c0_23, %c0_24] : memref<1x32xf32, #tpu.memory_space<vmem>>, vector<1x32xf32>
      %39 = vector.broadcast %38 : vector<1x32xf32> to vector<16x32xf32>
      %40 = arith.addf %37, %39 : vector<16x32xf32>
      %41 = arith.truncf %40 : vector<16x32xf32> to vector<16x32xbf16>
      %c0_25 = arith.constant 0 : index
      %c0_26 = arith.constant 0 : index
      %42 = vector.load %arg8[%c0_25, %c0_26] : memref<16x32xbf16, #tpu.memory_space<vmem>>, vector<16x32xbf16>
      tpu.vector_store %arg8[%c0_25, %c0_26], %41 {strides = array<i32>} : memref<16x32xbf16, #tpu.memory_space<vmem>>, vector<16x32xbf16>,
    } else {
    }
    return
  }
  func.func @transform_0(%arg0: i32, %arg1: i32) -> (i32, i32) {
    %c0_i32 = arith.constant 0 : i32
    return %arg0, %arg1 : i32, i32
  }
  func.func @transform_1(%arg0: i32, %arg1: i32) -> (i32, i32) {
    %c0_i32 = arith.constant 0 : i32
    %c0_i32_0 = arith.constant 0 : i32
    return %arg1, %c0_i32 : i32, i32
  }
  func.func @transform_2(%arg0: i32, %arg1: i32) -> (i32, i32) {
    %c0_i32 = arith.constant 0 : i32
    %c0_i32_0 = arith.constant 0 : i32
    %c0_i32_1 = arith.constant 0 : i32
    return %c0_i32, %c0_i32_0 : i32, i32
  }
  func.func @transform_3(%arg0: i32, %arg1: i32) -> (i32, i32) {
    %c0_i32 = arith.constant 0 : i32
    %c0_i32_0 = arith.constant 0 : i32
    return %arg0, %c0_i32 : i32, i32
  }
  func.func @transform_4(%arg0: i32, %arg1: i32) -> (i32, i32) {
    %c0_i32 = arith.constant 0 : i32
    %c0_i32_0 = arith.constant 0 : i32
    %c0_i32_1 = arith.constant 0 : i32
    return %c0_i32, %c0_i32_0 : i32, i32
  }
  func.func @transform_5(%arg0: i32, %arg1: i32) -> (i32, i32) {
    %c0_i32 = arith.constant 0 : i32
    %c0_i32_0 = arith.constant 0 : i32
    %c0_i32_1 = arith.constant 0 : i32
    return %c0_i32, %c0_i32_0 : i32, i32
  }
  func.func @transform_6(%arg0: i32, %arg1: i32) -> (i32, i32) {
    %c0_i32 = arith.constant 0 : i32
    %c0_i32_0 = arith.constant 0 : i32
    return %arg0, %c0_i32 : i32, i32
  }
}

module attributes {stable_mosaic.version = 11 : i64} {
  func.func @_self_attn_kernel(%arg0: i32, %arg1: i32, %arg2: memref<1x8x96xbf16, #tpu.memory_space<vmem>>, %arg3: memref<1x8x96xbf16, #tpu.memory_space<vmem>>, %arg4: memref<1x1x8xf32, #tpu.memory_space<vmem>>, %arg5: memref<1x8x32xbf16, #tpu.memory_space<vmem>>) attributes {dimension_semantics = [#tpu.dimension_semantics<parallel>, #tpu.dimension_semantics<parallel>], iteration_bounds = array<i64: 2, 1>, scalar_prefetch = 0 : i64, scratch_operands = 0 : i64, tpu.core_type = #tpu.core_type<tc>, window_params = [{transform_indices = @transform_0, window_bounds = array<i64: 1, 8, 96>}, {transform_indices = @transform_1, window_bounds = array<i64: 1, 8, 96>}, {transform_indices = @transform_2, window_bounds = array<i64: 1, 1, 8>}, {transform_indices = @transform_3, window_bounds = array<i64: 1, 8, 32>}]} {
    %c8_i32 = arith.constant 8 : i32
    %0 = arith.muli %arg1, %c8_i32 : i32
    %c0 = arith.constant 0 : index
    %c0_0 = arith.constant 0 : index
    %c0_1 = arith.constant 0 : index
    %1 = vector.load %arg4[%c0, %c0_0, %c0_1] : memref<1x1x8xf32, #tpu.memory_space<vmem>>, vector<1x1x8xf32>
    %2 = vector.shape_cast %1 : vector<1x1x8xf32> to vector<1x8xf32>
    %3 = vector.shape_cast %2 : vector<1x8xf32> to vector<1x8xf32>
    %4 = vector.broadcast %3 : vector<1x8xf32> to vector<8x8xf32>
    %5 = tpu.iota {dimensions = array<i32: 0>} : vector<8x8xi32>
    %6 = vector.broadcast %0 : i32 to vector<8x8xi32>
    %7 = arith.addi %6, %5 : vector<8x8xi32>
    %8 = tpu.iota {dimensions = array<i32: 1>} : vector<8x8xi32>
    %9 = arith.cmpi sgt, %8, %7 : vector<8x8xi32>
    %cst = arith.constant -1.000000e+09 : f32
    %cst_2 = arith.constant 0.000000e+00 : f32
    %10 = vector.broadcast %cst : f32 to vector<8x8xf32>
    %11 = vector.broadcast %cst_2 : f32 to vector<8x8xf32>
    %12 = arith.select %9, %10, %11 : vector<8x8xi1>, vector<8x8xf32>
    %13 = arith.addf %4, %12 : vector<8x8xf32>
    %c0_3 = arith.constant 0 : index
    %c0_4 = arith.constant 0 : index
    %c0_5 = arith.constant 0 : index
    %14 = vector.load %arg2[%c0_3, %c0_4, %c0_5] : memref<1x8x96xbf16, #tpu.memory_space<vmem>>, vector<1x8x8xbf16>
    %15 = vector.shape_cast %14 : vector<1x8x8xbf16> to vector<8x8xbf16>
    %c0_6 = arith.constant 0 : index
    %c0_7 = arith.constant 0 : index
    %c32 = arith.constant 32 : index
    %16 = vector.load %arg3[%c0_6, %c0_7, %c32] : memref<1x8x96xbf16, #tpu.memory_space<vmem>>, vector<1x8x8xbf16>
    %17 = vector.shape_cast %16 : vector<1x8x8xbf16> to vector<8x8xbf16>
    %c0_8 = arith.constant 0 : index
    %c0_9 = arith.constant 0 : index
    %c64 = arith.constant 64 : index
    %18 = vector.load %arg3[%c0_8, %c0_9, %c64] : memref<1x8x96xbf16, #tpu.memory_space<vmem>>, vector<1x8x8xbf16>
    %19 = vector.shape_cast %18 : vector<1x8x8xbf16> to vector<8x8xbf16>
    %cst_10 = arith.constant dense<0.000000e+00> : vector<8x8xf32>
    %20 = tpu.matmul %15, %17, %cst_10 {dimension_numbers = #tpu.dot_dimension_numbers<[1], [1], [0], [0], [0, 0, 1, 0], [], []>} : vector<8x8xbf16>, vector<8x8xbf16>, vector<8x8xf32> -> vector<8x8xf32>
    %21 = arith.addf %20, %13 : vector<8x8xf32>
    %cst_11 = arith.constant dense<0xFF800000> : vector<8xf32>
    %22 = vector.multi_reduction <maximumf>, %21, %cst_11 [1] : vector<8x8xf32> to vector<8xf32>
    %23 = vector.shape_cast %22 : vector<8xf32> to vector<8x1xf32>
    %24 = vector.broadcast %23 : vector<8x1xf32> to vector<8x8xf32>
    %25 = arith.subf %21, %24 : vector<8x8xf32>
    %26 = math.exp %25 : vector<8x8xf32>
    %cst_12 = arith.constant dense<0.000000e+00> : vector<8xf32>
    %27 = vector.multi_reduction <add>, %26, %cst_12 [1] : vector<8x8xf32> to vector<8xf32>
    %28 = vector.shape_cast %27 : vector<8xf32> to vector<8x1xf32>
    %29 = tpu.reciprocal %28 {approx = true} : vector<8x1xf32> -> vector<8x1xf32>
    %30 = vector.broadcast %29 : vector<8x1xf32> to vector<8x8xf32>
    %31 = arith.mulf %26, %30 : vector<8x8xf32>
    %32 = arith.truncf %31 : vector<8x8xf32> to vector<8x8xbf16>
    %cst_13 = arith.constant dense<0.000000e+00> : vector<8x8xf32>
    %33 = tpu.matmul %32, %19, %cst_13 {dimension_numbers = #tpu.dot_dimension_numbers<[1], [0], [0], [1], [0, 0, 1, 1], [], []>} : vector<8x8xbf16>, vector<8x8xbf16>, vector<8x8xf32> -> vector<8x8xf32>
    %34 = arith.truncf %33 : vector<8x8xf32> to vector<8x8xbf16>
    %c0_14 = arith.constant 0 : index
    %c0_15 = arith.constant 0 : index
    %c0_16 = arith.constant 0 : index
    %35 = vector.load %arg5[%c0_14, %c0_15, %c0_16] : memref<1x8x32xbf16, #tpu.memory_space<vmem>>, vector<1x8x8xbf16>
    %36 = vector.shape_cast %35 : vector<1x8x8xbf16> to vector<8x8xbf16>
    %37 = vector.shape_cast %34 : vector<8x8xbf16> to vector<1x8x8xbf16>
    tpu.vector_store %arg5[%c0_14, %c0_15, %c0_16], %37 {strides = array<i32>} : memref<1x8x32xbf16, #tpu.memory_space<vmem>>, vector<1x8x8xbf16>,
    %c0_17 = arith.constant 0 : index
    %c0_18 = arith.constant 0 : index
    %c8 = arith.constant 8 : index
    %38 = vector.load %arg2[%c0_17, %c0_18, %c8] : memref<1x8x96xbf16, #tpu.memory_space<vmem>>, vector<1x8x8xbf16>
    %39 = vector.shape_cast %38 : vector<1x8x8xbf16> to vector<8x8xbf16>
    %c0_19 = arith.constant 0 : index
    %c0_20 = arith.constant 0 : index
    %c40 = arith.constant 40 : index
    %40 = vector.load %arg3[%c0_19, %c0_20, %c40] : memref<1x8x96xbf16, #tpu.memory_space<vmem>>, vector<1x8x8xbf16>
    %41 = vector.shape_cast %40 : vector<1x8x8xbf16> to vector<8x8xbf16>
    %c0_21 = arith.constant 0 : index
    %c0_22 = arith.constant 0 : index
    %c72 = arith.constant 72 : index
    %42 = vector.load %arg3[%c0_21, %c0_22, %c72] : memref<1x8x96xbf16, #tpu.memory_space<vmem>>, vector<1x8x8xbf16>
    %43 = vector.shape_cast %42 : vector<1x8x8xbf16> to vector<8x8xbf16>
    %cst_23 = arith.constant dense<0.000000e+00> : vector<8x8xf32>
    %44 = tpu.matmul %39, %41, %cst_23 {dimension_numbers = #tpu.dot_dimension_numbers<[1], [1], [0], [0], [0, 0, 1, 0], [], []>} : vector<8x8xbf16>, vector<8x8xbf16>, vector<8x8xf32> -> vector<8x8xf32>
    %45 = arith.addf %44, %13 : vector<8x8xf32>
    %cst_24 = arith.constant dense<0xFF800000> : vector<8xf32>
    %46 = vector.multi_reduction <maximumf>, %45, %cst_24 [1] : vector<8x8xf32> to vector<8xf32>
    %47 = vector.shape_cast %46 : vector<8xf32> to vector<8x1xf32>
    %48 = vector.broadcast %47 : vector<8x1xf32> to vector<8x8xf32>
    %49 = arith.subf %45, %48 : vector<8x8xf32>
    %50 = math.exp %49 : vector<8x8xf32>
    %cst_25 = arith.constant dense<0.000000e+00> : vector<8xf32>
    %51 = vector.multi_reduction <add>, %50, %cst_25 [1] : vector<8x8xf32> to vector<8xf32>
    %52 = vector.shape_cast %51 : vector<8xf32> to vector<8x1xf32>
    %53 = tpu.reciprocal %52 {approx = true} : vector<8x1xf32> -> vector<8x1xf32>
    %54 = vector.broadcast %53 : vector<8x1xf32> to vector<8x8xf32>
    %55 = arith.mulf %50, %54 : vector<8x8xf32>
    %56 = arith.truncf %55 : vector<8x8xf32> to vector<8x8xbf16>
    %cst_26 = arith.constant dense<0.000000e+00> : vector<8x8xf32>
    %57 = tpu.matmul %56, %43, %cst_26 {dimension_numbers = #tpu.dot_dimension_numbers<[1], [0], [0], [1], [0, 0, 1, 1], [], []>} : vector<8x8xbf16>, vector<8x8xbf16>, vector<8x8xf32> -> vector<8x8xf32>
    %58 = arith.truncf %57 : vector<8x8xf32> to vector<8x8xbf16>
    %c0_27 = arith.constant 0 : index
    %c0_28 = arith.constant 0 : index
    %c8_29 = arith.constant 8 : index
    %59 = vector.load %arg5[%c0_27, %c0_28, %c8_29] : memref<1x8x32xbf16, #tpu.memory_space<vmem>>, vector<1x8x8xbf16>
    %60 = vector.shape_cast %59 : vector<1x8x8xbf16> to vector<8x8xbf16>
    %61 = vector.shape_cast %58 : vector<8x8xbf16> to vector<1x8x8xbf16>
    tpu.vector_store %arg5[%c0_27, %c0_28, %c8_29], %61 {strides = array<i32>} : memref<1x8x32xbf16, #tpu.memory_space<vmem>>, vector<1x8x8xbf16>,
    %c0_30 = arith.constant 0 : index
    %c0_31 = arith.constant 0 : index
    %c16 = arith.constant 16 : index
    %62 = vector.load %arg2[%c0_30, %c0_31, %c16] : memref<1x8x96xbf16, #tpu.memory_space<vmem>>, vector<1x8x8xbf16>
    %63 = vector.shape_cast %62 : vector<1x8x8xbf16> to vector<8x8xbf16>
    %c0_32 = arith.constant 0 : index
    %c0_33 = arith.constant 0 : index
    %c48 = arith.constant 48 : index
    %64 = vector.load %arg3[%c0_32, %c0_33, %c48] : memref<1x8x96xbf16, #tpu.memory_space<vmem>>, vector<1x8x8xbf16>
    %65 = vector.shape_cast %64 : vector<1x8x8xbf16> to vector<8x8xbf16>
    %c0_34 = arith.constant 0 : index
    %c0_35 = arith.constant 0 : index
    %c80 = arith.constant 80 : index
    %66 = vector.load %arg3[%c0_34, %c0_35, %c80] : memref<1x8x96xbf16, #tpu.memory_space<vmem>>, vector<1x8x8xbf16>
    %67 = vector.shape_cast %66 : vector<1x8x8xbf16> to vector<8x8xbf16>
    %cst_36 = arith.constant dense<0.000000e+00> : vector<8x8xf32>
    %68 = tpu.matmul %63, %65, %cst_36 {dimension_numbers = #tpu.dot_dimension_numbers<[1], [1], [0], [0], [0, 0, 1, 0], [], []>} : vector<8x8xbf16>, vector<8x8xbf16>, vector<8x8xf32> -> vector<8x8xf32>
    %69 = arith.addf %68, %13 : vector<8x8xf32>
    %cst_37 = arith.constant dense<0xFF800000> : vector<8xf32>
    %70 = vector.multi_reduction <maximumf>, %69, %cst_37 [1] : vector<8x8xf32> to vector<8xf32>
    %71 = vector.shape_cast %70 : vector<8xf32> to vector<8x1xf32>
    %72 = vector.broadcast %71 : vector<8x1xf32> to vector<8x8xf32>
    %73 = arith.subf %69, %72 : vector<8x8xf32>
    %74 = math.exp %73 : vector<8x8xf32>
    %cst_38 = arith.constant dense<0.000000e+00> : vector<8xf32>
    %75 = vector.multi_reduction <add>, %74, %cst_38 [1] : vector<8x8xf32> to vector<8xf32>
    %76 = vector.shape_cast %75 : vector<8xf32> to vector<8x1xf32>
    %77 = tpu.reciprocal %76 {approx = true} : vector<8x1xf32> -> vector<8x1xf32>
    %78 = vector.broadcast %77 : vector<8x1xf32> to vector<8x8xf32>
    %79 = arith.mulf %74, %78 : vector<8x8xf32>
    %80 = arith.truncf %79 : vector<8x8xf32> to vector<8x8xbf16>
    %cst_39 = arith.constant dense<0.000000e+00> : vector<8x8xf32>
    %81 = tpu.matmul %80, %67, %cst_39 {dimension_numbers = #tpu.dot_dimension_numbers<[1], [0], [0], [1], [0, 0, 1, 1], [], []>} : vector<8x8xbf16>, vector<8x8xbf16>, vector<8x8xf32> -> vector<8x8xf32>
    %82 = arith.truncf %81 : vector<8x8xf32> to vector<8x8xbf16>
    %c0_40 = arith.constant 0 : index
    %c0_41 = arith.constant 0 : index
    %c16_42 = arith.constant 16 : index
    %83 = vector.load %arg5[%c0_40, %c0_41, %c16_42] : memref<1x8x32xbf16, #tpu.memory_space<vmem>>, vector<1x8x8xbf16>
    %84 = vector.shape_cast %83 : vector<1x8x8xbf16> to vector<8x8xbf16>
    %85 = vector.shape_cast %82 : vector<8x8xbf16> to vector<1x8x8xbf16>
    tpu.vector_store %arg5[%c0_40, %c0_41, %c16_42], %85 {strides = array<i32>} : memref<1x8x32xbf16, #tpu.memory_space<vmem>>, vector<1x8x8xbf16>,
    %c0_43 = arith.constant 0 : index
    %c0_44 = arith.constant 0 : index
    %c24 = arith.constant 24 : index
    %86 = vector.load %arg2[%c0_43, %c0_44, %c24] : memref<1x8x96xbf16, #tpu.memory_space<vmem>>, vector<1x8x8xbf16>
    %87 = vector.shape_cast %86 : vector<1x8x8xbf16> to vector<8x8xbf16>
    %c0_45 = arith.constant 0 : index
    %c0_46 = arith.constant 0 : index
    %c56 = arith.constant 56 : index
    %88 = vector.load %arg3[%c0_45, %c0_46, %c56] : memref<1x8x96xbf16, #tpu.memory_space<vmem>>, vector<1x8x8xbf16>
    %89 = vector.shape_cast %88 : vector<1x8x8xbf16> to vector<8x8xbf16>
    %c0_47 = arith.constant 0 : index
    %c0_48 = arith.constant 0 : index
    %c88 = arith.constant 88 : index
    %90 = vector.load %arg3[%c0_47, %c0_48, %c88] : memref<1x8x96xbf16, #tpu.memory_space<vmem>>, vector<1x8x8xbf16>
    %91 = vector.shape_cast %90 : vector<1x8x8xbf16> to vector<8x8xbf16>
    %cst_49 = arith.constant dense<0.000000e+00> : vector<8x8xf32>
    %92 = tpu.matmul %87, %89, %cst_49 {dimension_numbers = #tpu.dot_dimension_numbers<[1], [1], [0], [0], [0, 0, 1, 0], [], []>} : vector<8x8xbf16>, vector<8x8xbf16>, vector<8x8xf32> -> vector<8x8xf32>
    %93 = arith.addf %92, %13 : vector<8x8xf32>
    %cst_50 = arith.constant dense<0xFF800000> : vector<8xf32>
    %94 = vector.multi_reduction <maximumf>, %93, %cst_50 [1] : vector<8x8xf32> to vector<8xf32>
    %95 = vector.shape_cast %94 : vector<8xf32> to vector<8x1xf32>
    %96 = vector.broadcast %95 : vector<8x1xf32> to vector<8x8xf32>
    %97 = arith.subf %93, %96 : vector<8x8xf32>
    %98 = math.exp %97 : vector<8x8xf32>
    %cst_51 = arith.constant dense<0.000000e+00> : vector<8xf32>
    %99 = vector.multi_reduction <add>, %98, %cst_51 [1] : vector<8x8xf32> to vector<8xf32>
    %100 = vector.shape_cast %99 : vector<8xf32> to vector<8x1xf32>
    %101 = tpu.reciprocal %100 {approx = true} : vector<8x1xf32> -> vector<8x1xf32>
    %102 = vector.broadcast %101 : vector<8x1xf32> to vector<8x8xf32>
    %103 = arith.mulf %98, %102 : vector<8x8xf32>
    %104 = arith.truncf %103 : vector<8x8xf32> to vector<8x8xbf16>
    %cst_52 = arith.constant dense<0.000000e+00> : vector<8x8xf32>
    %105 = tpu.matmul %104, %91, %cst_52 {dimension_numbers = #tpu.dot_dimension_numbers<[1], [0], [0], [1], [0, 0, 1, 1], [], []>} : vector<8x8xbf16>, vector<8x8xbf16>, vector<8x8xf32> -> vector<8x8xf32>
    %106 = arith.truncf %105 : vector<8x8xf32> to vector<8x8xbf16>
    %c0_53 = arith.constant 0 : index
    %c0_54 = arith.constant 0 : index
    %c24_55 = arith.constant 24 : index
    %107 = vector.load %arg5[%c0_53, %c0_54, %c24_55] : memref<1x8x32xbf16, #tpu.memory_space<vmem>>, vector<1x8x8xbf16>
    %108 = vector.shape_cast %107 : vector<1x8x8xbf16> to vector<8x8xbf16>
    %109 = vector.shape_cast %106 : vector<8x8xbf16> to vector<1x8x8xbf16>
    tpu.vector_store %arg5[%c0_53, %c0_54, %c24_55], %109 {strides = array<i32>} : memref<1x8x32xbf16, #tpu.memory_space<vmem>>, vector<1x8x8xbf16>,
    return
  }
  func.func @transform_0(%arg0: i32, %arg1: i32) -> (i32, i32, i32) {
    %c0_i32 = arith.constant 0 : i32
    %c0_i32_0 = arith.constant 0 : i32
    return %arg0, %arg1, %c0_i32 : i32, i32, i32
  }
  func.func @transform_1(%arg0: i32, %arg1: i32) -> (i32, i32, i32) {
    %c0_i32 = arith.constant 0 : i32
    %c0_i32_0 = arith.constant 0 : i32
    %c0_i32_1 = arith.constant 0 : i32
    return %arg0, %c0_i32, %c0_i32_0 : i32, i32, i32
  }
  func.func @transform_2(%arg0: i32, %arg1: i32) -> (i32, i32, i32) {
    %c0_i32 = arith.constant 0 : i32
    %c0_i32_0 = arith.constant 0 : i32
    %c0_i32_1 = arith.constant 0 : i32
    return %arg0, %c0_i32, %c0_i32_0 : i32, i32, i32
  }
  func.func @transform_3(%arg0: i32, %arg1: i32) -> (i32, i32, i32) {
    %c0_i32 = arith.constant 0 : i32
    %c0_i32_0 = arith.constant 0 : i32
    return %arg0, %arg1, %c0_i32 : i32, i32, i32
  }
}

module attributes {stable_mosaic.version = 11 : i64} {
  func.func @_self_attn_kernel(%arg0: i32, %arg1: i32, %arg2: memref<1x8x96xbf16, #tpu.memory_space<vmem>>, %arg3: memref<1x8x96xbf16, #tpu.memory_space<vmem>>, %arg4: memref<1x1x8xf32, #tpu.memory_space<vmem>>, %arg5: memref<1x8x32xbf16, #tpu.memory_space<vmem>>) attributes {dimension_semantics = [#tpu.dimension_semantics<parallel>, #tpu.dimension_semantics<parallel>], iteration_bounds = array<i64: 2, 1>, scalar_prefetch = 0 : i64, scratch_operands = 0 : i64, tpu.core_type = #tpu.core_type<tc>, window_params = [{transform_indices = @transform_0, window_bounds = array<i64: 1, 8, 96>}, {transform_indices = @transform_1, window_bounds = array<i64: 1, 8, 96>}, {transform_indices = @transform_2, window_bounds = array<i64: 1, 1, 8>}, {transform_indices = @transform_3, window_bounds = array<i64: 1, 8, 32>}]} {
    %c0 = arith.constant 0 : index
    %c0_0 = arith.constant 0 : index
    %c0_1 = arith.constant 0 : index
    %0 = vector.load %arg4[%c0, %c0_0, %c0_1] : memref<1x1x8xf32, #tpu.memory_space<vmem>>, vector<1x1x8xf32>
    %1 = vector.shape_cast %0 : vector<1x1x8xf32> to vector<1x8xf32>
    %2 = vector.shape_cast %1 : vector<1x8xf32> to vector<1x8xf32>
    %3 = vector.broadcast %2 : vector<1x8xf32> to vector<8x8xf32>
    %c0_2 = arith.constant 0 : index
    %c0_3 = arith.constant 0 : index
    %c0_4 = arith.constant 0 : index
    %4 = vector.load %arg2[%c0_2, %c0_3, %c0_4] : memref<1x8x96xbf16, #tpu.memory_space<vmem>>, vector<1x8x8xbf16>
    %5 = vector.shape_cast %4 : vector<1x8x8xbf16> to vector<8x8xbf16>
    %c0_5 = arith.constant 0 : index
    %c0_6 = arith.constant 0 : index
    %c32 = arith.constant 32 : index
    %6 = vector.load %arg3[%c0_5, %c0_6, %c32] : memref<1x8x96xbf16, #tpu.memory_space<vmem>>, vector<1x8x8xbf16>
    %7 = vector.shape_cast %6 : vector<1x8x8xbf16> to vector<8x8xbf16>
    %c0_7 = arith.constant 0 : index
    %c0_8 = arith.constant 0 : index
    %c64 = arith.constant 64 : index
    %8 = vector.load %arg3[%c0_7, %c0_8, %c64] : memref<1x8x96xbf16, #tpu.memory_space<vmem>>, vector<1x8x8xbf16>
    %9 = vector.shape_cast %8 : vector<1x8x8xbf16> to vector<8x8xbf16>
    %cst = arith.constant dense<0.000000e+00> : vector<8x8xf32>
    %10 = tpu.matmul %5, %7, %cst {dimension_numbers = #tpu.dot_dimension_numbers<[1], [1], [0], [0], [0, 0, 1, 0], [], []>} : vector<8x8xbf16>, vector<8x8xbf16>, vector<8x8xf32> -> vector<8x8xf32>
    %11 = arith.addf %10, %3 : vector<8x8xf32>
    %cst_9 = arith.constant dense<0xFF800000> : vector<8xf32>
    %12 = vector.multi_reduction <maximumf>, %11, %cst_9 [1] : vector<8x8xf32> to vector<8xf32>
    %13 = vector.shape_cast %12 : vector<8xf32> to vector<8x1xf32>
    %14 = vector.broadcast %13 : vector<8x1xf32> to vector<8x8xf32>
    %15 = arith.subf %11, %14 : vector<8x8xf32>
    %16 = math.exp %15 : vector<8x8xf32>
    %cst_10 = arith.constant dense<0.000000e+00> : vector<8xf32>
    %17 = vector.multi_reduction <add>, %16, %cst_10 [1] : vector<8x8xf32> to vector<8xf32>
    %18 = vector.shape_cast %17 : vector<8xf32> to vector<8x1xf32>
    %19 = tpu.reciprocal %18 {approx = true} : vector<8x1xf32> -> vector<8x1xf32>
    %20 = vector.broadcast %19 : vector<8x1xf32> to vector<8x8xf32>
    %21 = arith.mulf %16, %20 : vector<8x8xf32>
    %22 = arith.truncf %21 : vector<8x8xf32> to vector<8x8xbf16>
    %cst_11 = arith.constant dense<0.000000e+00> : vector<8x8xf32>
    %23 = tpu.matmul %22, %9, %cst_11 {dimension_numbers = #tpu.dot_dimension_numbers<[1], [0], [0], [1], [0, 0, 1, 1], [], []>} : vector<8x8xbf16>, vector<8x8xbf16>, vector<8x8xf32> -> vector<8x8xf32>
    %24 = arith.truncf %23 : vector<8x8xf32> to vector<8x8xbf16>
    %c0_12 = arith.constant 0 : index
    %c0_13 = arith.constant 0 : index
    %c0_14 = arith.constant 0 : index
    %25 = vector.load %arg5[%c0_12, %c0_13, %c0_14] : memref<1x8x32xbf16, #tpu.memory_space<vmem>>, vector<1x8x8xbf16>
    %26 = vector.shape_cast %25 : vector<1x8x8xbf16> to vector<8x8xbf16>
    %27 = vector.shape_cast %24 : vector<8x8xbf16> to vector<1x8x8xbf16>
    tpu.vector_store %arg5[%c0_12, %c0_13, %c0_14], %27 {strides = array<i32>} : memref<1x8x32xbf16, #tpu.memory_space<vmem>>, vector<1x8x8xbf16>,
    %c0_15 = arith.constant 0 : index
    %c0_16 = arith.constant 0 : index
    %c8 = arith.constant 8 : index
    %28 = vector.load %arg2[%c0_15, %c0_16, %c8] : memref<1x8x96xbf16, #tpu.memory_space<vmem>>, vector<1x8x8xbf16>
    %29 = vector.shape_cast %28 : vector<1x8x8xbf16> to vector<8x8xbf16>
    %c0_17 = arith.constant 0 : index
    %c0_18 = arith.constant 0 : index
    %c40 = arith.constant 40 : index
    %30 = vector.load %arg3[%c0_17, %c0_18, %c40] : memref<1x8x96xbf16, #tpu.memory_space<vmem>>, vector<1x8x8xbf16>
    %31 = vector.shape_cast %30 : vector<1x8x8xbf16> to vector<8x8xbf16>
    %c0_19 = arith.constant 0 : index
    %c0_20 = arith.constant 0 : index
    %c72 = arith.constant 72 : index
    %32 = vector.load %arg3[%c0_19, %c0_20, %c72] : memref<1x8x96xbf16, #tpu.memory_space<vmem>>, vector<1x8x8xbf16>
    %33 = vector.shape_cast %32 : vector<1x8x8xbf16> to vector<8x8xbf16>
    %cst_21 = arith.constant dense<0.000000e+00> : vector<8x8xf32>
    %34 = tpu.matmul %29, %31, %cst_21 {dimension_numbers = #tpu.dot_dimension_numbers<[1], [1], [0], [0], [0, 0, 1, 0], [], []>} : vector<8x8xbf16>, vector<8x8xbf16>, vector<8x8xf32> -> vector<8x8xf32>
    %35 = arith.addf %34, %3 : vector<8x8xf32>
    %cst_22 = arith.constant dense<0xFF800000> : vector<8xf32>
    %36 = vector.multi_reduction <maximumf>, %35, %cst_22 [1] : vector<8x8xf32> to vector<8xf32>
    %37 = vector.shape_cast %36 : vector<8xf32> to vector<8x1xf32>
    %38 = vector.broadcast %37 : vector<8x1xf32> to vector<8x8xf32>
    %39 = arith.subf %35, %38 : vector<8x8xf32>
    %40 = math.exp %39 : vector<8x8xf32>
    %cst_23 = arith.constant dense<0.000000e+00> : vector<8xf32>
    %41 = vector.multi_reduction <add>, %40, %cst_23 [1] : vector<8x8xf32> to vector<8xf32>
    %42 = vector.shape_cast %41 : vector<8xf32> to vector<8x1xf32>
    %43 = tpu.reciprocal %42 {approx = true} : vector<8x1xf32> -> vector<8x1xf32>
    %44 = vector.broadcast %43 : vector<8x1xf32> to vector<8x8xf32>
    %45 = arith.mulf %40, %44 : vector<8x8xf32>
    %46 = arith.truncf %45 : vector<8x8xf32> to vector<8x8xbf16>
    %cst_24 = arith.constant dense<0.000000e+00> : vector<8x8xf32>
    %47 = tpu.matmul %46, %33, %cst_24 {dimension_numbers = #tpu.dot_dimension_numbers<[1], [0], [0], [1], [0, 0, 1, 1], [], []>} : vector<8x8xbf16>, vector<8x8xbf16>, vector<8x8xf32> -> vector<8x8xf32>
    %48 = arith.truncf %47 : vector<8x8xf32> to vector<8x8xbf16>
    %c0_25 = arith.constant 0 : index
    %c0_26 = arith.constant 0 : index
    %c8_27 = arith.constant 8 : index
    %49 = vector.load %arg5[%c0_25, %c0_26, %c8_27] : memref<1x8x32xbf16, #tpu.memory_space<vmem>>, vector<1x8x8xbf16>
    %50 = vector.shape_cast %49 : vector<1x8x8xbf16> to vector<8x8xbf16>
    %51 = vector.shape_cast %48 : vector<8x8xbf16> to vector<1x8x8xbf16>
    tpu.vector_store %arg5[%c0_25, %c0_26, %c8_27], %51 {strides = array<i32>} : memref<1x8x32xbf16, #tpu.memory_space<vmem>>, vector<1x8x8xbf16>,
    %c0_28 = arith.constant 0 : index
    %c0_29 = arith.constant 0 : index
    %c16 = arith.constant 16 : index
    %52 = vector.load %arg2[%c0_28, %c0_29, %c16] : memref<1x8x96xbf16, #tpu.memory_space<vmem>>, vector<1x8x8xbf16>
    %53 = vector.shape_cast %52 : vector<1x8x8xbf16> to vector<8x8xbf16>
    %c0_30 = arith.constant 0 : index
    %c0_31 = arith.constant 0 : index
    %c48 = arith.constant 48 : index
    %54 = vector.load %arg3[%c0_30, %c0_31, %c48] : memref<1x8x96xbf16, #tpu.memory_space<vmem>>, vector<1x8x8xbf16>
    %55 = vector.shape_cast %54 : vector<1x8x8xbf16> to vector<8x8xbf16>
    %c0_32 = arith.constant 0 : index
    %c0_33 = arith.constant 0 : index
    %c80 = arith.constant 80 : index
    %56 = vector.load %arg3[%c0_32, %c0_33, %c80] : memref<1x8x96xbf16, #tpu.memory_space<vmem>>, vector<1x8x8xbf16>
    %57 = vector.shape_cast %56 : vector<1x8x8xbf16> to vector<8x8xbf16>
    %cst_34 = arith.constant dense<0.000000e+00> : vector<8x8xf32>
    %58 = tpu.matmul %53, %55, %cst_34 {dimension_numbers = #tpu.dot_dimension_numbers<[1], [1], [0], [0], [0, 0, 1, 0], [], []>} : vector<8x8xbf16>, vector<8x8xbf16>, vector<8x8xf32> -> vector<8x8xf32>
    %59 = arith.addf %58, %3 : vector<8x8xf32>
    %cst_35 = arith.constant dense<0xFF800000> : vector<8xf32>
    %60 = vector.multi_reduction <maximumf>, %59, %cst_35 [1] : vector<8x8xf32> to vector<8xf32>
    %61 = vector.shape_cast %60 : vector<8xf32> to vector<8x1xf32>
    %62 = vector.broadcast %61 : vector<8x1xf32> to vector<8x8xf32>
    %63 = arith.subf %59, %62 : vector<8x8xf32>
    %64 = math.exp %63 : vector<8x8xf32>
    %cst_36 = arith.constant dense<0.000000e+00> : vector<8xf32>
    %65 = vector.multi_reduction <add>, %64, %cst_36 [1] : vector<8x8xf32> to vector<8xf32>
    %66 = vector.shape_cast %65 : vector<8xf32> to vector<8x1xf32>
    %67 = tpu.reciprocal %66 {approx = true} : vector<8x1xf32> -> vector<8x1xf32>
    %68 = vector.broadcast %67 : vector<8x1xf32> to vector<8x8xf32>
    %69 = arith.mulf %64, %68 : vector<8x8xf32>
    %70 = arith.truncf %69 : vector<8x8xf32> to vector<8x8xbf16>
    %cst_37 = arith.constant dense<0.000000e+00> : vector<8x8xf32>
    %71 = tpu.matmul %70, %57, %cst_37 {dimension_numbers = #tpu.dot_dimension_numbers<[1], [0], [0], [1], [0, 0, 1, 1], [], []>} : vector<8x8xbf16>, vector<8x8xbf16>, vector<8x8xf32> -> vector<8x8xf32>
    %72 = arith.truncf %71 : vector<8x8xf32> to vector<8x8xbf16>
    %c0_38 = arith.constant 0 : index
    %c0_39 = arith.constant 0 : index
    %c16_40 = arith.constant 16 : index
    %73 = vector.load %arg5[%c0_38, %c0_39, %c16_40] : memref<1x8x32xbf16, #tpu.memory_space<vmem>>, vector<1x8x8xbf16>
    %74 = vector.shape_cast %73 : vector<1x8x8xbf16> to vector<8x8xbf16>
    %75 = vector.shape_cast %72 : vector<8x8xbf16> to vector<1x8x8xbf16>
    tpu.vector_store %arg5[%c0_38, %c0_39, %c16_40], %75 {strides = array<i32>} : memref<1x8x32xbf16, #tpu.memory_space<vmem>>, vector<1x8x8xbf16>,
    %c0_41 = arith.constant 0 : index
    %c0_42 = arith.constant 0 : index
    %c24 = arith.constant 24 : index
    %76 = vector.load %arg2[%c0_41, %c0_42, %c24] : memref<1x8x96xbf16, #tpu.memory_space<vmem>>, vector<1x8x8xbf16>
    %77 = vector.shape_cast %76 : vector<1x8x8xbf16> to vector<8x8xbf16>
    %c0_43 = arith.constant 0 : index
    %c0_44 = arith.constant 0 : index
    %c56 = arith.constant 56 : index
    %78 = vector.load %arg3[%c0_43, %c0_44, %c56] : memref<1x8x96xbf16, #tpu.memory_space<vmem>>, vector<1x8x8xbf16>
    %79 = vector.shape_cast %78 : vector<1x8x8xbf16> to vector<8x8xbf16>
    %c0_45 = arith.constant 0 : index
    %c0_46 = arith.constant 0 : index
    %c88 = arith.constant 88 : index
    %80 = vector.load %arg3[%c0_45, %c0_46, %c88] : memref<1x8x96xbf16, #tpu.memory_space<vmem>>, vector<1x8x8xbf16>
    %81 = vector.shape_cast %80 : vector<1x8x8xbf16> to vector<8x8xbf16>
    %cst_47 = arith.constant dense<0.000000e+00> : vector<8x8xf32>
    %82 = tpu.matmul %77, %79, %cst_47 {dimension_numbers = #tpu.dot_dimension_numbers<[1], [1], [0], [0], [0, 0, 1, 0], [], []>} : vector<8x8xbf16>, vector<8x8xbf16>, vector<8x8xf32> -> vector<8x8xf32>
    %83 = arith.addf %82, %3 : vector<8x8xf32>
    %cst_48 = arith.constant dense<0xFF800000> : vector<8xf32>
    %84 = vector.multi_reduction <maximumf>, %83, %cst_48 [1] : vector<8x8xf32> to vector<8xf32>
    %85 = vector.shape_cast %84 : vector<8xf32> to vector<8x1xf32>
    %86 = vector.broadcast %85 : vector<8x1xf32> to vector<8x8xf32>
    %87 = arith.subf %83, %86 : vector<8x8xf32>
    %88 = math.exp %87 : vector<8x8xf32>
    %cst_49 = arith.constant dense<0.000000e+00> : vector<8xf32>
    %89 = vector.multi_reduction <add>, %88, %cst_49 [1] : vector<8x8xf32> to vector<8xf32>
    %90 = vector.shape_cast %89 : vector<8xf32> to vector<8x1xf32>
    %91 = tpu.reciprocal %90 {approx = true} : vector<8x1xf32> -> vector<8x1xf32>
    %92 = vector.broadcast %91 : vector<8x1xf32> to vector<8x8xf32>
    %93 = arith.mulf %88, %92 : vector<8x8xf32>
    %94 = arith.truncf %93 : vector<8x8xf32> to vector<8x8xbf16>
    %cst_50 = arith.constant dense<0.000000e+00> : vector<8x8xf32>
    %95 = tpu.matmul %94, %81, %cst_50 {dimension_numbers = #tpu.dot_dimension_numbers<[1], [0], [0], [1], [0, 0, 1, 1], [], []>} : vector<8x8xbf16>, vector<8x8xbf16>, vector<8x8xf32> -> vector<8x8xf32>
    %96 = arith.truncf %95 : vector<8x8xf32> to vector<8x8xbf16>
    %c0_51 = arith.constant 0 : index
    %c0_52 = arith.constant 0 : index
    %c24_53 = arith.constant 24 : index
    %97 = vector.load %arg5[%c0_51, %c0_52, %c24_53] : memref<1x8x32xbf16, #tpu.memory_space<vmem>>, vector<1x8x8xbf16>
    %98 = vector.shape_cast %97 : vector<1x8x8xbf16> to vector<8x8xbf16>
    %99 = vector.shape_cast %96 : vector<8x8xbf16> to vector<1x8x8xbf16>
    tpu.vector_store %arg5[%c0_51, %c0_52, %c24_53], %99 {strides = array<i32>} : memref<1x8x32xbf16, #tpu.memory_space<vmem>>, vector<1x8x8xbf16>,
    return
  }
  func.func @transform_0(%arg0: i32, %arg1: i32) -> (i32, i32, i32) {
    %c0_i32 = arith.constant 0 : i32
    %c0_i32_0 = arith.constant 0 : i32
    return %arg0, %arg1, %c0_i32 : i32, i32, i32
  }
  func.func @transform_1(%arg0: i32, %arg1: i32) -> (i32, i32, i32) {
    %c0_i32 = arith.constant 0 : i32
    %c0_i32_0 = arith.constant 0 : i32
    %c0_i32_1 = arith.constant 0 : i32
    return %arg0, %c0_i32, %c0_i32_0 : i32, i32, i32
  }
  func.func @transform_2(%arg0: i32, %arg1: i32) -> (i32, i32, i32) {
    %c0_i32 = arith.constant 0 : i32
    %c0_i32_0 = arith.constant 0 : i32
    %c0_i32_1 = arith.constant 0 : i32
    return %arg0, %c0_i32, %c0_i32_0 : i32, i32, i32
  }
  func.func @transform_3(%arg0: i32, %arg1: i32) -> (i32, i32, i32) {
    %c0_i32 = arith.constant 0 : i32
    %c0_i32_0 = arith.constant 0 : i32
    return %arg0, %arg1, %c0_i32 : i32, i32, i32
  }
}

module attributes {stable_mosaic.version = 11 : i64} {
  func.func @_linear_kernel_scratch(%arg0: i32, %arg1: i32, %arg2: i32, %arg3: memref<16x32xbf16, #tpu.memory_space<vmem>>, %arg4: memref<32x128xbf16, #tpu.memory_space<vmem>>, %arg5: memref<1x128xf32, #tpu.memory_space<vmem>>, %arg6: memref<16x128xbf16, #tpu.memory_space<vmem>>, %arg7: memref<16x128xf32, #tpu.memory_space<vmem>>) attributes {dimension_semantics = [#tpu.dimension_semantics<parallel>, #tpu.dimension_semantics<parallel>, #tpu.dimension_semantics<arbitrary>], iteration_bounds = array<i64: 1, 1, 1>, scalar_prefetch = 0 : i64, scratch_operands = 1 : i64, tpu.core_type = #tpu.core_type<tc>, window_params = [{transform_indices = @transform_0, window_bounds = array<i64: 16, 32>}, {transform_indices = @transform_1, window_bounds = array<i64: 32, 128>}, {transform_indices = @transform_2, window_bounds = array<i64: 1, 128>}, {transform_indices = @transform_3, window_bounds = array<i64: 16, 128>}]} {
    %c0_i32 = arith.constant 0 : i32
    %0 = arith.cmpi eq, %arg2, %c0_i32 : i32
    %1 = arith.extui %0 : i1 to i32
    %c0_i32_0 = arith.constant 0 : i32
    %2 = arith.cmpi ne, %1, %c0_i32_0 : i32
    scf.if %2 {
      %cst_10 = arith.constant 0.000000e+00 : f32
      %12 = vector.broadcast %cst_10 : f32 to vector<16x128xf32>
      %c0_11 = arith.constant 0 : index
      %c0_12 = arith.constant 0 : index
      %13 = vector.load %arg7[%c0_11, %c0_12] : memref<16x128xf32, #tpu.memory_space<vmem>>, vector<16x128xf32>
      tpu.vector_store %arg7[%c0_11, %c0_12], %12 {strides = array<i32>} : memref<16x128xf32, #tpu.memory_space<vmem>>, vector<16x128xf32>,
    } else {
    }
    %c0 = arith.constant 0 : index
    %c0_1 = arith.constant 0 : index
    %3 = vector.load %arg7[%c0, %c0_1] : memref<16x128xf32, #tpu.memory_space<vmem>>, vector<16x128xf32>
    %c0_2 = arith.constant 0 : index
    %c0_3 = arith.constant 0 : index
    %4 = vector.load %arg3[%c0_2, %c0_3] : memref<16x32xbf16, #tpu.memory_space<vmem>>, vector<16x32xbf16>
    %c0_4 = arith.constant 0 : index
    %c0_5 = arith.constant 0 : index
    %5 = vector.load %arg4[%c0_4, %c0_5] : memref<32x128xbf16, #tpu.memory_space<vmem>>, vector<32x128xbf16>
    %cst = arith.constant dense<0.000000e+00> : vector<16x128xf32>
    %6 = tpu.matmul %4, %5, %cst {dimension_numbers = #tpu.dot_dimension_numbers<[1], [0], [0], [1], [0, 0, 1, 1], [], []>} : vector<16x32xbf16>, vector<32x128xbf16>, vector<16x128xf32> -> vector<16x128xf32>
    %7 = arith.addf %3, %6 : vector<16x128xf32>
    %c0_6 = arith.constant 0 : index
    %c0_7 = arith.constant 0 : index
    %8 = vector.load %arg7[%c0_6, %c0_7] : memref<16x128xf32, #tpu.memory_space<vmem>>, vector<16x128xf32>
    tpu.vector_store %arg7[%c0_6, %c0_7], %7 {strides = array<i32>} : memref<16x128xf32, #tpu.memory_space<vmem>>, vector<16x128xf32>,
    %c0_i32_8 = arith.constant 0 : i32
    %9 = arith.cmpi eq, %arg2, %c0_i32_8 : i32
    %10 = arith.extui %9 : i1 to i32
    %c0_i32_9 = arith.constant 0 : i32
    %11 = arith.cmpi ne, %10, %c0_i32_9 : i32
    scf.if %11 {
      %c0_10 = arith.constant 0 : index
      %c0_11 = arith.constant 0 : index
      %12 = vector.load %arg7[%c0_10, %c0_11] : memref<16x128xf32, #tpu.memory_space<vmem>>, vector<16x128xf32>
      %c0_12 = arith.constant 0 : index
      %c0_13 = arith.constant 0 : index
      %13 = vector.load %arg5[%c0_12, %c0_13] : memref<1x128xf32, #tpu.memory_space<vmem>>, vector<1x128xf32>
      %14 = vector.broadcast %13 : vector<1x128xf32> to vector<16x128xf32>
      %15 = arith.addf %12, %14 : vector<16x128xf32>
      %cst_14 = arith.constant 0.000000e+00 : f32
      %16 = vector.broadcast %cst_14 : f32 to vector<16x128xf32>
      %17 = arith.maximumf %15, %16 : vector<16x128xf32>
      %18 = arith.truncf %17 : vector<16x128xf32> to vector<16x128xbf16>
      %c0_15 = arith.constant 0 : index
      %c0_16 = arith.constant 0 : index
      %19 = vector.load %arg6[%c0_15, %c0_16] : memref<16x128xbf16, #tpu.memory_space<vmem>>, vector<16x128xbf16>
      tpu.vector_store %arg6[%c0_15, %c0_16], %18 {strides = array<i32>} : memref<16x128xbf16, #tpu.memory_space<vmem>>, vector<16x128xbf16>,
    } else {
    }
    return
  }
  func.func @transform_0(%arg0: i32, %arg1: i32, %arg2: i32) -> (i32, i32) {
    %c0_i32 = arith.constant 0 : i32
    return %arg0, %arg2 : i32, i32
  }
  func.func @transform_1(%arg0: i32, %arg1: i32, %arg2: i32) -> (i32, i32) {
    %c0_i32 = arith.constant 0 : i32
    return %arg2, %arg1 : i32, i32
  }
  func.func @transform_2(%arg0: i32, %arg1: i32, %arg2: i32) -> (i32, i32) {
    %c0_i32 = arith.constant 0 : i32
    %c0_i32_0 = arith.constant 0 : i32
    return %c0_i32, %arg1 : i32, i32
  }
  func.func @transform_3(%arg0: i32, %arg1: i32, %arg2: i32) -> (i32, i32) {
    %c0_i32 = arith.constant 0 : i32
    return %arg0, %arg1 : i32, i32
  }
}

module attributes {stable_mosaic.version = 11 : i64} {
  func.func @_linear_addln_kernel(%arg0: i32, %arg1: i32, %arg2: memref<16x64xbf16, #tpu.memory_space<vmem>>, %arg3: memref<64x32xbf16, #tpu.memory_space<vmem>>, %arg4: memref<1x32xf32, #tpu.memory_space<vmem>>, %arg5: memref<16x32xbf16, #tpu.memory_space<vmem>>, %arg6: memref<1x32xf32, #tpu.memory_space<vmem>>, %arg7: memref<1x32xf32, #tpu.memory_space<vmem>>, %arg8: memref<16x32xbf16, #tpu.memory_space<vmem>>, %arg9: memref<16x32xf32, #tpu.memory_space<vmem>>) attributes {dimension_semantics = [#tpu.dimension_semantics<parallel>, #tpu.dimension_semantics<arbitrary>], iteration_bounds = array<i64: 1, 1>, scalar_prefetch = 0 : i64, scratch_operands = 1 : i64, tpu.core_type = #tpu.core_type<tc>, window_params = [{transform_indices = @transform_0, window_bounds = array<i64: 16, 64>}, {transform_indices = @transform_1, window_bounds = array<i64: 64, 32>}, {pipeline_mode = #tpu.pipeline_mode<synchronous>, transform_indices = @transform_2, window_bounds = array<i64: 1, 32>}, {transform_indices = @transform_3, window_bounds = array<i64: 16, 32>}, {pipeline_mode = #tpu.pipeline_mode<synchronous>, transform_indices = @transform_4, window_bounds = array<i64: 1, 32>}, {pipeline_mode = #tpu.pipeline_mode<synchronous>, transform_indices = @transform_5, window_bounds = array<i64: 1, 32>}, {transform_indices = @transform_6, window_bounds = array<i64: 16, 32>}]} {
    %c0_i32 = arith.constant 0 : i32
    %0 = arith.cmpi eq, %arg1, %c0_i32 : i32
    %1 = arith.extui %0 : i1 to i32
    %c0_i32_0 = arith.constant 0 : i32
    %2 = arith.cmpi ne, %1, %c0_i32_0 : i32
    scf.if %2 {
      %cst_10 = arith.constant 0.000000e+00 : f32
      %12 = vector.broadcast %cst_10 : f32 to vector<16x32xf32>
      %c0_11 = arith.constant 0 : index
      %c0_12 = arith.constant 0 : index
      %13 = vector.load %arg9[%c0_11, %c0_12] : memref<16x32xf32, #tpu.memory_space<vmem>>, vector<16x32xf32>
      tpu.vector_store %arg9[%c0_11, %c0_12], %12 {strides = array<i32>} : memref<16x32xf32, #tpu.memory_space<vmem>>, vector<16x32xf32>,
    } else {
    }
    %c0 = arith.constant 0 : index
    %c0_1 = arith.constant 0 : index
    %3 = vector.load %arg9[%c0, %c0_1] : memref<16x32xf32, #tpu.memory_space<vmem>>, vector<16x32xf32>
    %c0_2 = arith.constant 0 : index
    %c0_3 = arith.constant 0 : index
    %4 = vector.load %arg2[%c0_2, %c0_3] : memref<16x64xbf16, #tpu.memory_space<vmem>>, vector<16x64xbf16>
    %c0_4 = arith.constant 0 : index
    %c0_5 = arith.constant 0 : index
    %5 = vector.load %arg3[%c0_4, %c0_5] : memref<64x32xbf16, #tpu.memory_space<vmem>>, vector<64x32xbf16>
    %cst = arith.constant dense<0.000000e+00> : vector<16x32xf32>
    %6 = tpu.matmul %4, %5, %cst {dimension_numbers = #tpu.dot_dimension_numbers<[1], [0], [0], [1], [0, 0, 1, 1], [], []>} : vector<16x64xbf16>, vector<64x32xbf16>, vector<16x32xf32> -> vector<16x32xf32>
    %7 = arith.addf %3, %6 : vector<16x32xf32>
    %c0_6 = arith.constant 0 : index
    %c0_7 = arith.constant 0 : index
    %8 = vector.load %arg9[%c0_6, %c0_7] : memref<16x32xf32, #tpu.memory_space<vmem>>, vector<16x32xf32>
    tpu.vector_store %arg9[%c0_6, %c0_7], %7 {strides = array<i32>} : memref<16x32xf32, #tpu.memory_space<vmem>>, vector<16x32xf32>,
    %c0_i32_8 = arith.constant 0 : i32
    %9 = arith.cmpi eq, %arg1, %c0_i32_8 : i32
    %10 = arith.extui %9 : i1 to i32
    %c0_i32_9 = arith.constant 0 : i32
    %11 = arith.cmpi ne, %10, %c0_i32_9 : i32
    scf.if %11 {
      %c0_10 = arith.constant 0 : index
      %c0_11 = arith.constant 0 : index
      %12 = vector.load %arg9[%c0_10, %c0_11] : memref<16x32xf32, #tpu.memory_space<vmem>>, vector<16x32xf32>
      %c0_12 = arith.constant 0 : index
      %c0_13 = arith.constant 0 : index
      %13 = vector.load %arg4[%c0_12, %c0_13] : memref<1x32xf32, #tpu.memory_space<vmem>>, vector<1x32xf32>
      %14 = vector.broadcast %13 : vector<1x32xf32> to vector<16x32xf32>
      %15 = arith.addf %12, %14 : vector<16x32xf32>
      %c0_14 = arith.constant 0 : index
      %c0_15 = arith.constant 0 : index
      %16 = vector.load %arg5[%c0_14, %c0_15] : memref<16x32xbf16, #tpu.memory_space<vmem>>, vector<16x32xbf16>
      %17 = arith.extf %16 : vector<16x32xbf16> to vector<16x32xf32>
      %18 = arith.addf %15, %17 : vector<16x32xf32>
      %cst_16 = arith.constant dense<0.000000e+00> : vector<16xf32>
      %19 = vector.multi_reduction <add>, %18, %cst_16 [1] : vector<16x32xf32> to vector<16xf32>
      %20 = vector.shape_cast %19 : vector<16xf32> to vector<16x1xf32>
      %cst_17 = arith.constant 3.200000e+01 : f32
      %21 = vector.broadcast %cst_17 : f32 to vector<16x1xf32>
      %22 = arith.divf %20, %21 : vector<16x1xf32>
      %23 = vector.broadcast %22 : vector<16x1xf32> to vector<16x32xf32>
      %24 = arith.subf %18, %23 : vector<16x32xf32>
      %25 = arith.mulf %24, %24 : vector<16x32xf32>
      %cst_18 = arith.constant dense<0.000000e+00> : vector<16xf32>
      %26 = vector.multi_reduction <add>, %25, %cst_18 [1] : vector<16x32xf32> to vector<16xf32>
      %27 = vector.shape_cast %26 : vector<16xf32> to vector<16x1xf32>
      %cst_19 = arith.constant 3.200000e+01 : f32
      %28 = vector.broadcast %cst_19 : f32 to vector<16x1xf32>
      %29 = arith.divf %27, %28 : vector<16x1xf32>
      %cst_20 = arith.constant 9.99999974E-6 : f32
      %30 = vector.broadcast %cst_20 : f32 to vector<16x1xf32>
      %31 = arith.addf %29, %30 : vector<16x1xf32>
      %32 = math.rsqrt %31 : vector<16x1xf32>
      %33 = vector.broadcast %32 : vector<16x1xf32> to vector<16x32xf32>
      %34 = arith.mulf %24, %33 : vector<16x32xf32>
      %c0_21 = arith.constant 0 : index
      %c0_22 = arith.constant 0 : index
      %35 = vector.load %arg6[%c0_21, %c0_22] : memref<1x32xf32, #tpu.memory_space<vmem>>, vector<1x32xf32>
      %36 = vector.broadcast %35 : vector<1x32xf32> to vector<16x32xf32>
      %37 = arith.mulf %34, %36 : vector<16x32xf32>
      %c0_23 = arith.constant 0 : index
      %c0_24 = arith.constant 0 : index
      %38 = vector.load %arg7[%c0_23, %c0_24] : memref<1x32xf32, #tpu.memory_space<vmem>>, vector<1x32xf32>
      %39 = vector.broadcast %38 : vector<1x32xf32> to vector<16x32xf32>
      %40 = arith.addf %37, %39 : vector<16x32xf32>
      %41 = arith.truncf %40 : vector<16x32xf32> to vector<16x32xbf16>
      %c0_25 = arith.constant 0 : index
      %c0_26 = arith.constant 0 : index
      %42 = vector.load %arg8[%c0_25, %c0_26] : memref<16x32xbf16, #tpu.memory_space<vmem>>, vector<16x32xbf16>
      tpu.vector_store %arg8[%c0_25, %c0_26], %41 {strides = array<i32>} : memref<16x32xbf16, #tpu.memory_space<vmem>>, vector<16x32xbf16>,
    } else {
    }
    return
  }
  func.func @transform_0(%arg0: i32, %arg1: i32) -> (i32, i32) {
    %c0_i32 = arith.constant 0 : i32
    return %arg0, %arg1 : i32, i32
  }
  func.func @transform_1(%arg0: i32, %arg1: i32) -> (i32, i32) {
    %c0_i32 = arith.constant 0 : i32
    %c0_i32_0 = arith.constant 0 : i32
    return %arg1, %c0_i32 : i32, i32
  }
  func.func @transform_2(%arg0: i32, %arg1: i32) -> (i32, i32) {
    %c0_i32 = arith.constant 0 : i32
    %c0_i32_0 = arith.constant 0 : i32
    %c0_i32_1 = arith.constant 0 : i32
    return %c0_i32, %c0_i32_0 : i32, i32
  }
  func.func @transform_3(%arg0: i32, %arg1: i32) -> (i32, i32) {
    %c0_i32 = arith.constant 0 : i32
    %c0_i32_0 = arith.constant 0 : i32
    return %arg0, %c0_i32 : i32, i32
  }
  func.func @transform_4(%arg0: i32, %arg1: i32) -> (i32, i32) {
    %c0_i32 = arith.constant 0 : i32
    %c0_i32_0 = arith.constant 0 : i32
    %c0_i32_1 = arith.constant 0 : i32
    return %c0_i32, %c0_i32_0 : i32, i32
  }
  func.func @transform_5(%arg0: i32, %arg1: i32) -> (i32, i32) {
    %c0_i32 = arith.constant 0 : i32
    %c0_i32_0 = arith.constant 0 : i32
    %c0_i32_1 = arith.constant 0 : i32
    return %c0_i32, %c0_i32_0 : i32, i32
  }
  func.func @transform_6(%arg0: i32, %arg1: i32) -> (i32, i32) {
    %c0_i32 = arith.constant 0 : i32
    %c0_i32_0 = arith.constant 0 : i32
    return %arg0, %c0_i32 : i32, i32
  }
}

module attributes {stable_mosaic.version = 11 : i64} {
  func.func @_cross_attn_kernel(%arg0: i32, %arg1: i32, %arg2: memref<1x8x32xbf16, #tpu.memory_space<vmem>>, %arg3: memref<1x8x64xbf16, #tpu.memory_space<vmem>>, %arg4: memref<1x1x8xf32, #tpu.memory_space<vmem>>, %arg5: memref<1x8x32xbf16, #tpu.memory_space<vmem>>) attributes {dimension_semantics = [#tpu.dimension_semantics<parallel>, #tpu.dimension_semantics<parallel>], iteration_bounds = array<i64: 2, 1>, scalar_prefetch = 0 : i64, scratch_operands = 0 : i64, tpu.core_type = #tpu.core_type<tc>, window_params = [{transform_indices = @transform_0, window_bounds = array<i64: 1, 8, 32>}, {transform_indices = @transform_1, window_bounds = array<i64: 1, 8, 64>}, {transform_indices = @transform_2, window_bounds = array<i64: 1, 1, 8>}, {transform_indices = @transform_3, window_bounds = array<i64: 1, 8, 32>}]} {
    %c0 = arith.constant 0 : index
    %c0_0 = arith.constant 0 : index
    %c0_1 = arith.constant 0 : index
    %0 = vector.load %arg4[%c0, %c0_0, %c0_1] : memref<1x1x8xf32, #tpu.memory_space<vmem>>, vector<1x1x8xf32>
    %1 = vector.shape_cast %0 : vector<1x1x8xf32> to vector<1x8xf32>
    %2 = vector.shape_cast %1 : vector<1x8xf32> to vector<1x8xf32>
    %3 = vector.broadcast %2 : vector<1x8xf32> to vector<8x8xf32>
    %c0_2 = arith.constant 0 : index
    %c0_3 = arith.constant 0 : index
    %c0_4 = arith.constant 0 : index
    %4 = vector.load %arg2[%c0_2, %c0_3, %c0_4] : memref<1x8x32xbf16, #tpu.memory_space<vmem>>, vector<1x8x8xbf16>
    %5 = vector.shape_cast %4 : vector<1x8x8xbf16> to vector<8x8xbf16>
    %c0_5 = arith.constant 0 : index
    %c0_6 = arith.constant 0 : index
    %c0_7 = arith.constant 0 : index
    %6 = vector.load %arg3[%c0_5, %c0_6, %c0_7] : memref<1x8x64xbf16, #tpu.memory_space<vmem>>, vector<1x8x8xbf16>
    %7 = vector.shape_cast %6 : vector<1x8x8xbf16> to vector<8x8xbf16>
    %c0_8 = arith.constant 0 : index
    %c0_9 = arith.constant 0 : index
    %c32 = arith.constant 32 : index
    %8 = vector.load %arg3[%c0_8, %c0_9, %c32] : memref<1x8x64xbf16, #tpu.memory_space<vmem>>, vector<1x8x8xbf16>
    %9 = vector.shape_cast %8 : vector<1x8x8xbf16> to vector<8x8xbf16>
    %cst = arith.constant dense<0.000000e+00> : vector<8x8xf32>
    %10 = tpu.matmul %5, %7, %cst {dimension_numbers = #tpu.dot_dimension_numbers<[1], [1], [0], [0], [0, 0, 1, 0], [], []>} : vector<8x8xbf16>, vector<8x8xbf16>, vector<8x8xf32> -> vector<8x8xf32>
    %11 = arith.addf %10, %3 : vector<8x8xf32>
    %cst_10 = arith.constant dense<0xFF800000> : vector<8xf32>
    %12 = vector.multi_reduction <maximumf>, %11, %cst_10 [1] : vector<8x8xf32> to vector<8xf32>
    %13 = vector.shape_cast %12 : vector<8xf32> to vector<8x1xf32>
    %14 = vector.broadcast %13 : vector<8x1xf32> to vector<8x8xf32>
    %15 = arith.subf %11, %14 : vector<8x8xf32>
    %16 = math.exp %15 : vector<8x8xf32>
    %cst_11 = arith.constant dense<0.000000e+00> : vector<8xf32>
    %17 = vector.multi_reduction <add>, %16, %cst_11 [1] : vector<8x8xf32> to vector<8xf32>
    %18 = vector.shape_cast %17 : vector<8xf32> to vector<8x1xf32>
    %19 = tpu.reciprocal %18 {approx = true} : vector<8x1xf32> -> vector<8x1xf32>
    %20 = vector.broadcast %19 : vector<8x1xf32> to vector<8x8xf32>
    %21 = arith.mulf %16, %20 : vector<8x8xf32>
    %22 = arith.truncf %21 : vector<8x8xf32> to vector<8x8xbf16>
    %cst_12 = arith.constant dense<0.000000e+00> : vector<8x8xf32>
    %23 = tpu.matmul %22, %9, %cst_12 {dimension_numbers = #tpu.dot_dimension_numbers<[1], [0], [0], [1], [0, 0, 1, 1], [], []>} : vector<8x8xbf16>, vector<8x8xbf16>, vector<8x8xf32> -> vector<8x8xf32>
    %24 = arith.truncf %23 : vector<8x8xf32> to vector<8x8xbf16>
    %c0_13 = arith.constant 0 : index
    %c0_14 = arith.constant 0 : index
    %c0_15 = arith.constant 0 : index
    %25 = vector.load %arg5[%c0_13, %c0_14, %c0_15] : memref<1x8x32xbf16, #tpu.memory_space<vmem>>, vector<1x8x8xbf16>
    %26 = vector.shape_cast %25 : vector<1x8x8xbf16> to vector<8x8xbf16>
    %27 = vector.shape_cast %24 : vector<8x8xbf16> to vector<1x8x8xbf16>
    tpu.vector_store %arg5[%c0_13, %c0_14, %c0_15], %27 {strides = array<i32>} : memref<1x8x32xbf16, #tpu.memory_space<vmem>>, vector<1x8x8xbf16>,
    %c0_16 = arith.constant 0 : index
    %c0_17 = arith.constant 0 : index
    %c8 = arith.constant 8 : index
    %28 = vector.load %arg2[%c0_16, %c0_17, %c8] : memref<1x8x32xbf16, #tpu.memory_space<vmem>>, vector<1x8x8xbf16>
    %29 = vector.shape_cast %28 : vector<1x8x8xbf16> to vector<8x8xbf16>
    %c0_18 = arith.constant 0 : index
    %c0_19 = arith.constant 0 : index
    %c8_20 = arith.constant 8 : index
    %30 = vector.load %arg3[%c0_18, %c0_19, %c8_20] : memref<1x8x64xbf16, #tpu.memory_space<vmem>>, vector<1x8x8xbf16>
    %31 = vector.shape_cast %30 : vector<1x8x8xbf16> to vector<8x8xbf16>
    %c0_21 = arith.constant 0 : index
    %c0_22 = arith.constant 0 : index
    %c40 = arith.constant 40 : index
    %32 = vector.load %arg3[%c0_21, %c0_22, %c40] : memref<1x8x64xbf16, #tpu.memory_space<vmem>>, vector<1x8x8xbf16>
    %33 = vector.shape_cast %32 : vector<1x8x8xbf16> to vector<8x8xbf16>
    %cst_23 = arith.constant dense<0.000000e+00> : vector<8x8xf32>
    %34 = tpu.matmul %29, %31, %cst_23 {dimension_numbers = #tpu.dot_dimension_numbers<[1], [1], [0], [0], [0, 0, 1, 0], [], []>} : vector<8x8xbf16>, vector<8x8xbf16>, vector<8x8xf32> -> vector<8x8xf32>
    %35 = arith.addf %34, %3 : vector<8x8xf32>
    %cst_24 = arith.constant dense<0xFF800000> : vector<8xf32>
    %36 = vector.multi_reduction <maximumf>, %35, %cst_24 [1] : vector<8x8xf32> to vector<8xf32>
    %37 = vector.shape_cast %36 : vector<8xf32> to vector<8x1xf32>
    %38 = vector.broadcast %37 : vector<8x1xf32> to vector<8x8xf32>
    %39 = arith.subf %35, %38 : vector<8x8xf32>
    %40 = math.exp %39 : vector<8x8xf32>
    %cst_25 = arith.constant dense<0.000000e+00> : vector<8xf32>
    %41 = vector.multi_reduction <add>, %40, %cst_25 [1] : vector<8x8xf32> to vector<8xf32>
    %42 = vector.shape_cast %41 : vector<8xf32> to vector<8x1xf32>
    %43 = tpu.reciprocal %42 {approx = true} : vector<8x1xf32> -> vector<8x1xf32>
    %44 = vector.broadcast %43 : vector<8x1xf32> to vector<8x8xf32>
    %45 = arith.mulf %40, %44 : vector<8x8xf32>
    %46 = arith.truncf %45 : vector<8x8xf32> to vector<8x8xbf16>
    %cst_26 = arith.constant dense<0.000000e+00> : vector<8x8xf32>
    %47 = tpu.matmul %46, %33, %cst_26 {dimension_numbers = #tpu.dot_dimension_numbers<[1], [0], [0], [1], [0, 0, 1, 1], [], []>} : vector<8x8xbf16>, vector<8x8xbf16>, vector<8x8xf32> -> vector<8x8xf32>
    %48 = arith.truncf %47 : vector<8x8xf32> to vector<8x8xbf16>
    %c0_27 = arith.constant 0 : index
    %c0_28 = arith.constant 0 : index
    %c8_29 = arith.constant 8 : index
    %49 = vector.load %arg5[%c0_27, %c0_28, %c8_29] : memref<1x8x32xbf16, #tpu.memory_space<vmem>>, vector<1x8x8xbf16>
    %50 = vector.shape_cast %49 : vector<1x8x8xbf16> to vector<8x8xbf16>
    %51 = vector.shape_cast %48 : vector<8x8xbf16> to vector<1x8x8xbf16>
    tpu.vector_store %arg5[%c0_27, %c0_28, %c8_29], %51 {strides = array<i32>} : memref<1x8x32xbf16, #tpu.memory_space<vmem>>, vector<1x8x8xbf16>,
    %c0_30 = arith.constant 0 : index
    %c0_31 = arith.constant 0 : index
    %c16 = arith.constant 16 : index
    %52 = vector.load %arg2[%c0_30, %c0_31, %c16] : memref<1x8x32xbf16, #tpu.memory_space<vmem>>, vector<1x8x8xbf16>
    %53 = vector.shape_cast %52 : vector<1x8x8xbf16> to vector<8x8xbf16>
    %c0_32 = arith.constant 0 : index
    %c0_33 = arith.constant 0 : index
    %c16_34 = arith.constant 16 : index
    %54 = vector.load %arg3[%c0_32, %c0_33, %c16_34] : memref<1x8x64xbf16, #tpu.memory_space<vmem>>, vector<1x8x8xbf16>
    %55 = vector.shape_cast %54 : vector<1x8x8xbf16> to vector<8x8xbf16>
    %c0_35 = arith.constant 0 : index
    %c0_36 = arith.constant 0 : index
    %c48 = arith.constant 48 : index
    %56 = vector.load %arg3[%c0_35, %c0_36, %c48] : memref<1x8x64xbf16, #tpu.memory_space<vmem>>, vector<1x8x8xbf16>
    %57 = vector.shape_cast %56 : vector<1x8x8xbf16> to vector<8x8xbf16>
    %cst_37 = arith.constant dense<0.000000e+00> : vector<8x8xf32>
    %58 = tpu.matmul %53, %55, %cst_37 {dimension_numbers = #tpu.dot_dimension_numbers<[1], [1], [0], [0], [0, 0, 1, 0], [], []>} : vector<8x8xbf16>, vector<8x8xbf16>, vector<8x8xf32> -> vector<8x8xf32>
    %59 = arith.addf %58, %3 : vector<8x8xf32>
    %cst_38 = arith.constant dense<0xFF800000> : vector<8xf32>
    %60 = vector.multi_reduction <maximumf>, %59, %cst_38 [1] : vector<8x8xf32> to vector<8xf32>
    %61 = vector.shape_cast %60 : vector<8xf32> to vector<8x1xf32>
    %62 = vector.broadcast %61 : vector<8x1xf32> to vector<8x8xf32>
    %63 = arith.subf %59, %62 : vector<8x8xf32>
    %64 = math.exp %63 : vector<8x8xf32>
    %cst_39 = arith.constant dense<0.000000e+00> : vector<8xf32>
    %65 = vector.multi_reduction <add>, %64, %cst_39 [1] : vector<8x8xf32> to vector<8xf32>
    %66 = vector.shape_cast %65 : vector<8xf32> to vector<8x1xf32>
    %67 = tpu.reciprocal %66 {approx = true} : vector<8x1xf32> -> vector<8x1xf32>
    %68 = vector.broadcast %67 : vector<8x1xf32> to vector<8x8xf32>
    %69 = arith.mulf %64, %68 : vector<8x8xf32>
    %70 = arith.truncf %69 : vector<8x8xf32> to vector<8x8xbf16>
    %cst_40 = arith.constant dense<0.000000e+00> : vector<8x8xf32>
    %71 = tpu.matmul %70, %57, %cst_40 {dimension_numbers = #tpu.dot_dimension_numbers<[1], [0], [0], [1], [0, 0, 1, 1], [], []>} : vector<8x8xbf16>, vector<8x8xbf16>, vector<8x8xf32> -> vector<8x8xf32>
    %72 = arith.truncf %71 : vector<8x8xf32> to vector<8x8xbf16>
    %c0_41 = arith.constant 0 : index
    %c0_42 = arith.constant 0 : index
    %c16_43 = arith.constant 16 : index
    %73 = vector.load %arg5[%c0_41, %c0_42, %c16_43] : memref<1x8x32xbf16, #tpu.memory_space<vmem>>, vector<1x8x8xbf16>
    %74 = vector.shape_cast %73 : vector<1x8x8xbf16> to vector<8x8xbf16>
    %75 = vector.shape_cast %72 : vector<8x8xbf16> to vector<1x8x8xbf16>
    tpu.vector_store %arg5[%c0_41, %c0_42, %c16_43], %75 {strides = array<i32>} : memref<1x8x32xbf16, #tpu.memory_space<vmem>>, vector<1x8x8xbf16>,
    %c0_44 = arith.constant 0 : index
    %c0_45 = arith.constant 0 : index
    %c24 = arith.constant 24 : index
    %76 = vector.load %arg2[%c0_44, %c0_45, %c24] : memref<1x8x32xbf16, #tpu.memory_space<vmem>>, vector<1x8x8xbf16>
    %77 = vector.shape_cast %76 : vector<1x8x8xbf16> to vector<8x8xbf16>
    %c0_46 = arith.constant 0 : index
    %c0_47 = arith.constant 0 : index
    %c24_48 = arith.constant 24 : index
    %78 = vector.load %arg3[%c0_46, %c0_47, %c24_48] : memref<1x8x64xbf16, #tpu.memory_space<vmem>>, vector<1x8x8xbf16>
    %79 = vector.shape_cast %78 : vector<1x8x8xbf16> to vector<8x8xbf16>
    %c0_49 = arith.constant 0 : index
    %c0_50 = arith.constant 0 : index
    %c56 = arith.constant 56 : index
    %80 = vector.load %arg3[%c0_49, %c0_50, %c56] : memref<1x8x64xbf16, #tpu.memory_space<vmem>>, vector<1x8x8xbf16>
    %81 = vector.shape_cast %80 : vector<1x8x8xbf16> to vector<8x8xbf16>
    %cst_51 = arith.constant dense<0.000000e+00> : vector<8x8xf32>
    %82 = tpu.matmul %77, %79, %cst_51 {dimension_numbers = #tpu.dot_dimension_numbers<[1], [1], [0], [0], [0, 0, 1, 0], [], []>} : vector<8x8xbf16>, vector<8x8xbf16>, vector<8x8xf32> -> vector<8x8xf32>
    %83 = arith.addf %82, %3 : vector<8x8xf32>
    %cst_52 = arith.constant dense<0xFF800000> : vector<8xf32>
    %84 = vector.multi_reduction <maximumf>, %83, %cst_52 [1] : vector<8x8xf32> to vector<8xf32>
    %85 = vector.shape_cast %84 : vector<8xf32> to vector<8x1xf32>
    %86 = vector.broadcast %85 : vector<8x1xf32> to vector<8x8xf32>
    %87 = arith.subf %83, %86 : vector<8x8xf32>
    %88 = math.exp %87 : vector<8x8xf32>
    %cst_53 = arith.constant dense<0.000000e+00> : vector<8xf32>
    %89 = vector.multi_reduction <add>, %88, %cst_53 [1] : vector<8x8xf32> to vector<8xf32>
    %90 = vector.shape_cast %89 : vector<8xf32> to vector<8x1xf32>
    %91 = tpu.reciprocal %90 {approx = true} : vector<8x1xf32> -> vector<8x1xf32>
    %92 = vector.broadcast %91 : vector<8x1xf32> to vector<8x8xf32>
    %93 = arith.mulf %88, %92 : vector<8x8xf32>
    %94 = arith.truncf %93 : vector<8x8xf32> to vector<8x8xbf16>
    %cst_54 = arith.constant dense<0.000000e+00> : vector<8x8xf32>
    %95 = tpu.matmul %94, %81, %cst_54 {dimension_numbers = #tpu.dot_dimension_numbers<[1], [0], [0], [1], [0, 0, 1, 1], [], []>} : vector<8x8xbf16>, vector<8x8xbf16>, vector<8x8xf32> -> vector<8x8xf32>
    %96 = arith.truncf %95 : vector<8x8xf32> to vector<8x8xbf16>
    %c0_55 = arith.constant 0 : index
    %c0_56 = arith.constant 0 : index
    %c24_57 = arith.constant 24 : index
    %97 = vector.load %arg5[%c0_55, %c0_56, %c24_57] : memref<1x8x32xbf16, #tpu.memory_space<vmem>>, vector<1x8x8xbf16>
    %98 = vector.shape_cast %97 : vector<1x8x8xbf16> to vector<8x8xbf16>
    %99 = vector.shape_cast %96 : vector<8x8xbf16> to vector<1x8x8xbf16>
    tpu.vector_store %arg5[%c0_55, %c0_56, %c24_57], %99 {strides = array<i32>} : memref<1x8x32xbf16, #tpu.memory_space<vmem>>, vector<1x8x8xbf16>,
    return
  }
  func.func @transform_0(%arg0: i32, %arg1: i32) -> (i32, i32, i32) {
    %c0_i32 = arith.constant 0 : i32
    %c0_i32_0 = arith.constant 0 : i32
    return %arg0, %arg1, %c0_i32 : i32, i32, i32
  }
  func.func @transform_1(%arg0: i32, %arg1: i32) -> (i32, i32, i32) {
    %c0_i32 = arith.constant 0 : i32
    %c0_i32_0 = arith.constant 0 : i32
    %c0_i32_1 = arith.constant 0 : i32
    return %arg0, %c0_i32, %c0_i32_0 : i32, i32, i32
  }
  func.func @transform_2(%arg0: i32, %arg1: i32) -> (i32, i32, i32) {
    %c0_i32 = arith.constant 0 : i32
    %c0_i32_0 = arith.constant 0 : i32
    %c0_i32_1 = arith.constant 0 : i32
    return %arg0, %c0_i32, %c0_i32_0 : i32, i32, i32
  }
  func.func @transform_3(%arg0: i32, %arg1: i32) -> (i32, i32, i32) {
    %c0_i32 = arith.constant 0 : i32
    %c0_i32_0 = arith.constant 0 : i32
    return %arg0, %arg1, %c0_i32 : i32, i32, i32
  }
}

module attributes {stable_mosaic.version = 11 : i64} {
  func.func @_linear_kernel_direct(%arg0: i32, %arg1: i32, %arg2: i32, %arg3: memref<16x32xbf16, #tpu.memory_space<vmem>>, %arg4: memref<32x128xbf16, #tpu.memory_space<vmem>>, %arg5: memref<1x128xf32, #tpu.memory_space<vmem>>, %arg6: memref<16x128xf32, #tpu.memory_space<vmem>>) attributes {dimension_semantics = [#tpu.dimension_semantics<parallel>, #tpu.dimension_semantics<parallel>, #tpu.dimension_semantics<arbitrary>], iteration_bounds = array<i64: 1, 1, 1>, scalar_prefetch = 0 : i64, scratch_operands = 0 : i64, tpu.core_type = #tpu.core_type<tc>, window_params = [{transform_indices = @transform_0, window_bounds = array<i64: 16, 32>}, {transform_indices = @transform_1, window_bounds = array<i64: 32, 128>}, {transform_indices = @transform_2, window_bounds = array<i64: 1, 128>}, {transform_indices = @transform_3, window_bounds = array<i64: 16, 128>}]} {
    %c0_i32 = arith.constant 0 : i32
    %0 = arith.cmpi eq, %arg2, %c0_i32 : i32
    %1 = arith.extui %0 : i1 to i32
    %c0_i32_0 = arith.constant 0 : i32
    %2 = arith.cmpi ne, %1, %c0_i32_0 : i32
    scf.if %2 {
      %cst_10 = arith.constant 0.000000e+00 : f32
      %12 = vector.broadcast %cst_10 : f32 to vector<16x128xf32>
      %c0_11 = arith.constant 0 : index
      %c0_12 = arith.constant 0 : index
      %13 = vector.load %arg6[%c0_11, %c0_12] : memref<16x128xf32, #tpu.memory_space<vmem>>, vector<16x128xf32>
      tpu.vector_store %arg6[%c0_11, %c0_12], %12 {strides = array<i32>} : memref<16x128xf32, #tpu.memory_space<vmem>>, vector<16x128xf32>,
    } else {
    }
    %c0 = arith.constant 0 : index
    %c0_1 = arith.constant 0 : index
    %3 = vector.load %arg6[%c0, %c0_1] : memref<16x128xf32, #tpu.memory_space<vmem>>, vector<16x128xf32>
    %c0_2 = arith.constant 0 : index
    %c0_3 = arith.constant 0 : index
    %4 = vector.load %arg3[%c0_2, %c0_3] : memref<16x32xbf16, #tpu.memory_space<vmem>>, vector<16x32xbf16>
    %c0_4 = arith.constant 0 : index
    %c0_5 = arith.constant 0 : index
    %5 = vector.load %arg4[%c0_4, %c0_5] : memref<32x128xbf16, #tpu.memory_space<vmem>>, vector<32x128xbf16>
    %cst = arith.constant dense<0.000000e+00> : vector<16x128xf32>
    %6 = tpu.matmul %4, %5, %cst {dimension_numbers = #tpu.dot_dimension_numbers<[1], [0], [0], [1], [0, 0, 1, 1], [], []>} : vector<16x32xbf16>, vector<32x128xbf16>, vector<16x128xf32> -> vector<16x128xf32>
    %7 = arith.addf %3, %6 : vector<16x128xf32>
    %c0_6 = arith.constant 0 : index
    %c0_7 = arith.constant 0 : index
    %8 = vector.load %arg6[%c0_6, %c0_7] : memref<16x128xf32, #tpu.memory_space<vmem>>, vector<16x128xf32>
    tpu.vector_store %arg6[%c0_6, %c0_7], %7 {strides = array<i32>} : memref<16x128xf32, #tpu.memory_space<vmem>>, vector<16x128xf32>,
    %c0_i32_8 = arith.constant 0 : i32
    %9 = arith.cmpi eq, %arg2, %c0_i32_8 : i32
    %10 = arith.extui %9 : i1 to i32
    %c0_i32_9 = arith.constant 0 : i32
    %11 = arith.cmpi ne, %10, %c0_i32_9 : i32
    scf.if %11 {
      %c0_10 = arith.constant 0 : index
      %c0_11 = arith.constant 0 : index
      %12 = vector.load %arg6[%c0_10, %c0_11] : memref<16x128xf32, #tpu.memory_space<vmem>>, vector<16x128xf32>
      %c0_12 = arith.constant 0 : index
      %c0_13 = arith.constant 0 : index
      %13 = vector.load %arg5[%c0_12, %c0_13] : memref<1x128xf32, #tpu.memory_space<vmem>>, vector<1x128xf32>
      %14 = vector.broadcast %13 : vector<1x128xf32> to vector<16x128xf32>
      %15 = arith.addf %12, %14 : vector<16x128xf32>
      %c0_14 = arith.constant 0 : index
      %c0_15 = arith.constant 0 : index
      %16 = vector.load %arg6[%c0_14, %c0_15] : memref<16x128xf32, #tpu.memory_space<vmem>>, vector<16x128xf32>
      tpu.vector_store %arg6[%c0_14, %c0_15], %15 {strides = array<i32>} : memref<16x128xf32, #tpu.memory_space<vmem>>, vector<16x128xf32>,
    } else {
    }
    return
  }
  func.func @transform_0(%arg0: i32, %arg1: i32, %arg2: i32) -> (i32, i32) {
    %c0_i32 = arith.constant 0 : i32
    return %arg0, %arg2 : i32, i32
  }
  func.func @transform_1(%arg0: i32, %arg1: i32, %arg2: i32) -> (i32, i32) {
    %c0_i32 = arith.constant 0 : i32
    return %arg2, %arg1 : i32, i32
  }
  func.func @transform_2(%arg0: i32, %arg1: i32, %arg2: i32) -> (i32, i32) {
    %c0_i32 = arith.constant 0 : i32
    %c0_i32_0 = arith.constant 0 : i32
    return %c0_i32, %arg1 : i32, i32
  }
  func.func @transform_3(%arg0: i32, %arg1: i32, %arg2: i32) -> (i32, i32) {
    %c0_i32 = arith.constant 0 : i32
    return %arg0, %arg1 : i32, i32
  }
}

</mosaic_0001>

<llo_original>
// kernel: transformer_forward.39
$region0: #{transformer_forward.39}
  #allocation0 [shape = 'u32[]', space=smem, size = 0x4, offset = 0x4, fixed_abs, tag = 'smem constant byte address 0x4 - core index']
  #allocation1 [shape = 'u32[144,128]{1,0:T(1,128)}', space=vmem, size = 0x12000, scoped, tag = 'internal scratch']
  #allocation2 [shape = 'f32[16,128]{1,0:T(8,128)}', space=vmem, size = 0x2000, scoped, tag = 'scratch operand']
  %s0 = inlined_call_operand.vmem [shape: bf16[16,32], index: 0, kind: input, shape index: {}]
  %s1 = inlined_call_operand.vmem [shape: bf16[32,128], index: 1, kind: input, shape index: {}]
  %s2 = inlined_call_operand.vmem [shape: f32[1,128], index: 2, kind: input, shape index: {}]
  %s3 = inlined_call_operand.vmem [shape: bf16[16,128], index: 3, kind: output, shape index: {}]
  %s4 = sld [smem:[#allocation0]]
  $region30: #{transformer_forward.39} parent=0
    _
  %s6 = ssub.s32 1, %s4
  %s7 = scalar_select 0, %s6, %s4
  // Predicated region
  $region2: #{transformer_forward.39} parent=0 // pred_check
    _
  $region3: #{transformer_forward.39} parent=0 // pred_check_branch
    %9 = sbr.rel (0) target = $region5
  $region4: #{transformer_forward.39} parent=0 // pred_region
    _
  $region5: #{transformer_forward.39} parent=0 // pred_fallthru
    _
  // Predicated region
  $region6: #{transformer_forward.39} parent=0 // pred_check
    _
  $region7: #{transformer_forward.39} parent=0 // pred_check_branch
    %11 = sbr.rel (0) target = $region9
  $region8: #{transformer_forward.39} parent=0 // pred_region
    _
  $region9: #{transformer_forward.39} parent=0 // pred_fallthru
    _
  // Predicated region
  $region10: #{transformer_forward.39} parent=0 // pred_check
    _
  $region11: #{transformer_forward.39} parent=0 // pred_check_branch
    %13 = sbr.rel (0) target = $region13
  $region12: #{transformer_forward.39} parent=0 // pred_region
    _
  $region13: #{transformer_forward.39} parent=0 // pred_fallthru
    _
  %p15 = scmp.eq.s32.totalorder 0, 0
  // Predicated region
  $region14: #{transformer_forward.39} parent=0 // pred_check
    %p16 = pneg %p15
  $region15: #{transformer_forward.39} parent=0 // pred_check_branch
    %18 = sbr.rel (%p16) target = $region17
  $region16: #{transformer_forward.39} parent=0 // pred_region
    %19 = vst [vmem:[#allocation2] sm:$0xff] 0.0
    %20 = vst [vmem:[#allocation2 + $0x8] sm:$0xff] 0.0
  $region17: #{transformer_forward.39} parent=0 // pred_fallthru
    _
  %v21 = vld [vmem:[#allocation2] sm:$0xff]
  %v22 = vld [vmem:[#allocation2 + $0x8] sm:$0xff]
  %v23 = vld [vmem:[%s0] sm:$0xf]
  %v24 = vld [vmem:[%s0 + $0x4] sm:$0xf]
  %v25 = vld [vmem:[%s1] sm:$0xf]
  %v26 = vld [vmem:[%s1 + $0x4] sm:$0xf]
  %v27 = vld [vmem:[%s1 + $0x8] sm:$0xf]
  %v28 = vld [vmem:[%s1 + $0xc] sm:$0xf]
  %v31 = vunpack.c.l.b16 %v23
  %v32 = vunpack.c.l.b16 %v24
  %v33 = vpack.c.b16 %v32, %v31
  %v38 = vunpack.c.l.b16 %v25
  %v39 = vunpack.c.l.b16 %v26
  %v40 = vunpack.c.l.b16 %v27
  %v41 = vunpack.c.l.b16 %v28
  %v42 = vpack.c.b16 %v39, %v38
  %v43 = vpack.c.b16 %v41, %v40
  %vm46 = vcmask 261120
  %v48 = vsel %vm46, %v33, 0
  %50 = vmatprep.subr.bf16.mxu0 0
  %51 = vmatpush1.bf16.msra.mxu0 %v42
  %52 = vmatprep.subr.bf16.mxu0 0
  %53 = vmatpush1.bf16.msra.mxu0 %v43
  %54 = vmatprep.subr.bf16.mxu0 0
  %55 = vmatpush1.bf16.msra.mxu0 0
  %56 = vmatprep.subr.bf16.mxu0 0
  %57 = vmatpush1.bf16.msra.mxu0 0
  %58 = vmatprep.subr.bf16.mxu0 0
  %59 = vmatpush1.bf16.msra.mxu0 0
  %60 = vmatprep.subr.bf16.mxu0 0
  %61 = vmatpush1.bf16.msra.mxu0 0
  %62 = vmatprep.subr.bf16.mxu0 0
  %63 = vmatpush1.bf16.msra.mxu0 0
  %64 = vmatprep.subr.bf16.mxu0 0
  %65 = vmatpush1.bf16.msra.mxu0 0
  %66 = vmatprep.subr.bf16.mxu0 0
  %67 = vmatpush1.bf16.msra.mxu0 0
  %68 = vmatprep.subr.bf16.mxu0 0
  %69 = vmatpush1.bf16.msra.mxu0 0
  %70 = vmatprep.subr.bf16.mxu0 0
  %71 = vmatpush1.bf16.msra.mxu0 0
  %72 = vmatprep.subr.bf16.mxu0 0
  %73 = vmatpush1.bf16.msra.mxu0 0
  %74 = vmatprep.subr.bf16.mxu0 0
  %75 = vmatpush1.bf16.msra.mxu0 0
  %76 = vmatprep.subr.bf16.mxu0 0
  %77 = vmatpush1.bf16.msra.mxu0 0
  %78 = vmatprep.subr.bf16.mxu0 0
  %79 = vmatpush1.bf16.msra.mxu0 0
  %80 = vmatprep.subr.bf16.mxu0 0
  %81 = vmatpush1.bf16.msra.mxu0 0
  %82 = vmatprep.mubr.bf16.mxu0 0
  %83 = vmatmul.mubr.bf16.gmra.mrb[0].mxu0 %v48
  %v84 = vpop.f32.mrb[0].mxu0
  %v85 = vadd.f32 0.0, %v84
  %v86 = vpop.f32.mrb[0].mxu0
  %v87 = vpop.f32.mrb[0].mxu0
  %v88 = vadd.f32 0.0, %v87
  %v89 = vpop.f32.mrb[0].mxu0
  %90 = vdwg.mxu0
  %v91 = vadd.f32 %v21, %v85
  %v92 = vadd.f32 %v22, %v88
  %93 = vst [vmem:[#allocation2] sm:$0xff] %v91
  %94 = vst [vmem:[#allocation2 + $0x8] sm:$0xff] %v92
  // Predicated region
  $region18: #{transformer_forward.39} parent=0 // pred_check
    %p95 = pneg %p15
  $region19: #{transformer_forward.39} parent=0 // pred_check_branch
    %97 = sbr.rel (%p95) target = $region21
  $region20: #{transformer_forward.39} parent=0 // pred_region
    %v98 = vld [vmem:[#allocation2] sm:$0xff]
    %v99 = vld [vmem:[#allocation2 + $0x8] sm:$0xff]
    %v100 = vld [vmem:[%s2] sm:$0x1]
    %v102 = vlaneseq
    %v103 = vshrl.u32 %v102, 7
    %v104 = vsub.s32 0, %v103
    %v105 = vrot.slane %v100, %v104
    %v107 = vadd.f32 %v98, %v105
    %v108 = vadd.f32 %v99, %v105
    %v109 = vpack.c.bf16 %v108, %v107
    %v111 = vunpack.c.l.b16 %v109
    %v112 = vunpack.c.h.b16 %v109
    %v113 = vpack.c.b16 %v111, %v111
    %v114 = vpack.c.b16 %v112, %v112
    %117 = vst [vmem:[%s3] sm:$0xf] %v113
    %118 = vst [vmem:[%s3 + $0x4] sm:$0xf] %v114
  $region21: #{transformer_forward.39} parent=0 // pred_fallthru
    _
  // Predicated region
  $region22: #{transformer_forward.39} parent=0 // pred_check
    _
  $region23: #{transformer_forward.39} parent=0 // pred_check_branch
    %120 = sbr.rel (0) target = $region25
  $region24: #{transformer_forward.39} parent=0 // pred_region
    _
  $region25: #{transformer_forward.39} parent=0 // pred_fallthru
    _
  // Predicated region
  $region26: #{transformer_forward.39} parent=0 // pred_check
    _
  $region27: #{transformer_forward.39} parent=0 // pred_check_branch
    %122 = sbr.rel (0) target = $region29
  $region28: #{transformer_forward.39} parent=0 // pred_region
    _
  $region29: #{transformer_forward.39} parent=0 // pred_fallthru
    _

// kernel: transformer_forward.41
$region0: #{transformer_forward.41}
  #allocation0 [shape = 'u32[]', space=smem, size = 0x4, offset = 0x4, fixed_abs, tag = 'smem constant byte address 0x4 - core index']
  #allocation1 [shape = 'u32[144,128]{1,0:T(1,128)}', space=vmem, size = 0x12000, scoped, tag = 'internal scratch']
  #allocation2 [shape = 'f32[16,32]{1,0:T(8,128)}', space=vmem, size = 0x2000, scoped, tag = 'scratch operand']
  %s0 = inlined_call_operand.vmem [shape: bf16[16,32], index: 0, kind: input, shape index: {}]
  %s1 = inlined_call_operand.vmem [shape: bf16[32,32], index: 1, kind: input, shape index: {}]
  %s2 = inlined_call_operand.vmem [shape: f32[1,32], index: 2, kind: input, shape index: {}]
  %s3 = inlined_call_operand.vmem [shape: bf16[16,32], index: 3, kind: input, shape index: {}]
  %s4 = inlined_call_operand.vmem [shape: f32[1,32], index: 4, kind: input, shape index: {}]
  %s5 = inlined_call_operand.vmem [shape: f32[1,32], index: 5, kind: input, shape index: {}]
  %s6 = inlined_call_operand.vmem [shape: bf16[16,32], index: 6, kind: output, shape index: {}]
  %s7 = sld [smem:[#allocation0]]
  $region42: #{transformer_forward.41} parent=0
    _
  %s9 = ssub.s32 1, %s7
  %s10 = scalar_select 0, %s9, %s7
  // Predicated region
  $region2: #{transformer_forward.41} parent=0 // pred_check
    _
  $region3: #{transformer_forward.41} parent=0 // pred_check_branch
    %12 = sbr.rel (0) target = $region5
  $region4: #{transformer_forward.41} parent=0 // pred_region
    _
  $region5: #{transformer_forward.41} parent=0 // pred_fallthru
    _
  // Predicated region
  $region6: #{transformer_forward.41} parent=0 // pred_check
    _
  $region7: #{transformer_forward.41} parent=0 // pred_check_branch
    %14 = sbr.rel (0) target = $region9
  $region8: #{transformer_forward.41} parent=0 // pred_region
    _
  $region9: #{transformer_forward.41} parent=0 // pred_fallthru
    _
  // Predicated region
  $region10: #{transformer_forward.41} parent=0 // pred_check
    _
  $region11: #{transformer_forward.41} parent=0 // pred_check_branch
    %16 = sbr.rel (0) target = $region13
  $region12: #{transformer_forward.41} parent=0 // pred_region
    _
  $region13: #{transformer_forward.41} parent=0 // pred_fallthru
    _
  // Predicated region
  $region14: #{transformer_forward.41} parent=0 // pred_check
    _
  $region15: #{transformer_forward.41} parent=0 // pred_check_branch
    %18 = sbr.rel (0) target = $region17
  $region16: #{transformer_forward.41} parent=0 // pred_region
    _
  $region17: #{transformer_forward.41} parent=0 // pred_fallthru
    _
  // Predicated region
  $region18: #{transformer_forward.41} parent=0 // pred_check
    _
  $region19: #{transformer_forward.41} parent=0 // pred_check_branch
    %20 = sbr.rel (0) target = $region21
  $region20: #{transformer_forward.41} parent=0 // pred_region
    _
  $region21: #{transformer_forward.41} parent=0 // pred_fallthru
    _
  // Predicated region
  $region22: #{transformer_forward.41} parent=0 // pred_check
    _
  $region23: #{transformer_forward.41} parent=0 // pred_check_branch
    %22 = sbr.rel (0) target = $region25
  $region24: #{transformer_forward.41} parent=0 // pred_region
    _
  $region25: #{transformer_forward.41} parent=0 // pred_fallthru
    _
  %p24 = scmp.eq.s32.totalorder 0, 0
  // Predicated region
  $region26: #{transformer_forward.41} parent=0 // pred_check
    %p25 = pneg %p24
  $region27: #{transformer_forward.41} parent=0 // pred_check_branch
    %27 = sbr.rel (%p25) target = $region29
  $region28: #{transformer_forward.41} parent=0 // pred_region
    %vm28 = vcmask 261120
    %29 = vst.msk [vmem:[#allocation2] sm:$0xff] %vm28, 0.0
    %30 = vst.msk [vmem:[#allocation2 + $0x8] sm:$0xff] %vm28, 0.0
  $region29: #{transformer_forward.41} parent=0 // pred_fallthru
    _
  %v31 = vld [vmem:[#allocation2] sm:$0xff]
  %v32 = vld [vmem:[#allocation2 + $0x8] sm:$0xff]
  %v33 = vld [vmem:[%s0] sm:$0xf]
  %v34 = vld [vmem:[%s0 + $0x4] sm:$0xf]
  %v35 = vld [vmem:[%s1] sm:$0xf]
  %v36 = vld [vmem:[%s1 + $0x4] sm:$0xf]
  %v37 = vld [vmem:[%s1 + $0x8] sm:$0xf]
  %v38 = vld [vmem:[%s1 + $0xc] sm:$0xf]
  %v41 = vunpack.c.l.b16 %v33
  %v42 = vunpack.c.l.b16 %v34
  %v43 = vpack.c.b16 %v42, %v41
  %v48 = vunpack.c.l.b16 %v35
  %v49 = vunpack.c.l.b16 %v36
  %v50 = vunpack.c.l.b16 %v37
  %v51 = vunpack.c.l.b16 %v38
  %v52 = vpack.c.b16 %v49, %v48
  %v53 = vpack.c.b16 %v51, %v50
  %vm56 = vcmask 261120
  %v58 = vsel %vm56, %v43, 0
  %60 = vmatprep.subr.bf16.mxu0 0
  %61 = vmatpush1.bf16.msra.mxu0 %v52
  %62 = vmatprep.subr.bf16.mxu0 0
  %63 = vmatpush1.bf16.msra.mxu0 %v53
  %64 = vmatprep.subr.bf16.mxu0 0
  %65 = vmatpush1.bf16.msra.mxu0 0
  %66 = vmatprep.subr.bf16.mxu0 0
  %67 = vmatpush1.bf16.msra.mxu0 0
  %68 = vmatprep.subr.bf16.mxu0 0
  %69 = vmatpush1.bf16.msra.mxu0 0
  %70 = vmatprep.subr.bf16.mxu0 0
  %71 = vmatpush1.bf16.msra.mxu0 0
  %72 = vmatprep.subr.bf16.mxu0 0
  %73 = vmatpush1.bf16.msra.mxu0 0
  %74 = vmatprep.subr.bf16.mxu0 0
  %75 = vmatpush1.bf16.msra.mxu0 0
  %76 = vmatprep.subr.bf16.mxu0 0
  %77 = vmatpush1.bf16.msra.mxu0 0
  %78 = vmatprep.subr.bf16.mxu0 0
  %79 = vmatpush1.bf16.msra.mxu0 0
  %80 = vmatprep.subr.bf16.mxu0 0
  %81 = vmatpush1.bf16.msra.mxu0 0
  %82 = vmatprep.subr.bf16.mxu0 0
  %83 = vmatpush1.bf16.msra.mxu0 0
  %84 = vmatprep.subr.bf16.mxu0 0
  %85 = vmatpush1.bf16.msra.mxu0 0
  %86 = vmatprep.subr.bf16.mxu0 0
  %87 = vmatpush1.bf16.msra.mxu0 0
  %88 = vmatprep.subr.bf16.mxu0 0
  %89 = vmatpush1.bf16.msra.mxu0 0
  %90 = vmatprep.subr.bf16.mxu0 0
  %91 = vmatpush1.bf16.msra.mxu0 0
  %92 = vmatprep.mubr.bf16.mxu0 0
  %93 = vmatmul.mubr.bf16.gmra.mrb[0].mxu0 %v58
  %v94 = vpop.f32.mrb[0].mxu0
  %v95 = vadd.f32 0.0, %v94
  %v96 = vpop.f32.mrb[0].mxu0
  %v97 = vpop.f32.mrb[0].mxu0
  %v98 = vadd.f32 0.0, %v97
  %v99 = vpop.f32.mrb[0].mxu0
  %100 = vdwg.mxu0
  %v101 = vadd.f32 %v31, %v95
  %v102 = vadd.f32 %v32, %v98
  %103 = vst.msk [vmem:[#allocation2] sm:$0xff] %vm56, %v101
  %104 = vst.msk [vmem:[#allocation2 + $0x8] sm:$0xff] %vm56, %v102
  // Predicated region
  $region30: #{transformer_forward.41} parent=0 // pred_check
    %p105 = pneg %p24
  $region31: #{transformer_forward.41} parent=0 // pred_check_branch
    %107 = sbr.rel (%p105) target = $region33
  $region32: #{transformer_forward.41} parent=0 // pred_region
    %v108 = vld [vmem:[#allocation2] sm:$0xff]
    %v109 = vld [vmem:[#allocation2 + $0x8] sm:$0xff]
    %v110 = vld [vmem:[%s2] sm:$0x1]
    %v112 = vlaneseq
    %v113 = vshrl.u32 %v112, 7
    %v114 = vsub.s32 0, %v113
    %v115 = vrot.slane %v110, %v114
    %v117 = vadd.f32 %v108, %v115
    %v118 = vadd.f32 %v109, %v115
    %v119 = vld [vmem:[%s3] sm:$0xf]
    %v120 = vld [vmem:[%s3 + $0x4] sm:$0xf]
    %v121 = vunpack.c.l.bf16 %v119
    %v122 = vunpack.c.l.bf16 %v120
    %v123 = vadd.f32 %v117, %v121
    %v124 = vadd.f32 %v118, %v122
    %v125 = vsel %vm56, %v123, 0.0
    %126 = vadd.xlane.f32.xlu0 %v125
    %v127 = vpop.xlane.xlu0 %126
    %v128 = vsel %vm56, %v124, 0.0
    %129 = vadd.xlane.f32.xlu0 %v128
    %v130 = vpop.xlane.xlu0 %129
    %v131 = vrcp.pop 32.0
    %v132 = vmul.f32 %v127, %v131
    %v133 = vmul.f32 %v130, %v131
    %v134 = vsub.f32 %v123, %v132
    %v135 = vsub.f32 %v124, %v133
    %v136 = vmul.f32 %v134, %v134
    %v137 = vmul.f32 %v135, %v135
    %v138 = vsel %vm56, %v136, 0.0
    %139 = vadd.xlane.f32.xlu0 %v138
    %v140 = vpop.xlane.xlu0 %139
    %v141 = vsel %vm56, %v137, 0.0
    %142 = vadd.xlane.f32.xlu0 %v141
    %v143 = vpop.xlane.xlu0 %142
    %v144 = vmul.f32 %v140, %v131
    %v145 = vmul.f32 %v143, %v131
    %v146 = vadd.f32 %v144, 1e-05
    %v147 = vadd.f32 %v145, 1e-05
    %v148 = vrsqrt.pop %v146
    %v149 = vrsqrt.pop %v147
    %v150 = vmul.f32 %v134, %v148
    %v151 = vmul.f32 %v135, %v149
    %v152 = vld [vmem:[%s4] sm:$0x1]
    %v154 = vlaneseq
    %v155 = vshrl.u32 %v154, 7
    %v156 = vsub.s32 0, %v155
    %v157 = vrot.slane %v152, %v156
    %v159 = vmul.f32 %v150, %v157
    %v160 = vmul.f32 %v151, %v157
    %v161 = vld [vmem:[%s5] sm:$0x1]
    %v163 = vlaneseq
    %v164 = vshrl.u32 %v163, 7
    %v165 = vsub.s32 0, %v164
    %v166 = vrot.slane %v161, %v165
    %v168 = vadd.f32 %v159, %v166
    %v169 = vadd.f32 %v160, %v166
    %v170 = vpack.c.bf16 %v169, %v168
    %v172 = vunpack.c.l.b16 %v170
    %v173 = vunpack.c.h.b16 %v170
    %v174 = vpack.c.b16 %v172, %v172
    %v175 = vpack.c.b16 %v173, %v173
    %vm178 = vcmask 257024
    %179 = vst.msk [vmem:[%s6] sm:$0xf] %vm178, %v174
    %180 = vst.msk [vmem:[%s6 + $0x4] sm:$0xf] %vm178, %v175
  $region33: #{transformer_forward.41} parent=0 // pred_fallthru
    _
  // Predicated region
  $region34: #{transformer_forward.41} parent=0 // pred_check
    _
  $region35: #{transformer_forward.41} parent=0 // pred_check_branch
    %182 = sbr.rel (0) target = $region37
  $region36: #{transformer_forward.41} parent=0 // pred_region
    _
  $region37: #{transformer_forward.41} parent=0 // pred_fallthru
    _
  // Predicated region
  $region38: #{transformer_forward.41} parent=0 // pred_check
    _
  $region39: #{transformer_forward.41} parent=0 // pred_check_branch
    %184 = sbr.rel (0) target = $region41
  $region40: #{transformer_forward.41} parent=0 // pred_region
    _
  $region41: #{transformer_forward.41} parent=0 // pred_fallthru
    _

// kernel: transformer_forward.40
$region0: #{transformer_forward.40}
  #allocation0 [shape = 'u32[]', space=smem, size = 0x4, offset = 0x4, fixed_abs, tag = 'smem constant byte address 0x4 - core index']
  #allocation1 [shape = 'u32[144,128]{1,0:T(1,128)}', space=vmem, size = 0x12000, scoped, tag = 'internal scratch']
  %s0 = inlined_call_operand.vmem [shape: bf16[2,8,96], index: 0, kind: input, shape index: {}, may-alias: {0,1}]
  %s1 = inlined_call_operand.vmem [shape: bf16[2,8,96], index: 1, kind: input, shape index: {}, may-alias: {0,1}]
  %s2 = inlined_call_operand.vmem [shape: f32[2,1,8], index: 2, kind: input, shape index: {}]
  %s3 = inlined_call_operand.vmem [shape: bf16[2,8,32], index: 3, kind: output, shape index: {}]
  %s4 = sld [smem:[#allocation0]]
  $region45: #{transformer_forward.40} parent=0
    _
  %s6 = ssub.s32 1, %s4
  %s7 = scalar_select 0, %s6, %s4
  loop: start=0, step=1, limit=4
  $region2: #{transformer_forward.40} parent=0 // loop_pre_header
    _
  $region3: #{transformer_forward.40} parent=0 // loop_header
    %s9 = sphi 0, %s13
    %p10 = scmp.ge.s32.totalorder %s9, 4
    %s16 = sphi 0, %s28
    %s17 = sphi 0, %s24
    %s18 = sphi 0, %s16
    %s19 = sphi 0, %s17
    %s20 = sphi 0, %s18
    %s21 = sphi 0, %s19
    %s33 = sphi 0, %s35
    %s36 = sphi 0, %s33
    %s37 = sphi 0, %s36
    %s53 = sphi 0, %s37
    %s59 = sphi 0, %s61
    %s62 = sphi 0, %s59
    %s63 = sphi 0, %s62
    %s79 = sphi 0, %s63
    %s85 = sphi 0, %s87
    %s88 = sphi 0, %s85
    %s89 = sphi 0, %s88
    %s105 = sphi 0, %s89
    %s113 = sphi 0, %s115
    %s116 = sphi 0, %s113
    %s117 = sphi 0, %s116
    %s133 = sphi 0, %s117
  $region4: #{transformer_forward.40} parent=0 // loop_header_branch
    %12 = sbr.rel (%p10) target = $region8
  $region5: #{transformer_forward.40} parent=0 // loop_body
    %s14 = ssub.s32 %s9, 1
    %s15 = ssub.s32 %s9, 2
    %s22 = sadd.s32 1, %s17
    %p23 = scmp.ge.s32.totalorder %s22, 1
    %s24 = scalar_select %p23, 0, %s22
    %s25 = sadd.s32 1, %s16
    %s26 = scalar_select %p23, %s25, %s16
    %p27 = scmp.ge.s32.totalorder %s26, 2
    %s28 = scalar_select %p27, 0, %s26
    %s29 = ssub.s32 %s16, %s28
    %s30 = ssub.s32 %s17, %s24
    %s31 = sor.u32 %s29, %s30
    %p32 = scmp.eq.s32.totalorder %s31, 0
    %s34 = sadd.s32 %s33, 1
    %s35 = scalar_select %p32, %s33, %s34
    %p38 = pneg %p32
    %p39 = scmp.eq.s32.totalorder %s9, 1
    %p40 = por %p38, %p39
    %p41 = scmp.ne.s32.totalorder %s33, %s36
    %p42 = scmp.eq.s32.totalorder %s9, 0
    %p43 = por %p41, %p42
    %p44 = scmp.ne.s32.totalorder %s33, %s36
    %p45 = scmp.eq.s32.totalorder %s14, 1
    %p46 = por %p44, %p45
    %p47 = scmp.ne.s32.totalorder %s36, %s37
    %p48 = scmp.eq.s32.totalorder %s14, 0
    %p49 = por %p47, %p48
    %p50 = scmp.ne.s32.totalorder %s36, %s37
    %p51 = scmp.eq.s32.totalorder %s15, 1
    %p52 = por %p50, %p51
    %p54 = scmp.ne.s32.totalorder %s37, %s53
    %p55 = scmp.eq.s32.totalorder %s15, 0
    %p56 = por %p54, %p55
    %s57 = ssub.s32 %s16, %s28
    %p58 = scmp.eq.s32.totalorder %s57, 0
    %s60 = sadd.s32 %s59, 1
    %s61 = scalar_select %p58, %s59, %s60
    %p64 = pneg %p58
    %p65 = scmp.eq.s32.totalorder %s9, 1
    %p66 = por %p64, %p65
    %p67 = scmp.ne.s32.totalorder %s59, %s62
    %p68 = scmp.eq.s32.totalorder %s9, 0
    %p69 = por %p67, %p68
    %p70 = scmp.ne.s32.totalorder %s59, %s62
    %p71 = scmp.eq.s32.totalorder %s14, 1
    %p72 = por %p70, %p71
    %p73 = scmp.ne.s32.totalorder %s62, %s63
    %p74 = scmp.eq.s32.totalorder %s14, 0
    %p75 = por %p73, %p74
    %p76 = scmp.ne.s32.totalorder %s62, %s63
    %p77 = scmp.eq.s32.totalorder %s15, 1
    %p78 = por %p76, %p77
    %p80 = scmp.ne.s32.totalorder %s63, %s79
    %p81 = scmp.eq.s32.totalorder %s15, 0
    %p82 = por %p80, %p81
    %s83 = ssub.s32 %s16, %s28
    %p84 = scmp.eq.s32.totalorder %s83, 0
    %s86 = sadd.s32 %s85, 1
    %s87 = scalar_select %p84, %s85, %s86
    %p90 = pneg %p84
    %p91 = scmp.eq.s32.totalorder %s9, 1
    %p92 = por %p90, %p91
    %p93 = scmp.ne.s32.totalorder %s85, %s88
    %p94 = scmp.eq.s32.totalorder %s9, 0
    %p95 = por %p93, %p94
    %p96 = scmp.ne.s32.totalorder %s85, %s88
    %p97 = scmp.eq.s32.totalorder %s14, 1
    %p98 = por %p96, %p97
    %p99 = scmp.ne.s32.totalorder %s88, %s89
    %p100 = scmp.eq.s32.totalorder %s14, 0
    %p101 = por %p99, %p100
    %p102 = scmp.ne.s32.totalorder %s88, %s89
    %p103 = scmp.eq.s32.totalorder %s15, 1
    %p104 = por %p102, %p103
    %p106 = scmp.ne.s32.totalorder %s89, %s105
    %p107 = scmp.eq.s32.totalorder %s15, 0
    %p108 = por %p106, %p107
    %s109 = ssub.s32 %s16, %s28
    %s110 = ssub.s32 %s17, %s24
    %s111 = sor.u32 %s109, %s110
    %p112 = scmp.eq.s32.totalorder %s111, 0
    %s114 = sadd.s32 %s113, 1
    %s115 = scalar_select %p112, %s113, %s114
    %p118 = pneg %p112
    %p119 = scmp.eq.s32.totalorder %s9, 1
    %p120 = por %p118, %p119
    %p121 = scmp.ne.s32.totalorder %s113, %s116
    %p122 = scmp.eq.s32.totalorder %s9, 0
    %p123 = por %p121, %p122
    %p124 = scmp.ne.s32.totalorder %s113, %s116
    %p125 = scmp.eq.s32.totalorder %s14, 1
    %p126 = por %p124, %p125
    %p127 = scmp.ne.s32.totalorder %s116, %s117
    %p128 = scmp.eq.s32.totalorder %s14, 0
    %p129 = por %p127, %p128
    %p130 = scmp.ne.s32.totalorder %s116, %s117
    %p131 = scmp.eq.s32.totalorder %s15, 1
    %p132 = por %p130, %p131
    %p134 = scmp.ne.s32.totalorder %s117, %s133
    %p135 = scmp.eq.s32.totalorder %s15, 0
    %p136 = por %p134, %p135
    %p137 = scmp.le.s32.totalorder 1, %s9
    %p138 = scmp.lt.s32.totalorder %s9, 3
    %p139 = pnand %p137, %p138
    %p140 = pneg %p139
    // Predicated region
    $region9: #{transformer_forward.40} parent=5 // pred_check
      _
    $region10: #{transformer_forward.40} parent=5 // pred_check_branch
      %142 = sbr.rel (%p139) target = $region12
    $region11: #{transformer_forward.40} parent=5 // pred_region
      %s143 = ssub.s32 %s9, 1
    $region12: #{transformer_forward.40} parent=5 // pred_fallthru
      _
    %p144 = scmp.lt.s32.totalorder %s9, 2
    // Predicated region
    $region13: #{transformer_forward.40} parent=5 // pred_check
      %p145 = pneg %p144
    $region14: #{transformer_forward.40} parent=5 // pred_check_branch
      %147 = sbr.rel (%p145) target = $region16
    $region15: #{transformer_forward.40} parent=5 // pred_region
      // Predicated region
      $region17: #{transformer_forward.40} parent=15 // pred_check
        %p148 = pneg %p43
      $region18: #{transformer_forward.40} parent=15 // pred_check_branch
        %150 = sbr.rel (%p148) target = $region20
      $region19: #{transformer_forward.40} parent=15 // pred_region
        %p151 = scmp.lt.s32.totalorder %s16, 1
        %s152 = scalar_select %p151, %s16, 1
        %p153 = scmp.lt.s32.totalorder %s17, 0
        %s154 = scalar_select %p153, %s17, 0
        %s155 = sadd.s32 %s154, %s152
        %s156 = smul.addr %s155, 4
        %s157 = scalar_lea.vmem %s0, %s156
      $region20: #{transformer_forward.40} parent=15 // pred_fallthru
        _
      // Predicated region
      $region21: #{transformer_forward.40} parent=15 // pred_check
        %p158 = pneg %p69
      $region22: #{transformer_forward.40} parent=15 // pred_check_branch
        %160 = sbr.rel (%p158) target = $region24
      $region23: #{transformer_forward.40} parent=15 // pred_region
        %p161 = scmp.lt.s32.totalorder %s16, 1
        %s162 = scalar_select %p161, %s16, 1
        %s163 = smul.addr %s162, 4
        %s164 = scalar_lea.vmem %s1, %s163
      $region24: #{transformer_forward.40} parent=15 // pred_fallthru
        _
      // Predicated region
      $region25: #{transformer_forward.40} parent=15 // pred_check
        %p165 = pneg %p95
      $region26: #{transformer_forward.40} parent=15 // pred_check_branch
        %167 = sbr.rel (%p165) target = $region28
      $region27: #{transformer_forward.40} parent=15 // pred_region
        %p168 = scmp.lt.s32.totalorder %s16, 1
        %s169 = scalar_select %p168, %s16, 1
        %s170 = scalar_lea.vmem %s2, %s169
      $region28: #{transformer_forward.40} parent=15 // pred_fallthru
        _
    $region16: #{transformer_forward.40} parent=5 // pred_fallthru
      _
    %p171 = scmp.le.s32.totalorder 1, %s9
    %p172 = scmp.lt.s32.totalorder %s9, 3
    %p173 = pnand %p171, %p172
    %p174 = pneg %p173
    // Predicated region
    $region29: #{transformer_forward.40} parent=5 // pred_check
      _
    $region30: #{transformer_forward.40} parent=5 // pred_check_branch
      %176 = sbr.rel (%p173) target = $region32
    $region31: #{transformer_forward.40} parent=5 // pred_region
      %s177 = ssub.s32 %s9, 1
      %p178 = scmp.lt.s32.totalorder %s18, 1
      %s179 = scalar_select %p178, %s18, 1
      %p180 = scmp.lt.s32.totalorder %s19, 0
      %s181 = scalar_select %p180, %s19, 0
      %s182 = sadd.s32 %s181, %s179
      %s183 = smul.addr %s182, 4
      %s184 = scalar_lea.vmem %s0, %s183
      %p185 = pneg %p49
      %p186 = pneg %p46
      %p187 = scmp.lt.s32.totalorder %s18, 1
      %s188 = scalar_select %p187, %s18, 1
      %s189 = smul.addr %s188, 4
      %s190 = scalar_lea.vmem %s1, %s189
      %p191 = pneg %p75
      %p192 = pneg %p72
      %p193 = scmp.lt.s32.totalorder %s18, 1
      %s194 = scalar_select %p193, %s18, 1
      %s195 = scalar_lea.vmem %s2, %s194
      %p196 = pneg %p101
      %p197 = pneg %p98
      %p198 = pneg %p129
      %p199 = pneg %p126
      %p200 = scmp.lt.s32.totalorder %s18, 1
      %s201 = scalar_select %p200, %s18, 1
      %p202 = scmp.lt.s32.totalorder %s19, 0
      %s203 = scalar_select %p202, %s19, 0
      %s204 = sadd.s32 %s203, %s201
      %s205 = smul.addr %s204, 4
      %s206 = scalar_lea.vmem %s3, %s205
      %p207 = scmp.lt.s32.totalorder %s18, 1
      %s208 = scalar_select %p207, %s18, 1
      %p209 = scmp.lt.s32.totalorder %s19, 0
      %s210 = scalar_select %p209, %s19, 0
      %s211 = sadd.s32 %s210, %s208
      %s212 = smul.addr %s211, 4
      %s213 = scalar_lea.vmem %s0, %s212
      %p214 = scmp.lt.s32.totalorder %s18, 1
      %s215 = scalar_select %p214, %s18, 1
      %s216 = smul.addr %s215, 4
      %s217 = scalar_lea.vmem %s1, %s216
      %p218 = scmp.lt.s32.totalorder %s18, 1
      %s219 = scalar_select %p218, %s18, 1
      %s220 = scalar_lea.vmem %s2, %s219
      %p221 = scmp.lt.s32.totalorder %s18, 1
      %s222 = scalar_select %p221, %s18, 1
      %p223 = scmp.lt.s32.totalorder %s19, 0
      %s224 = scalar_select %p223, %s19, 0
      %s225 = sadd.s32 %s224, %s222
      %s226 = smul.addr %s225, 4
      %s227 = scalar_lea.vmem %s3, %s226
      %s229 = smul.u32 %s19, 8
      %v230 = vld [vmem:[%s220] sm:$0x1]
      %v232 = vlaneseq
      %v233 = vshrl.u32 %v232, 7
      %v234 = vsub.s32 0, %v233
      %v235 = vrot.slane %v230, %v234
      %v237 = vlaneseq
      %v238 = vshrl.u32 %v237, 7
      %v239 = vstv %s229
      %v240 = vadd.s32 %v239, %v238
      %v241 = vlaneseq
      %v242 = vand.u32 %v241, 127
      %vm243 = vcmp.gt.s32.totalorder %v242, %v240
      %v244 = vsel %vm243, -1e+09, 0.0
      %v245 = vadd.f32 %v235, %v244
      %v246 = vld [vmem:[%s213] sm:$0xf]
      %v247 = vld [vmem:[%s217] sm:$0xf]
      %v249 = vunpack.c.l.b16 %v247
      %v250 = vpack.c.b16 %v249, %v249
      %251 = vrot.lane.b32.xlu0 %v250, 96
      %v252 = vpop.permute.xlu0 %251
      %vm253 = vcmask 64512
      %v255 = vsel %vm253, %v246, 0
      %v258 = vsel %vm253, %v252, 0
      %260 = vmatprep.subr.bf16.mxu0 0
      %261 = vmatpush1.bf16.xpose.msra.mxu0 %v258
      %262 = vmatprep.subr.bf16.mxu0 0
      %263 = vmatpush1.bf16.xpose.msra.mxu0 0
      %264 = vmatprep.subr.bf16.mxu0 0
      %265 = vmatpush1.bf16.xpose.msra.mxu0 0
      %266 = vmatprep.subr.bf16.mxu0 0
      %267 = vmatpush1.bf16.xpose.msra.mxu0 0
      %268 = vmatprep.subr.bf16.mxu0 0
      %269 = vmatpush1.bf16.xpose.msra.mxu0 0
      %270 = vmatprep.subr.bf16.mxu0 0
      %271 = vmatpush1.bf16.xpose.msra.mxu0 0
      %272 = vmatprep.subr.bf16.mxu0 0
      %273 = vmatpush1.bf16.xpose.msra.mxu0 0
      %274 = vmatprep.subr.bf16.mxu0 0
      %275 = vmatpush1.bf16.xpose.msra.mxu0 0
      %276 = vmatprep.subr.bf16.mxu0 0
      %277 = vmatpush1.bf16.xpose.msra.mxu0 0
      %278 = vmatprep.subr.bf16.mxu0 0
      %279 = vmatpush1.bf16.xpose.msra.mxu0 0
      %280 = vmatprep.subr.bf16.mxu0 0
      %281 = vmatpush1.bf16.xpose.msra.mxu0 0
      %282 = vmatprep.subr.bf16.mxu0 0
      %283 = vmatpush1.bf16.xpose.msra.mxu0 0
      %284 = vmatprep.subr.bf16.mxu0 0
      %285 = vmatpush1.bf16.xpose.msra.mxu0 0
      %286 = vmatprep.subr.bf16.mxu0 0
      %287 = vmatpush1.bf16.xpose.msra.mxu0 0
      %288 = vmatprep.subr.bf16.mxu0 0
      %289 = vmatpush1.bf16.xpose.msra.mxu0 0
      %290 = vmatprep.subr.bf16.mxu0 0
      %291 = vmatpush1.bf16.xpose.msra.mxu0 0
      %292 = vmatprep.mubr.bf16.mxu0 0
      %293 = vmatmul.mubr.bf16.gmra.mrb[0].mxu0 %v255
      %v294 = vpop.f32.mrb[0].mxu0
      %v295 = vadd.f32 %v245, %v294
      %v296 = vpop.f32.mrb[0].mxu0
      %v297 = vpop.f32.mrb[0].mxu0
      %v298 = vpop.f32.mrb[0].mxu0
      %299 = vdwg.mxu0
      %v300 = vsel %vm253, %v295, -inf
      %301 = vmax.xlane.f32.xlu0 %v300
      %v302 = vpop.xlane.xlu0 %301
      %v303 = vsub.f32 %v295, %v302
      %v304 = vmul.f32 %v303, 1.442695
      %v305 = vpow.pop %v304
      %v306 = vsel %vm253, %v305, 0.0
      %307 = vadd.xlane.f32.xlu0 %v306
      %v308 = vpop.xlane.xlu0 %307
      %v309 = vrcp.pop %v308
      %v310 = vmul.f32 %v305, %v309
      %v311 = vpack.c.bf16 %v310, %v310
      %312 = vrot.lane.b32.xlu0 %v250, 64
      %v313 = vpop.permute.xlu0 %312
      %v315 = vsel %vm253, %v311, 0
      %vm317 = vcmask 1043456
      %v319 = vsel %vm317, %v313, 0
      %321 = vmatprep.subr.bf16.mxu0 0
      %322 = vmatpush1.bf16.msra.mxu0 %v319
      %323 = vmatprep.subr.bf16.mxu0 0
      %324 = vmatpush1.bf16.msra.mxu0 0
      %325 = vmatprep.subr.bf16.mxu0 0
      %326 = vmatpush1.bf16.msra.mxu0 0
      %327 = vmatprep.subr.bf16.mxu0 0
      %328 = vmatpush1.bf16.msra.mxu0 0
      %329 = vmatprep.subr.bf16.mxu0 0
      %330 = vmatpush1.bf16.msra.mxu0 0
      %331 = vmatprep.subr.bf16.mxu0 0
      %332 = vmatpush1.bf16.msra.mxu0 0
      %333 = vmatprep.subr.bf16.mxu0 0
      %334 = vmatpush1.bf16.msra.mxu0 0
      %335 = vmatprep.subr.bf16.mxu0 0
      %336 = vmatpush1.bf16.msra.mxu0 0
      %337 = vmatprep.subr.bf16.mxu0 0
      %338 = vmatpush1.bf16.msra.mxu0 0
      %339 = vmatprep.subr.bf16.mxu0 0
      %340 = vmatpush1.bf16.msra.mxu0 0
      %341 = vmatprep.subr.bf16.mxu0 0
      %342 = vmatpush1.bf16.msra.mxu0 0
      %343 = vmatprep.subr.bf16.mxu0 0
      %344 = vmatpush1.bf16.msra.mxu0 0
      %345 = vmatprep.subr.bf16.mxu0 0
      %346 = vmatpush1.bf16.msra.mxu0 0
      %347 = vmatprep.subr.bf16.mxu0 0
      %348 = vmatpush1.bf16.msra.mxu0 0
      %349 = vmatprep.subr.bf16.mxu0 0
      %350 = vmatpush1.bf16.msra.mxu0 0
      %351 = vmatprep.subr.bf16.mxu0 0
      %352 = vmatpush1.bf16.msra.mxu0 0
      %353 = vmatprep.mubr.bf16.mxu0 0
      %354 = vmatmul.mubr.bf16.gmra.mrb[0].mxu0 %v315
      %v355 = vpop.f32.mrb[0].mxu0
      %v356 = vadd.f32 0.0, %v355
      %v357 = vpop.f32.mrb[0].mxu0
      %v358 = vpop.f32.mrb[0].mxu0
      %v359 = vpop.f32.mrb[0].mxu0
      %360 = vdwg.mxu0
      %v361 = vpack.c.bf16 %v356, %v356
      %vm362 = vcmask 60416
      %363 = vst.msk [vmem:[%s227] sm:$0xf] %vm362, %v361
      %v364 = vld [vmem:[%s213] sm:$0xf]
      %v365 = vld [vmem:[%s217] sm:$0xf]
      %v367 = vunpack.c.l.b16 %v364
      %v368 = vpack.c.b16 %v367, %v367
      %369 = vrot.lane.b32.xlu0 %v368, 120
      %v370 = vpop.permute.xlu0 %369
      %v372 = vunpack.c.l.b16 %v365
      %v373 = vpack.c.b16 %v372, %v372
      %374 = vrot.lane.b32.xlu0 %v373, 88
      %v375 = vpop.permute.xlu0 %374
      %v377 = vsel %vm253, %v370, 0
      %v380 = vsel %vm253, %v375, 0
      %382 = vmatprep.subr.bf16.mxu0 0
      %383 = vmatpush1.bf16.xpose.msra.mxu0 %v380
      %384 = vmatprep.subr.bf16.mxu0 0
      %385 = vmatpush1.bf16.xpose.msra.mxu0 0
      %386 = vmatprep.subr.bf16.mxu0 0
      %387 = vmatpush1.bf16.xpose.msra.mxu0 0
      %388 = vmatprep.subr.bf16.mxu0 0
      %389 = vmatpush1.bf16.xpose.msra.mxu0 0
      %390 = vmatprep.subr.bf16.mxu0 0
      %391 = vmatpush1.bf16.xpose.msra.mxu0 0
      %392 = vmatprep.subr.bf16.mxu0 0
      %393 = vmatpush1.bf16.xpose.msra.mxu0 0
      %394 = vmatprep.subr.bf16.mxu0 0
      %395 = vmatpush1.bf16.xpose.msra.mxu0 0
      %396 = vmatprep.subr.bf16.mxu0 0
      %397 = vmatpush1.bf16.xpose.msra.mxu0 0
      %398 = vmatprep.subr.bf16.mxu0 0
      %399 = vmatpush1.bf16.xpose.msra.mxu0 0
      %400 = vmatprep.subr.bf16.mxu0 0
      %401 = vmatpush1.bf16.xpose.msra.mxu0 0
      %402 = vmatprep.subr.bf16.mxu0 0
      %403 = vmatpush1.bf16.xpose.msra.mxu0 0
      %404 = vmatprep.subr.bf16.mxu0 0
      %405 = vmatpush1.bf16.xpose.msra.mxu0 0
      %406 = vmatprep.subr.bf16.mxu0 0
      %407 = vmatpush1.bf16.xpose.msra.mxu0 0
      %408 = vmatprep.subr.bf16.mxu0 0
      %409 = vmatpush1.bf16.xpose.msra.mxu0 0
      %410 = vmatprep.subr.bf16.mxu0 0
      %411 = vmatpush1.bf16.xpose.msra.mxu0 0
      %412 = vmatprep.subr.bf16.mxu0 0
      %413 = vmatpush1.bf16.xpose.msra.mxu0 0
      %414 = vmatprep.mubr.bf16.mxu0 0
      %415 = vmatmul.mubr.bf16.gmra.mrb[0].mxu0 %v377
      %v416 = vpop.f32.mrb[0].mxu0
      %v417 = vadd.f32 %v245, %v416
      %v418 = vpop.f32.mrb[0].mxu0
      %v419 = vpop.f32.mrb[0].mxu0
      %v420 = vpop.f32.mrb[0].mxu0
      %421 = vdwg.mxu0
      %v422 = vsel %vm253, %v417, -inf
      %423 = vmax.xlane.f32.xlu0 %v422
      %v424 = vpop.xlane.xlu0 %423
      %v425 = vsub.f32 %v417, %v424
      %v426 = vmul.f32 %v425, 1.442695
      %v427 = vpow.pop %v426
      %v428 = vsel %vm253, %v427, 0.0
      %429 = vadd.xlane.f32.xlu0 %v428
      %v430 = vpop.xlane.xlu0 %429
      %v431 = vrcp.pop %v430
      %v432 = vmul.f32 %v427, %v431
      %v433 = vpack.c.bf16 %v432, %v432
      %434 = vrot.lane.b32.xlu0 %v373, 56
      %v435 = vpop.permute.xlu0 %434
      %v437 = vsel %vm253, %v433, 0
      %v440 = vsel %vm317, %v435, 0
      %442 = vmatprep.subr.bf16.mxu0 0
      %443 = vmatpush1.bf16.msra.mxu0 %v440
      %444 = vmatprep.subr.bf16.mxu0 0
      %445 = vmatpush1.bf16.msra.mxu0 0
      %446 = vmatprep.subr.bf16.mxu0 0
      %447 = vmatpush1.bf16.msra.mxu0 0
      %448 = vmatprep.subr.bf16.mxu0 0
      %449 = vmatpush1.bf16.msra.mxu0 0
      %450 = vmatprep.subr.bf16.mxu0 0
      %451 = vmatpush1.bf16.msra.mxu0 0
      %452 = vmatprep.subr.bf16.mxu0 0
      %453 = vmatpush1.bf16.msra.mxu0 0
      %454 = vmatprep.subr.bf16.mxu0 0
      %455 = vmatpush1.bf16.msra.mxu0 0
      %456 = vmatprep.subr.bf16.mxu0 0
      %457 = vmatpush1.bf16.msra.mxu0 0
      %458 = vmatprep.subr.bf16.mxu0 0
      %459 = vmatpush1.bf16.msra.mxu0 0
      %460 = vmatprep.subr.bf16.mxu0 0
      %461 = vmatpush1.bf16.msra.mxu0 0
      %462 = vmatprep.subr.bf16.mxu0 0
      %463 = vmatpush1.bf16.msra.mxu0 0
      %464 = vmatprep.subr.bf16.mxu0 0
      %465 = vmatpush1.bf16.msra.mxu0 0
      %466 = vmatprep.subr.bf16.mxu0 0
      %467 = vmatpush1.bf16.msra.mxu0 0
      %468 = vmatprep.subr.bf16.mxu0 0
      %469 = vmatpush1.bf16.msra.mxu0 0
      %470 = vmatprep.subr.bf16.mxu0 0
      %471 = vmatpush1.bf16.msra.mxu0 0
      %472 = vmatprep.subr.bf16.mxu0 0
      %473 = vmatpush1.bf16.msra.mxu0 0
      %474 = vmatprep.mubr.bf16.mxu0 0
      %475 = vmatmul.mubr.bf16.gmra.mrb[0].mxu0 %v437
      %v476 = vpop.f32.mrb[0].mxu0
      %v477 = vadd.f32 0.0, %v476
      %v478 = vpop.f32.mrb[0].mxu0
      %v479 = vpop.f32.mrb[0].mxu0
      %v480 = vpop.f32.mrb[0].mxu0
      %481 = vdwg.mxu0
      %v482 = vpack.c.bf16 %v477, %v477
      %v484 = vunpack.c.l.b16 %v482
      %v485 = vpack.c.b16 %v484, %v484
      %486 = vrot.lane.b32.xlu0 %v485, 8
      %v487 = vpop.permute.xlu0 %486
      %vm489 = vcmask 126016
      %490 = vst.msk [vmem:[%s227] sm:$0xf] %vm489, %v487
      %v491 = vld [vmem:[%s213] sm:$0xf]
      %v492 = vld [vmem:[%s217] sm:$0xf]
      %v494 = vunpack.c.l.b16 %v491
      %v495 = vpack.c.b16 %v494, %v494
      %496 = vrot.lane.b32.xlu0 %v495, 112
      %v497 = vpop.permute.xlu0 %496
      %v499 = vunpack.c.l.b16 %v492
      %v500 = vpack.c.b16 %v499, %v499
      %501 = vrot.lane.b32.xlu0 %v500, 80
      %v502 = vpop.permute.xlu0 %501
      %v504 = vsel %vm253, %v497, 0
      %v507 = vsel %vm253, %v502, 0
      %509 = vmatprep.subr.bf16.mxu0 0
      %510 = vmatpush1.bf16.xpose.msra.mxu0 %v507
      %511 = vmatprep.subr.bf16.mxu0 0
      %512 = vmatpush1.bf16.xpose.msra.mxu0 0
      %513 = vmatprep.subr.bf16.mxu0 0
      %514 = vmatpush1.bf16.xpose.msra.mxu0 0
      %515 = vmatprep.subr.bf16.mxu0 0
      %516 = vmatpush1.bf16.xpose.msra.mxu0 0
      %517 = vmatprep.subr.bf16.mxu0 0
      %518 = vmatpush1.bf16.xpose.msra.mxu0 0
      %519 = vmatprep.subr.bf16.mxu0 0
      %520 = vmatpush1.bf16.xpose.msra.mxu0 0
      %521 = vmatprep.subr.bf16.mxu0 0
      %522 = vmatpush1.bf16.xpose.msra.mxu0 0
      %523 = vmatprep.subr.bf16.mxu0 0
      %524 = vmatpush1.bf16.xpose.msra.mxu0 0
      %525 = vmatprep.subr.bf16.mxu0 0
      %526 = vmatpush1.bf16.xpose.msra.mxu0 0
      %527 = vmatprep.subr.bf16.mxu0 0
      %528 = vmatpush1.bf16.xpose.msra.mxu0 0
      %529 = vmatprep.subr.bf16.mxu0 0
      %530 = vmatpush1.bf16.xpose.msra.mxu0 0
      %531 = vmatprep.subr.bf16.mxu0 0
      %532 = vmatpush1.bf16.xpose.msra.mxu0 0
      %533 = vmatprep.subr.bf16.mxu0 0
      %534 = vmatpush1.bf16.xpose.msra.mxu0 0
      %535 = vmatprep.subr.bf16.mxu0 0
      %536 = vmatpush1.bf16.xpose.msra.mxu0 0
      %537 = vmatprep.subr.bf16.mxu0 0
      %538 = vmatpush1.bf16.xpose.msra.mxu0 0
      %539 = vmatprep.subr.bf16.mxu0 0
      %540 = vmatpush1.bf16.xpose.msra.mxu0 0
      %541 = vmatprep.mubr.bf16.mxu0 0
      %542 = vmatmul.mubr.bf16.gmra.mrb[0].mxu0 %v504
      %v543 = vpop.f32.mrb[0].mxu0
      %v544 = vadd.f32 %v245, %v543
      %v545 = vpop.f32.mrb[0].mxu0
      %v546 = vpop.f32.mrb[0].mxu0
      %v547 = vpop.f32.mrb[0].mxu0
      %548 = vdwg.mxu0
      %v549 = vsel %vm253, %v544, -inf
      %550 = vmax.xlane.f32.xlu0 %v549
      %v551 = vpop.xlane.xlu0 %550
      %v552 = vsub.f32 %v544, %v551
      %v553 = vmul.f32 %v552, 1.442695
      %v554 = vpow.pop %v553
      %v555 = vsel %vm253, %v554, 0.0
      %556 = vadd.xlane.f32.xlu0 %v555
      %v557 = vpop.xlane.xlu0 %556
      %v558 = vrcp.pop %v557
      %v559 = vmul.f32 %v554, %v558
      %v560 = vpack.c.bf16 %v559, %v559
      %561 = vrot.lane.b32.xlu0 %v500, 48
      %v562 = vpop.permute.xlu0 %561
      %v564 = vsel %vm253, %v560, 0
      %v567 = vsel %vm317, %v562, 0
      %569 = vmatprep.subr.bf16.mxu0 0
      %570 = vmatpush1.bf16.msra.mxu0 %v567
      %571 = vmatprep.subr.bf16.mxu0 0
      %572 = vmatpush1.bf16.msra.mxu0 0
      %573 = vmatprep.subr.bf16.mxu0 0
      %574 = vmatpush1.bf16.msra.mxu0 0
      %575 = vmatprep.subr.bf16.mxu0 0
      %576 = vmatpush1.bf16.msra.mxu0 0
      %577 = vmatprep.subr.bf16.mxu0 0
      %578 = vmatpush1.bf16.msra.mxu0 0
      %579 = vmatprep.subr.bf16.mxu0 0
      %580 = vmatpush1.bf16.msra.mxu0 0
      %581 = vmatprep.subr.bf16.mxu0 0
      %582 = vmatpush1.bf16.msra.mxu0 0
      %583 = vmatprep.subr.bf16.mxu0 0
      %584 = vmatpush1.bf16.msra.mxu0 0
      %585 = vmatprep.subr.bf16.mxu0 0
      %586 = vmatpush1.bf16.msra.mxu0 0
      %587 = vmatprep.subr.bf16.mxu0 0
      %588 = vmatpush1.bf16.msra.mxu0 0
      %589 = vmatprep.subr.bf16.mxu0 0
      %590 = vmatpush1.bf16.msra.mxu0 0
      %591 = vmatprep.subr.bf16.mxu0 0
      %592 = vmatpush1.bf16.msra.mxu0 0
      %593 = vmatprep.subr.bf16.mxu0 0
      %594 = vmatpush1.bf16.msra.mxu0 0
      %595 = vmatprep.subr.bf16.mxu0 0
      %596 = vmatpush1.bf16.msra.mxu0 0
      %597 = vmatprep.subr.bf16.mxu0 0
      %598 = vmatpush1.bf16.msra.mxu0 0
      %599 = vmatprep.subr.bf16.mxu0 0
      %600 = vmatpush1.bf16.msra.mxu0 0
      %601 = vmatprep.mubr.bf16.mxu0 0
      %602 = vmatmul.mubr.bf16.gmra.mrb[0].mxu0 %v564
      %v603 = vpop.f32.mrb[0].mxu0
      %v604 = vadd.f32 0.0, %v603
      %v605 = vpop.f32.mrb[0].mxu0
      %v606 = vpop.f32.mrb[0].mxu0
      %v607 = vpop.f32.mrb[0].mxu0
      %608 = vdwg.mxu0
      %v609 = vpack.c.bf16 %v604, %v604
      %v611 = vunpack.c.l.b16 %v609
      %v612 = vpack.c.b16 %v611, %v611
      %613 = vrot.lane.b32.xlu0 %v612, 16
      %v614 = vpop.permute.xlu0 %613
      %vm616 = vcmask 191616
      %617 = vst.msk [vmem:[%s227] sm:$0xf] %vm616, %v614
      %v618 = vld [vmem:[%s213] sm:$0xf]
      %v619 = vld [vmem:[%s217] sm:$0xf]
      %v621 = vunpack.c.l.b16 %v618
      %v622 = vpack.c.b16 %v621, %v621
      %623 = vrot.lane.b32.xlu0 %v622, 104
      %v624 = vpop.permute.xlu0 %623
      %v626 = vunpack.c.l.b16 %v619
      %v627 = vpack.c.b16 %v626, %v626
      %628 = vrot.lane.b32.xlu0 %v627, 72
      %v629 = vpop.permute.xlu0 %628
      %v631 = vsel %vm253, %v624, 0
      %v634 = vsel %vm253, %v629, 0
      %636 = vmatprep.subr.bf16.mxu0 0
      %637 = vmatpush1.bf16.xpose.msra.mxu0 %v634
      %638 = vmatprep.subr.bf16.mxu0 0
      %639 = vmatpush1.bf16.xpose.msra.mxu0 0
      %640 = vmatprep.subr.bf16.mxu0 0
      %641 = vmatpush1.bf16.xpose.msra.mxu0 0
      %642 = vmatprep.subr.bf16.mxu0 0
      %643 = vmatpush1.bf16.xpose.msra.mxu0 0
      %644 = vmatprep.subr.bf16.mxu0 0
      %645 = vmatpush1.bf16.xpose.msra.mxu0 0
      %646 = vmatprep.subr.bf16.mxu0 0
      %647 = vmatpush1.bf16.xpose.msra.mxu0 0
      %648 = vmatprep.subr.bf16.mxu0 0
      %649 = vmatpush1.bf16.xpose.msra.mxu0 0
      %650 = vmatprep.subr.bf16.mxu0 0
      %651 = vmatpush1.bf16.xpose.msra.mxu0 0
      %652 = vmatprep.subr.bf16.mxu0 0
      %653 = vmatpush1.bf16.xpose.msra.mxu0 0
      %654 = vmatprep.subr.bf16.mxu0 0
      %655 = vmatpush1.bf16.xpose.msra.mxu0 0
      %656 = vmatprep.subr.bf16.mxu0 0
      %657 = vmatpush1.bf16.xpose.msra.mxu0 0
      %658 = vmatprep.subr.bf16.mxu0 0
      %659 = vmatpush1.bf16.xpose.msra.mxu0 0
      %660 = vmatprep.subr.bf16.mxu0 0
      %661 = vmatpush1.bf16.xpose.msra.mxu0 0
      %662 = vmatprep.subr.bf16.mxu0 0
      %663 = vmatpush1.bf16.xpose.msra.mxu0 0
      %664 = vmatprep.subr.bf16.mxu0 0
      %665 = vmatpush1.bf16.xpose.msra.mxu0 0
      %666 = vmatprep.subr.bf16.mxu0 0
      %667 = vmatpush1.bf16.xpose.msra.mxu0 0
      %668 = vmatprep.mubr.bf16.mxu0 0
      %669 = vmatmul.mubr.bf16.gmra.mrb[0].mxu0 %v631
      %v670 = vpop.f32.mrb[0].mxu0
      %v671 = vadd.f32 %v245, %v670
      %v672 = vpop.f32.mrb[0].mxu0
      %v673 = vpop.f32.mrb[0].mxu0
      %v674 = vpop.f32.mrb[0].mxu0
      %675 = vdwg.mxu0
      %v676 = vsel %vm253, %v671, -inf
      %677 = vmax.xlane.f32.xlu0 %v676
      %v678 = vpop.xlane.xlu0 %677
      %v679 = vsub.f32 %v671, %v678
      %v680 = vmul.f32 %v679, 1.442695
      %v681 = vpow.pop %v680
      %v682 = vsel %vm253, %v681, 0.0
      %683 = vadd.xlane.f32.xlu0 %v682
      %v684 = vpop.xlane.xlu0 %683
      %v685 = vrcp.pop %v684
      %v686 = vmul.f32 %v681, %v685
      %v687 = vpack.c.bf16 %v686, %v686
      %688 = vrot.lane.b32.xlu0 %v627, 40
      %v689 = vpop.permute.xlu0 %688
      %v691 = vsel %vm253, %v687, 0
      %v694 = vsel %vm317, %v689, 0
      %696 = vmatprep.subr.bf16.mxu0 0
      %697 = vmatpush1.bf16.msra.mxu0 %v694
      %698 = vmatprep.subr.bf16.mxu0 0
      %699 = vmatpush1.bf16.msra.mxu0 0
      %700 = vmatprep.subr.bf16.mxu0 0
      %701 = vmatpush1.bf16.msra.mxu0 0
      %702 = vmatprep.subr.bf16.mxu0 0
      %703 = vmatpush1.bf16.msra.mxu0 0
      %704 = vmatprep.subr.bf16.mxu0 0
      %705 = vmatpush1.bf16.msra.mxu0 0
      %706 = vmatprep.subr.bf16.mxu0 0
      %707 = vmatpush1.bf16.msra.mxu0 0
      %708 = vmatprep.subr.bf16.mxu0 0
      %709 = vmatpush1.bf16.msra.mxu0 0
      %710 = vmatprep.subr.bf16.mxu0 0
      %711 = vmatpush1.bf16.msra.mxu0 0
      %712 = vmatprep.subr.bf16.mxu0 0
      %713 = vmatpush1.bf16.msra.mxu0 0
      %714 = vmatprep.subr.bf16.mxu0 0
      %715 = vmatpush1.bf16.msra.mxu0 0
      %716 = vmatprep.subr.bf16.mxu0 0
      %717 = vmatpush1.bf16.msra.mxu0 0
      %718 = vmatprep.subr.bf16.mxu0 0
      %719 = vmatpush1.bf16.msra.mxu0 0
      %720 = vmatprep.subr.bf16.mxu0 0
      %721 = vmatpush1.bf16.msra.mxu0 0
      %722 = vmatprep.subr.bf16.mxu0 0
      %723 = vmatpush1.bf16.msra.mxu0 0
      %724 = vmatprep.subr.bf16.mxu0 0
      %725 = vmatpush1.bf16.msra.mxu0 0
      %726 = vmatprep.subr.bf16.mxu0 0
      %727 = vmatpush1.bf16.msra.mxu0 0
      %728 = vmatprep.mubr.bf16.mxu0 0
      %729 = vmatmul.mubr.bf16.gmra.mrb[0].mxu0 %v691
      %v730 = vpop.f32.mrb[0].mxu0
      %v731 = vadd.f32 0.0, %v730
      %v732 = vpop.f32.mrb[0].mxu0
      %v733 = vpop.f32.mrb[0].mxu0
      %v734 = vpop.f32.mrb[0].mxu0
      %735 = vdwg.mxu0
      %v736 = vpack.c.bf16 %v731, %v731
      %v738 = vunpack.c.l.b16 %v736
      %v739 = vpack.c.b16 %v738, %v738
      %740 = vrot.lane.b32.xlu0 %v739, 24
      %v741 = vpop.permute.xlu0 %740
      %vm743 = vcmask 257216
      %744 = vst.msk [vmem:[%s227] sm:$0xf] %vm743, %v741
      %p745 = scmp.lt.s32.totalorder %s18, 1
      %s746 = scalar_select %p745, %s18, 1
      %p747 = scmp.lt.s32.totalorder %s19, 0
      %s748 = scalar_select %p747, %s19, 0
      %s749 = sadd.s32 %s748, %s746
      %s750 = smul.addr %s749, 4
      %s751 = scalar_lea.vmem %s3, %s750
      // Predicated region
      $region33: #{transformer_forward.40} parent=31 // pred_check
        %p752 = pneg %p126
      $region34: #{transformer_forward.40} parent=31 // pred_check_branch
        %754 = sbr.rel (%p752) target = $region36
      $region35: #{transformer_forward.40} parent=31 // pred_region
        _
      $region36: #{transformer_forward.40} parent=31 // pred_fallthru
        _
    $region32: #{transformer_forward.40} parent=5 // pred_fallthru
      _
    %p755 = scmp.le.s32.totalorder 2, %s9
    // Predicated region
    $region37: #{transformer_forward.40} parent=5 // pred_check
      %p756 = pneg %p755
    $region38: #{transformer_forward.40} parent=5 // pred_check_branch
      %758 = sbr.rel (%p756) target = $region40
    $region39: #{transformer_forward.40} parent=5 // pred_region
      %s759 = ssub.s32 %s9, 2
      // Predicated region
      $region41: #{transformer_forward.40} parent=39 // pred_check
        %p760 = pneg %p132
      $region42: #{transformer_forward.40} parent=39 // pred_check_branch
        %762 = sbr.rel (%p760) target = $region44
      $region43: #{transformer_forward.40} parent=39 // pred_region
        %p763 = scmp.lt.s32.totalorder %s20, 1
        %s764 = scalar_select %p763, %s20, 1
        %p765 = scmp.lt.s32.totalorder %s21, 0
        %s766 = scalar_select %p765, %s21, 0
        %s767 = sadd.s32 %s766, %s764
        %s768 = smul.addr %s767, 4
        %s769 = scalar_lea.vmem %s3, %s768
      $region44: #{transformer_forward.40} parent=39 // pred_fallthru
        _
    $region40: #{transformer_forward.40} parent=5 // pred_fallthru
      _
  $region6: #{transformer_forward.40} parent=0 // loop_footer
    %s13 = sadd.s32 1, %s9
  $region7: #{transformer_forward.40} parent=0 // loop_footer_branch
    %8 = sbr.rel target = $region3
  $region8: #{transformer_forward.40} parent=0 // loop_exit
    _

// kernel: transformer_forward.30
$region0: #{transformer_forward.30}
  #allocation0 [shape = 'u32[]', space=smem, size = 0x4, offset = 0x4, fixed_abs, tag = 'smem constant byte address 0x4 - core index']
  #allocation1 [shape = 'u32[144,128]{1,0:T(1,128)}', space=vmem, size = 0x12000, scoped, tag = 'internal scratch']
  %s0 = inlined_call_operand.vmem [shape: bf16[2,8,96], index: 0, kind: input, shape index: {}, may-alias: {0,1}]
  %s1 = inlined_call_operand.vmem [shape: bf16[2,8,96], index: 1, kind: input, shape index: {}, may-alias: {0,1}]
  %s2 = inlined_call_operand.vmem [shape: f32[2,1,8], index: 2, kind: input, shape index: {}]
  %s3 = inlined_call_operand.vmem [shape: bf16[2,8,32], index: 3, kind: output, shape index: {}]
  %s4 = sld [smem:[#allocation0]]
  $region45: #{transformer_forward.30} parent=0
    _
  %s6 = ssub.s32 1, %s4
  %s7 = scalar_select 0, %s6, %s4
  loop: start=0, step=1, limit=4
  $region2: #{transformer_forward.30} parent=0 // loop_pre_header
    _
  $region3: #{transformer_forward.30} parent=0 // loop_header
    %s9 = sphi 0, %s13
    %p10 = scmp.ge.s32.totalorder %s9, 4
    %s16 = sphi 0, %s28
    %s17 = sphi 0, %s24
    %s18 = sphi 0, %s16
    %s19 = sphi 0, %s17
    %s20 = sphi 0, %s18
    %s21 = sphi 0, %s19
    %s33 = sphi 0, %s35
    %s36 = sphi 0, %s33
    %s37 = sphi 0, %s36
    %s53 = sphi 0, %s37
    %s59 = sphi 0, %s61
    %s62 = sphi 0, %s59
    %s63 = sphi 0, %s62
    %s79 = sphi 0, %s63
    %s85 = sphi 0, %s87
    %s88 = sphi 0, %s85
    %s89 = sphi 0, %s88
    %s105 = sphi 0, %s89
    %s113 = sphi 0, %s115
    %s116 = sphi 0, %s113
    %s117 = sphi 0, %s116
    %s133 = sphi 0, %s117
  $region4: #{transformer_forward.30} parent=0 // loop_header_branch
    %12 = sbr.rel (%p10) target = $region8
  $region5: #{transformer_forward.30} parent=0 // loop_body
    %s14 = ssub.s32 %s9, 1
    %s15 = ssub.s32 %s9, 2
    %s22 = sadd.s32 1, %s17
    %p23 = scmp.ge.s32.totalorder %s22, 1
    %s24 = scalar_select %p23, 0, %s22
    %s25 = sadd.s32 1, %s16
    %s26 = scalar_select %p23, %s25, %s16
    %p27 = scmp.ge.s32.totalorder %s26, 2
    %s28 = scalar_select %p27, 0, %s26
    %s29 = ssub.s32 %s16, %s28
    %s30 = ssub.s32 %s17, %s24
    %s31 = sor.u32 %s29, %s30
    %p32 = scmp.eq.s32.totalorder %s31, 0
    %s34 = sadd.s32 %s33, 1
    %s35 = scalar_select %p32, %s33, %s34
    %p38 = pneg %p32
    %p39 = scmp.eq.s32.totalorder %s9, 1
    %p40 = por %p38, %p39
    %p41 = scmp.ne.s32.totalorder %s33, %s36
    %p42 = scmp.eq.s32.totalorder %s9, 0
    %p43 = por %p41, %p42
    %p44 = scmp.ne.s32.totalorder %s33, %s36
    %p45 = scmp.eq.s32.totalorder %s14, 1
    %p46 = por %p44, %p45
    %p47 = scmp.ne.s32.totalorder %s36, %s37
    %p48 = scmp.eq.s32.totalorder %s14, 0
    %p49 = por %p47, %p48
    %p50 = scmp.ne.s32.totalorder %s36, %s37
    %p51 = scmp.eq.s32.totalorder %s15, 1
    %p52 = por %p50, %p51
    %p54 = scmp.ne.s32.totalorder %s37, %s53
    %p55 = scmp.eq.s32.totalorder %s15, 0
    %p56 = por %p54, %p55
    %s57 = ssub.s32 %s16, %s28
    %p58 = scmp.eq.s32.totalorder %s57, 0
    %s60 = sadd.s32 %s59, 1
    %s61 = scalar_select %p58, %s59, %s60
    %p64 = pneg %p58
    %p65 = scmp.eq.s32.totalorder %s9, 1
    %p66 = por %p64, %p65
    %p67 = scmp.ne.s32.totalorder %s59, %s62
    %p68 = scmp.eq.s32.totalorder %s9, 0
    %p69 = por %p67, %p68
    %p70 = scmp.ne.s32.totalorder %s59, %s62
    %p71 = scmp.eq.s32.totalorder %s14, 1
    %p72 = por %p70, %p71
    %p73 = scmp.ne.s32.totalorder %s62, %s63
    %p74 = scmp.eq.s32.totalorder %s14, 0
    %p75 = por %p73, %p74
    %p76 = scmp.ne.s32.totalorder %s62, %s63
    %p77 = scmp.eq.s32.totalorder %s15, 1
    %p78 = por %p76, %p77
    %p80 = scmp.ne.s32.totalorder %s63, %s79
    %p81 = scmp.eq.s32.totalorder %s15, 0
    %p82 = por %p80, %p81
    %s83 = ssub.s32 %s16, %s28
    %p84 = scmp.eq.s32.totalorder %s83, 0
    %s86 = sadd.s32 %s85, 1
    %s87 = scalar_select %p84, %s85, %s86
    %p90 = pneg %p84
    %p91 = scmp.eq.s32.totalorder %s9, 1
    %p92 = por %p90, %p91
    %p93 = scmp.ne.s32.totalorder %s85, %s88
    %p94 = scmp.eq.s32.totalorder %s9, 0
    %p95 = por %p93, %p94
    %p96 = scmp.ne.s32.totalorder %s85, %s88
    %p97 = scmp.eq.s32.totalorder %s14, 1
    %p98 = por %p96, %p97
    %p99 = scmp.ne.s32.totalorder %s88, %s89
    %p100 = scmp.eq.s32.totalorder %s14, 0
    %p101 = por %p99, %p100
    %p102 = scmp.ne.s32.totalorder %s88, %s89
    %p103 = scmp.eq.s32.totalorder %s15, 1
    %p104 = por %p102, %p103
    %p106 = scmp.ne.s32.totalorder %s89, %s105
    %p107 = scmp.eq.s32.totalorder %s15, 0
    %p108 = por %p106, %p107
    %s109 = ssub.s32 %s16, %s28
    %s110 = ssub.s32 %s17, %s24
    %s111 = sor.u32 %s109, %s110
    %p112 = scmp.eq.s32.totalorder %s111, 0
    %s114 = sadd.s32 %s113, 1
    %s115 = scalar_select %p112, %s113, %s114
    %p118 = pneg %p112
    %p119 = scmp.eq.s32.totalorder %s9, 1
    %p120 = por %p118, %p119
    %p121 = scmp.ne.s32.totalorder %s113, %s116
    %p122 = scmp.eq.s32.totalorder %s9, 0
    %p123 = por %p121, %p122
    %p124 = scmp.ne.s32.totalorder %s113, %s116
    %p125 = scmp.eq.s32.totalorder %s14, 1
    %p126 = por %p124, %p125
    %p127 = scmp.ne.s32.totalorder %s116, %s117
    %p128 = scmp.eq.s32.totalorder %s14, 0
    %p129 = por %p127, %p128
    %p130 = scmp.ne.s32.totalorder %s116, %s117
    %p131 = scmp.eq.s32.totalorder %s15, 1
    %p132 = por %p130, %p131
    %p134 = scmp.ne.s32.totalorder %s117, %s133
    %p135 = scmp.eq.s32.totalorder %s15, 0
    %p136 = por %p134, %p135
    %p137 = scmp.le.s32.totalorder 1, %s9
    %p138 = scmp.lt.s32.totalorder %s9, 3
    %p139 = pnand %p137, %p138
    %p140 = pneg %p139
    // Predicated region
    $region9: #{transformer_forward.30} parent=5 // pred_check
      _
    $region10: #{transformer_forward.30} parent=5 // pred_check_branch
      %142 = sbr.rel (%p139) target = $region12
    $region11: #{transformer_forward.30} parent=5 // pred_region
      %s143 = ssub.s32 %s9, 1
    $region12: #{transformer_forward.30} parent=5 // pred_fallthru
      _
    %p144 = scmp.lt.s32.totalorder %s9, 2
    // Predicated region
    $region13: #{transformer_forward.30} parent=5 // pred_check
      %p145 = pneg %p144
    $region14: #{transformer_forward.30} parent=5 // pred_check_branch
      %147 = sbr.rel (%p145) target = $region16
    $region15: #{transformer_forward.30} parent=5 // pred_region
      // Predicated region
      $region17: #{transformer_forward.30} parent=15 // pred_check
        %p148 = pneg %p43
      $region18: #{transformer_forward.30} parent=15 // pred_check_branch
        %150 = sbr.rel (%p148) target = $region20
      $region19: #{transformer_forward.30} parent=15 // pred_region
        %p151 = scmp.lt.s32.totalorder %s16, 1
        %s152 = scalar_select %p151, %s16, 1
        %p153 = scmp.lt.s32.totalorder %s17, 0
        %s154 = scalar_select %p153, %s17, 0
        %s155 = sadd.s32 %s154, %s152
        %s156 = smul.addr %s155, 4
        %s157 = scalar_lea.vmem %s0, %s156
      $region20: #{transformer_forward.30} parent=15 // pred_fallthru
        _
      // Predicated region
      $region21: #{transformer_forward.30} parent=15 // pred_check
        %p158 = pneg %p69
      $region22: #{transformer_forward.30} parent=15 // pred_check_branch
        %160 = sbr.rel (%p158) target = $region24
      $region23: #{transformer_forward.30} parent=15 // pred_region
        %p161 = scmp.lt.s32.totalorder %s16, 1
        %s162 = scalar_select %p161, %s16, 1
        %s163 = smul.addr %s162, 4
        %s164 = scalar_lea.vmem %s1, %s163
      $region24: #{transformer_forward.30} parent=15 // pred_fallthru
        _
      // Predicated region
      $region25: #{transformer_forward.30} parent=15 // pred_check
        %p165 = pneg %p95
      $region26: #{transformer_forward.30} parent=15 // pred_check_branch
        %167 = sbr.rel (%p165) target = $region28
      $region27: #{transformer_forward.30} parent=15 // pred_region
        %p168 = scmp.lt.s32.totalorder %s16, 1
        %s169 = scalar_select %p168, %s16, 1
        %s170 = scalar_lea.vmem %s2, %s169
      $region28: #{transformer_forward.30} parent=15 // pred_fallthru
        _
    $region16: #{transformer_forward.30} parent=5 // pred_fallthru
      _
    %p171 = scmp.le.s32.totalorder 1, %s9
    %p172 = scmp.lt.s32.totalorder %s9, 3
    %p173 = pnand %p171, %p172
    %p174 = pneg %p173
    // Predicated region
    $region29: #{transformer_forward.30} parent=5 // pred_check
      _
    $region30: #{transformer_forward.30} parent=5 // pred_check_branch
      %176 = sbr.rel (%p173) target = $region32
    $region31: #{transformer_forward.30} parent=5 // pred_region
      %s177 = ssub.s32 %s9, 1
      %p178 = scmp.lt.s32.totalorder %s18, 1
      %s179 = scalar_select %p178, %s18, 1
      %p180 = scmp.lt.s32.totalorder %s19, 0
      %s181 = scalar_select %p180, %s19, 0
      %s182 = sadd.s32 %s181, %s179
      %s183 = smul.addr %s182, 4
      %s184 = scalar_lea.vmem %s0, %s183
      %p185 = pneg %p49
      %p186 = pneg %p46
      %p187 = scmp.lt.s32.totalorder %s18, 1
      %s188 = scalar_select %p187, %s18, 1
      %s189 = smul.addr %s188, 4
      %s190 = scalar_lea.vmem %s1, %s189
      %p191 = pneg %p75
      %p192 = pneg %p72
      %p193 = scmp.lt.s32.totalorder %s18, 1
      %s194 = scalar_select %p193, %s18, 1
      %s195 = scalar_lea.vmem %s2, %s194
      %p196 = pneg %p101
      %p197 = pneg %p98
      %p198 = pneg %p129
      %p199 = pneg %p126
      %p200 = scmp.lt.s32.totalorder %s18, 1
      %s201 = scalar_select %p200, %s18, 1
      %p202 = scmp.lt.s32.totalorder %s19, 0
      %s203 = scalar_select %p202, %s19, 0
      %s204 = sadd.s32 %s203, %s201
      %s205 = smul.addr %s204, 4
      %s206 = scalar_lea.vmem %s3, %s205
      %p207 = scmp.lt.s32.totalorder %s18, 1
      %s208 = scalar_select %p207, %s18, 1
      %p209 = scmp.lt.s32.totalorder %s19, 0
      %s210 = scalar_select %p209, %s19, 0
      %s211 = sadd.s32 %s210, %s208
      %s212 = smul.addr %s211, 4
      %s213 = scalar_lea.vmem %s0, %s212
      %p214 = scmp.lt.s32.totalorder %s18, 1
      %s215 = scalar_select %p214, %s18, 1
      %s216 = smul.addr %s215, 4
      %s217 = scalar_lea.vmem %s1, %s216
      %p218 = scmp.lt.s32.totalorder %s18, 1
      %s219 = scalar_select %p218, %s18, 1
      %s220 = scalar_lea.vmem %s2, %s219
      %p221 = scmp.lt.s32.totalorder %s18, 1
      %s222 = scalar_select %p221, %s18, 1
      %p223 = scmp.lt.s32.totalorder %s19, 0
      %s224 = scalar_select %p223, %s19, 0
      %s225 = sadd.s32 %s224, %s222
      %s226 = smul.addr %s225, 4
      %s227 = scalar_lea.vmem %s3, %s226
      %v229 = vld [vmem:[%s220] sm:$0x1]
      %v231 = vlaneseq
      %v232 = vshrl.u32 %v231, 7
      %v233 = vsub.s32 0, %v232
      %v234 = vrot.slane %v229, %v233
      %v236 = vld [vmem:[%s213] sm:$0xf]
      %v237 = vld [vmem:[%s217] sm:$0xf]
      %v239 = vunpack.c.l.b16 %v237
      %v240 = vpack.c.b16 %v239, %v239
      %241 = vrot.lane.b32.xlu0 %v240, 96
      %v242 = vpop.permute.xlu0 %241
      %vm243 = vcmask 64512
      %v245 = vsel %vm243, %v236, 0
      %v248 = vsel %vm243, %v242, 0
      %250 = vmatprep.subr.bf16.mxu0 0
      %251 = vmatpush1.bf16.xpose.msra.mxu0 %v248
      %252 = vmatprep.subr.bf16.mxu0 0
      %253 = vmatpush1.bf16.xpose.msra.mxu0 0
      %254 = vmatprep.subr.bf16.mxu0 0
      %255 = vmatpush1.bf16.xpose.msra.mxu0 0
      %256 = vmatprep.subr.bf16.mxu0 0
      %257 = vmatpush1.bf16.xpose.msra.mxu0 0
      %258 = vmatprep.subr.bf16.mxu0 0
      %259 = vmatpush1.bf16.xpose.msra.mxu0 0
      %260 = vmatprep.subr.bf16.mxu0 0
      %261 = vmatpush1.bf16.xpose.msra.mxu0 0
      %262 = vmatprep.subr.bf16.mxu0 0
      %263 = vmatpush1.bf16.xpose.msra.mxu0 0
      %264 = vmatprep.subr.bf16.mxu0 0
      %265 = vmatpush1.bf16.xpose.msra.mxu0 0
      %266 = vmatprep.subr.bf16.mxu0 0
      %267 = vmatpush1.bf16.xpose.msra.mxu0 0
      %268 = vmatprep.subr.bf16.mxu0 0
      %269 = vmatpush1.bf16.xpose.msra.mxu0 0
      %270 = vmatprep.subr.bf16.mxu0 0
      %271 = vmatpush1.bf16.xpose.msra.mxu0 0
      %272 = vmatprep.subr.bf16.mxu0 0
      %273 = vmatpush1.bf16.xpose.msra.mxu0 0
      %274 = vmatprep.subr.bf16.mxu0 0
      %275 = vmatpush1.bf16.xpose.msra.mxu0 0
      %276 = vmatprep.subr.bf16.mxu0 0
      %277 = vmatpush1.bf16.xpose.msra.mxu0 0
      %278 = vmatprep.subr.bf16.mxu0 0
      %279 = vmatpush1.bf16.xpose.msra.mxu0 0
      %280 = vmatprep.subr.bf16.mxu0 0
      %281 = vmatpush1.bf16.xpose.msra.mxu0 0
      %282 = vmatprep.mubr.bf16.mxu0 0
      %283 = vmatmul.mubr.bf16.gmra.mrb[0].mxu0 %v245
      %v284 = vpop.f32.mrb[0].mxu0
      %v285 = vadd.f32 %v234, %v284
      %v286 = vpop.f32.mrb[0].mxu0
      %v287 = vpop.f32.mrb[0].mxu0
      %v288 = vpop.f32.mrb[0].mxu0
      %289 = vdwg.mxu0
      %v290 = vsel %vm243, %v285, -inf
      %291 = vmax.xlane.f32.xlu0 %v290
      %v292 = vpop.xlane.xlu0 %291
      %v293 = vsub.f32 %v285, %v292
      %v294 = vmul.f32 %v293, 1.442695
      %v295 = vpow.pop %v294
      %v296 = vsel %vm243, %v295, 0.0
      %297 = vadd.xlane.f32.xlu0 %v296
      %v298 = vpop.xlane.xlu0 %297
      %v299 = vrcp.pop %v298
      %v300 = vmul.f32 %v295, %v299
      %v301 = vpack.c.bf16 %v300, %v300
      %302 = vrot.lane.b32.xlu0 %v240, 64
      %v303 = vpop.permute.xlu0 %302
      %v305 = vsel %vm243, %v301, 0
      %vm307 = vcmask 1043456
      %v309 = vsel %vm307, %v303, 0
      %311 = vmatprep.subr.bf16.mxu0 0
      %312 = vmatpush1.bf16.msra.mxu0 %v309
      %313 = vmatprep.subr.bf16.mxu0 0
      %314 = vmatpush1.bf16.msra.mxu0 0
      %315 = vmatprep.subr.bf16.mxu0 0
      %316 = vmatpush1.bf16.msra.mxu0 0
      %317 = vmatprep.subr.bf16.mxu0 0
      %318 = vmatpush1.bf16.msra.mxu0 0
      %319 = vmatprep.subr.bf16.mxu0 0
      %320 = vmatpush1.bf16.msra.mxu0 0
      %321 = vmatprep.subr.bf16.mxu0 0
      %322 = vmatpush1.bf16.msra.mxu0 0
      %323 = vmatprep.subr.bf16.mxu0 0
      %324 = vmatpush1.bf16.msra.mxu0 0
      %325 = vmatprep.subr.bf16.mxu0 0
      %326 = vmatpush1.bf16.msra.mxu0 0
      %327 = vmatprep.subr.bf16.mxu0 0
      %328 = vmatpush1.bf16.msra.mxu0 0
      %329 = vmatprep.subr.bf16.mxu0 0
      %330 = vmatpush1.bf16.msra.mxu0 0
      %331 = vmatprep.subr.bf16.mxu0 0
      %332 = vmatpush1.bf16.msra.mxu0 0
      %333 = vmatprep.subr.bf16.mxu0 0
      %334 = vmatpush1.bf16.msra.mxu0 0
      %335 = vmatprep.subr.bf16.mxu0 0
      %336 = vmatpush1.bf16.msra.mxu0 0
      %337 = vmatprep.subr.bf16.mxu0 0
      %338 = vmatpush1.bf16.msra.mxu0 0
      %339 = vmatprep.subr.bf16.mxu0 0
      %340 = vmatpush1.bf16.msra.mxu0 0
      %341 = vmatprep.subr.bf16.mxu0 0
      %342 = vmatpush1.bf16.msra.mxu0 0
      %343 = vmatprep.mubr.bf16.mxu0 0
      %344 = vmatmul.mubr.bf16.gmra.mrb[0].mxu0 %v305
      %v345 = vpop.f32.mrb[0].mxu0
      %v346 = vadd.f32 0.0, %v345
      %v347 = vpop.f32.mrb[0].mxu0
      %v348 = vpop.f32.mrb[0].mxu0
      %v349 = vpop.f32.mrb[0].mxu0
      %350 = vdwg.mxu0
      %v351 = vpack.c.bf16 %v346, %v346
      %vm352 = vcmask 60416
      %353 = vst.msk [vmem:[%s227] sm:$0xf] %vm352, %v351
      %v354 = vld [vmem:[%s213] sm:$0xf]
      %v355 = vld [vmem:[%s217] sm:$0xf]
      %v357 = vunpack.c.l.b16 %v354
      %v358 = vpack.c.b16 %v357, %v357
      %359 = vrot.lane.b32.xlu0 %v358, 120
      %v360 = vpop.permute.xlu0 %359
      %v362 = vunpack.c.l.b16 %v355
      %v363 = vpack.c.b16 %v362, %v362
      %364 = vrot.lane.b32.xlu0 %v363, 88
      %v365 = vpop.permute.xlu0 %364
      %v367 = vsel %vm243, %v360, 0
      %v370 = vsel %vm243, %v365, 0
      %372 = vmatprep.subr.bf16.mxu0 0
      %373 = vmatpush1.bf16.xpose.msra.mxu0 %v370
      %374 = vmatprep.subr.bf16.mxu0 0
      %375 = vmatpush1.bf16.xpose.msra.mxu0 0
      %376 = vmatprep.subr.bf16.mxu0 0
      %377 = vmatpush1.bf16.xpose.msra.mxu0 0
      %378 = vmatprep.subr.bf16.mxu0 0
      %379 = vmatpush1.bf16.xpose.msra.mxu0 0
      %380 = vmatprep.subr.bf16.mxu0 0
      %381 = vmatpush1.bf16.xpose.msra.mxu0 0
      %382 = vmatprep.subr.bf16.mxu0 0
      %383 = vmatpush1.bf16.xpose.msra.mxu0 0
      %384 = vmatprep.subr.bf16.mxu0 0
      %385 = vmatpush1.bf16.xpose.msra.mxu0 0
      %386 = vmatprep.subr.bf16.mxu0 0
      %387 = vmatpush1.bf16.xpose.msra.mxu0 0
      %388 = vmatprep.subr.bf16.mxu0 0
      %389 = vmatpush1.bf16.xpose.msra.mxu0 0
      %390 = vmatprep.subr.bf16.mxu0 0
      %391 = vmatpush1.bf16.xpose.msra.mxu0 0
      %392 = vmatprep.subr.bf16.mxu0 0
      %393 = vmatpush1.bf16.xpose.msra.mxu0 0
      %394 = vmatprep.subr.bf16.mxu0 0
      %395 = vmatpush1.bf16.xpose.msra.mxu0 0
      %396 = vmatprep.subr.bf16.mxu0 0
      %397 = vmatpush1.bf16.xpose.msra.mxu0 0
      %398 = vmatprep.subr.bf16.mxu0 0
      %399 = vmatpush1.bf16.xpose.msra.mxu0 0
      %400 = vmatprep.subr.bf16.mxu0 0
      %401 = vmatpush1.bf16.xpose.msra.mxu0 0
      %402 = vmatprep.subr.bf16.mxu0 0
      %403 = vmatpush1.bf16.xpose.msra.mxu0 0
      %404 = vmatprep.mubr.bf16.mxu0 0
      %405 = vmatmul.mubr.bf16.gmra.mrb[0].mxu0 %v367
      %v406 = vpop.f32.mrb[0].mxu0
      %v407 = vadd.f32 %v234, %v406
      %v408 = vpop.f32.mrb[0].mxu0
      %v409 = vpop.f32.mrb[0].mxu0
      %v410 = vpop.f32.mrb[0].mxu0
      %411 = vdwg.mxu0
      %v412 = vsel %vm243, %v407, -inf
      %413 = vmax.xlane.f32.xlu0 %v412
      %v414 = vpop.xlane.xlu0 %413
      %v415 = vsub.f32 %v407, %v414
      %v416 = vmul.f32 %v415, 1.442695
      %v417 = vpow.pop %v416
      %v418 = vsel %vm243, %v417, 0.0
      %419 = vadd.xlane.f32.xlu0 %v418
      %v420 = vpop.xlane.xlu0 %419
      %v421 = vrcp.pop %v420
      %v422 = vmul.f32 %v417, %v421
      %v423 = vpack.c.bf16 %v422, %v422
      %424 = vrot.lane.b32.xlu0 %v363, 56
      %v425 = vpop.permute.xlu0 %424
      %v427 = vsel %vm243, %v423, 0
      %v430 = vsel %vm307, %v425, 0
      %432 = vmatprep.subr.bf16.mxu0 0
      %433 = vmatpush1.bf16.msra.mxu0 %v430
      %434 = vmatprep.subr.bf16.mxu0 0
      %435 = vmatpush1.bf16.msra.mxu0 0
      %436 = vmatprep.subr.bf16.mxu0 0
      %437 = vmatpush1.bf16.msra.mxu0 0
      %438 = vmatprep.subr.bf16.mxu0 0
      %439 = vmatpush1.bf16.msra.mxu0 0
      %440 = vmatprep.subr.bf16.mxu0 0
      %441 = vmatpush1.bf16.msra.mxu0 0
      %442 = vmatprep.subr.bf16.mxu0 0
      %443 = vmatpush1.bf16.msra.mxu0 0
      %444 = vmatprep.subr.bf16.mxu0 0
      %445 = vmatpush1.bf16.msra.mxu0 0
      %446 = vmatprep.subr.bf16.mxu0 0
      %447 = vmatpush1.bf16.msra.mxu0 0
      %448 = vmatprep.subr.bf16.mxu0 0
      %449 = vmatpush1.bf16.msra.mxu0 0
      %450 = vmatprep.subr.bf16.mxu0 0
      %451 = vmatpush1.bf16.msra.mxu0 0
      %452 = vmatprep.subr.bf16.mxu0 0
      %453 = vmatpush1.bf16.msra.mxu0 0
      %454 = vmatprep.subr.bf16.mxu0 0
      %455 = vmatpush1.bf16.msra.mxu0 0
      %456 = vmatprep.subr.bf16.mxu0 0
      %457 = vmatpush1.bf16.msra.mxu0 0
      %458 = vmatprep.subr.bf16.mxu0 0
      %459 = vmatpush1.bf16.msra.mxu0 0
      %460 = vmatprep.subr.bf16.mxu0 0
      %461 = vmatpush1.bf16.msra.mxu0 0
      %462 = vmatprep.subr.bf16.mxu0 0
      %463 = vmatpush1.bf16.msra.mxu0 0
      %464 = vmatprep.mubr.bf16.mxu0 0
      %465 = vmatmul.mubr.bf16.gmra.mrb[0].mxu0 %v427
      %v466 = vpop.f32.mrb[0].mxu0
      %v467 = vadd.f32 0.0, %v466
      %v468 = vpop.f32.mrb[0].mxu0
      %v469 = vpop.f32.mrb[0].mxu0
      %v470 = vpop.f32.mrb[0].mxu0
      %471 = vdwg.mxu0
      %v472 = vpack.c.bf16 %v467, %v467
      %v474 = vunpack.c.l.b16 %v472
      %v475 = vpack.c.b16 %v474, %v474
      %476 = vrot.lane.b32.xlu0 %v475, 8
      %v477 = vpop.permute.xlu0 %476
      %vm479 = vcmask 126016
      %480 = vst.msk [vmem:[%s227] sm:$0xf] %vm479, %v477
      %v481 = vld [vmem:[%s213] sm:$0xf]
      %v482 = vld [vmem:[%s217] sm:$0xf]
      %v484 = vunpack.c.l.b16 %v481
      %v485 = vpack.c.b16 %v484, %v484
      %486 = vrot.lane.b32.xlu0 %v485, 112
      %v487 = vpop.permute.xlu0 %486
      %v489 = vunpack.c.l.b16 %v482
      %v490 = vpack.c.b16 %v489, %v489
      %491 = vrot.lane.b32.xlu0 %v490, 80
      %v492 = vpop.permute.xlu0 %491
      %v494 = vsel %vm243, %v487, 0
      %v497 = vsel %vm243, %v492, 0
      %499 = vmatprep.subr.bf16.mxu0 0
      %500 = vmatpush1.bf16.xpose.msra.mxu0 %v497
      %501 = vmatprep.subr.bf16.mxu0 0
      %502 = vmatpush1.bf16.xpose.msra.mxu0 0
      %503 = vmatprep.subr.bf16.mxu0 0
      %504 = vmatpush1.bf16.xpose.msra.mxu0 0
      %505 = vmatprep.subr.bf16.mxu0 0
      %506 = vmatpush1.bf16.xpose.msra.mxu0 0
      %507 = vmatprep.subr.bf16.mxu0 0
      %508 = vmatpush1.bf16.xpose.msra.mxu0 0
      %509 = vmatprep.subr.bf16.mxu0 0
      %510 = vmatpush1.bf16.xpose.msra.mxu0 0
      %511 = vmatprep.subr.bf16.mxu0 0
      %512 = vmatpush1.bf16.xpose.msra.mxu0 0
      %513 = vmatprep.subr.bf16.mxu0 0
      %514 = vmatpush1.bf16.xpose.msra.mxu0 0
      %515 = vmatprep.subr.bf16.mxu0 0
      %516 = vmatpush1.bf16.xpose.msra.mxu0 0
      %517 = vmatprep.subr.bf16.mxu0 0
      %518 = vmatpush1.bf16.xpose.msra.mxu0 0
      %519 = vmatprep.subr.bf16.mxu0 0
      %520 = vmatpush1.bf16.xpose.msra.mxu0 0
      %521 = vmatprep.subr.bf16.mxu0 0
      %522 = vmatpush1.bf16.xpose.msra.mxu0 0
      %523 = vmatprep.subr.bf16.mxu0 0
      %524 = vmatpush1.bf16.xpose.msra.mxu0 0
      %525 = vmatprep.subr.bf16.mxu0 0
      %526 = vmatpush1.bf16.xpose.msra.mxu0 0
      %527 = vmatprep.subr.bf16.mxu0 0
      %528 = vmatpush1.bf16.xpose.msra.mxu0 0
      %529 = vmatprep.subr.bf16.mxu0 0
      %530 = vmatpush1.bf16.xpose.msra.mxu0 0
      %531 = vmatprep.mubr.bf16.mxu0 0
      %532 = vmatmul.mubr.bf16.gmra.mrb[0].mxu0 %v494
      %v533 = vpop.f32.mrb[0].mxu0
      %v534 = vadd.f32 %v234, %v533
      %v535 = vpop.f32.mrb[0].mxu0
      %v536 = vpop.f32.mrb[0].mxu0
      %v537 = vpop.f32.mrb[0].mxu0
      %538 = vdwg.mxu0
      %v539 = vsel %vm243, %v534, -inf
      %540 = vmax.xlane.f32.xlu0 %v539
      %v541 = vpop.xlane.xlu0 %540
      %v542 = vsub.f32 %v534, %v541
      %v543 = vmul.f32 %v542, 1.442695
      %v544 = vpow.pop %v543
      %v545 = vsel %vm243, %v544, 0.0
      %546 = vadd.xlane.f32.xlu0 %v545
      %v547 = vpop.xlane.xlu0 %546
      %v548 = vrcp.pop %v547
      %v549 = vmul.f32 %v544, %v548
      %v550 = vpack.c.bf16 %v549, %v549
      %551 = vrot.lane.b32.xlu0 %v490, 48
      %v552 = vpop.permute.xlu0 %551
      %v554 = vsel %vm243, %v550, 0
      %v557 = vsel %vm307, %v552, 0
      %559 = vmatprep.subr.bf16.mxu0 0
      %560 = vmatpush1.bf16.msra.mxu0 %v557
      %561 = vmatprep.subr.bf16.mxu0 0
      %562 = vmatpush1.bf16.msra.mxu0 0
      %563 = vmatprep.subr.bf16.mxu0 0
      %564 = vmatpush1.bf16.msra.mxu0 0
      %565 = vmatprep.subr.bf16.mxu0 0
      %566 = vmatpush1.bf16.msra.mxu0 0
      %567 = vmatprep.subr.bf16.mxu0 0
      %568 = vmatpush1.bf16.msra.mxu0 0
      %569 = vmatprep.subr.bf16.mxu0 0
      %570 = vmatpush1.bf16.msra.mxu0 0
      %571 = vmatprep.subr.bf16.mxu0 0
      %572 = vmatpush1.bf16.msra.mxu0 0
      %573 = vmatprep.subr.bf16.mxu0 0
      %574 = vmatpush1.bf16.msra.mxu0 0
      %575 = vmatprep.subr.bf16.mxu0 0
      %576 = vmatpush1.bf16.msra.mxu0 0
      %577 = vmatprep.subr.bf16.mxu0 0
      %578 = vmatpush1.bf16.msra.mxu0 0
      %579 = vmatprep.subr.bf16.mxu0 0
      %580 = vmatpush1.bf16.msra.mxu0 0
      %581 = vmatprep.subr.bf16.mxu0 0
      %582 = vmatpush1.bf16.msra.mxu0 0
      %583 = vmatprep.subr.bf16.mxu0 0
      %584 = vmatpush1.bf16.msra.mxu0 0
      %585 = vmatprep.subr.bf16.mxu0 0
      %586 = vmatpush1.bf16.msra.mxu0 0
      %587 = vmatprep.subr.bf16.mxu0 0
      %588 = vmatpush1.bf16.msra.mxu0 0
      %589 = vmatprep.subr.bf16.mxu0 0
      %590 = vmatpush1.bf16.msra.mxu0 0
      %591 = vmatprep.mubr.bf16.mxu0 0
      %592 = vmatmul.mubr.bf16.gmra.mrb[0].mxu0 %v554
      %v593 = vpop.f32.mrb[0].mxu0
      %v594 = vadd.f32 0.0, %v593
      %v595 = vpop.f32.mrb[0].mxu0
      %v596 = vpop.f32.mrb[0].mxu0
      %v597 = vpop.f32.mrb[0].mxu0
      %598 = vdwg.mxu0
      %v599 = vpack.c.bf16 %v594, %v594
      %v601 = vunpack.c.l.b16 %v599
      %v602 = vpack.c.b16 %v601, %v601
      %603 = vrot.lane.b32.xlu0 %v602, 16
      %v604 = vpop.permute.xlu0 %603
      %vm606 = vcmask 191616
      %607 = vst.msk [vmem:[%s227] sm:$0xf] %vm606, %v604
      %v608 = vld [vmem:[%s213] sm:$0xf]
      %v609 = vld [vmem:[%s217] sm:$0xf]
      %v611 = vunpack.c.l.b16 %v608
      %v612 = vpack.c.b16 %v611, %v611
      %613 = vrot.lane.b32.xlu0 %v612, 104
      %v614 = vpop.permute.xlu0 %613
      %v616 = vunpack.c.l.b16 %v609
      %v617 = vpack.c.b16 %v616, %v616
      %618 = vrot.lane.b32.xlu0 %v617, 72
      %v619 = vpop.permute.xlu0 %618
      %v621 = vsel %vm243, %v614, 0
      %v624 = vsel %vm243, %v619, 0
      %626 = vmatprep.subr.bf16.mxu0 0
      %627 = vmatpush1.bf16.xpose.msra.mxu0 %v624
      %628 = vmatprep.subr.bf16.mxu0 0
      %629 = vmatpush1.bf16.xpose.msra.mxu0 0
      %630 = vmatprep.subr.bf16.mxu0 0
      %631 = vmatpush1.bf16.xpose.msra.mxu0 0
      %632 = vmatprep.subr.bf16.mxu0 0
      %633 = vmatpush1.bf16.xpose.msra.mxu0 0
      %634 = vmatprep.subr.bf16.mxu0 0
      %635 = vmatpush1.bf16.xpose.msra.mxu0 0
      %636 = vmatprep.subr.bf16.mxu0 0
      %637 = vmatpush1.bf16.xpose.msra.mxu0 0
      %638 = vmatprep.subr.bf16.mxu0 0
      %639 = vmatpush1.bf16.xpose.msra.mxu0 0
      %640 = vmatprep.subr.bf16.mxu0 0
      %641 = vmatpush1.bf16.xpose.msra.mxu0 0
      %642 = vmatprep.subr.bf16.mxu0 0
      %643 = vmatpush1.bf16.xpose.msra.mxu0 0
      %644 = vmatprep.subr.bf16.mxu0 0
      %645 = vmatpush1.bf16.xpose.msra.mxu0 0
      %646 = vmatprep.subr.bf16.mxu0 0
      %647 = vmatpush1.bf16.xpose.msra.mxu0 0
      %648 = vmatprep.subr.bf16.mxu0 0
      %649 = vmatpush1.bf16.xpose.msra.mxu0 0
      %650 = vmatprep.subr.bf16.mxu0 0
      %651 = vmatpush1.bf16.xpose.msra.mxu0 0
      %652 = vmatprep.subr.bf16.mxu0 0
      %653 = vmatpush1.bf16.xpose.msra.mxu0 0
      %654 = vmatprep.subr.bf16.mxu0 0
      %655 = vmatpush1.bf16.xpose.msra.mxu0 0
      %656 = vmatprep.subr.bf16.mxu0 0
      %657 = vmatpush1.bf16.xpose.msra.mxu0 0
      %658 = vmatprep.mubr.bf16.mxu0 0
      %659 = vmatmul.mubr.bf16.gmra.mrb[0].mxu0 %v621
      %v660 = vpop.f32.mrb[0].mxu0
      %v661 = vadd.f32 %v234, %v660
      %v662 = vpop.f32.mrb[0].mxu0
      %v663 = vpop.f32.mrb[0].mxu0
      %v664 = vpop.f32.mrb[0].mxu0
      %665 = vdwg.mxu0
      %v666 = vsel %vm243, %v661, -inf
      %667 = vmax.xlane.f32.xlu0 %v666
      %v668 = vpop.xlane.xlu0 %667
      %v669 = vsub.f32 %v661, %v668
      %v670 = vmul.f32 %v669, 1.442695
      %v671 = vpow.pop %v670
      %v672 = vsel %vm243, %v671, 0.0
      %673 = vadd.xlane.f32.xlu0 %v672
      %v674 = vpop.xlane.xlu0 %673
      %v675 = vrcp.pop %v674
      %v676 = vmul.f32 %v671, %v675
      %v677 = vpack.c.bf16 %v676, %v676
      %678 = vrot.lane.b32.xlu0 %v617, 40
      %v679 = vpop.permute.xlu0 %678
      %v681 = vsel %vm243, %v677, 0
      %v684 = vsel %vm307, %v679, 0
      %686 = vmatprep.subr.bf16.mxu0 0
      %687 = vmatpush1.bf16.msra.mxu0 %v684
      %688 = vmatprep.subr.bf16.mxu0 0
      %689 = vmatpush1.bf16.msra.mxu0 0
      %690 = vmatprep.subr.bf16.mxu0 0
      %691 = vmatpush1.bf16.msra.mxu0 0
      %692 = vmatprep.subr.bf16.mxu0 0
      %693 = vmatpush1.bf16.msra.mxu0 0
      %694 = vmatprep.subr.bf16.mxu0 0
      %695 = vmatpush1.bf16.msra.mxu0 0
      %696 = vmatprep.subr.bf16.mxu0 0
      %697 = vmatpush1.bf16.msra.mxu0 0
      %698 = vmatprep.subr.bf16.mxu0 0
      %699 = vmatpush1.bf16.msra.mxu0 0
      %700 = vmatprep.subr.bf16.mxu0 0
      %701 = vmatpush1.bf16.msra.mxu0 0
      %702 = vmatprep.subr.bf16.mxu0 0
      %703 = vmatpush1.bf16.msra.mxu0 0
      %704 = vmatprep.subr.bf16.mxu0 0
      %705 = vmatpush1.bf16.msra.mxu0 0
      %706 = vmatprep.subr.bf16.mxu0 0
      %707 = vmatpush1.bf16.msra.mxu0 0
      %708 = vmatprep.subr.bf16.mxu0 0
      %709 = vmatpush1.bf16.msra.mxu0 0
      %710 = vmatprep.subr.bf16.mxu0 0
      %711 = vmatpush1.bf16.msra.mxu0 0
      %712 = vmatprep.subr.bf16.mxu0 0
      %713 = vmatpush1.bf16.msra.mxu0 0
      %714 = vmatprep.subr.bf16.mxu0 0
      %715 = vmatpush1.bf16.msra.mxu0 0
      %716 = vmatprep.subr.bf16.mxu0 0
      %717 = vmatpush1.bf16.msra.mxu0 0
      %718 = vmatprep.mubr.bf16.mxu0 0
      %719 = vmatmul.mubr.bf16.gmra.mrb[0].mxu0 %v681
      %v720 = vpop.f32.mrb[0].mxu0
      %v721 = vadd.f32 0.0, %v720
      %v722 = vpop.f32.mrb[0].mxu0
      %v723 = vpop.f32.mrb[0].mxu0
      %v724 = vpop.f32.mrb[0].mxu0
      %725 = vdwg.mxu0
      %v726 = vpack.c.bf16 %v721, %v721
      %v728 = vunpack.c.l.b16 %v726
      %v729 = vpack.c.b16 %v728, %v728
      %730 = vrot.lane.b32.xlu0 %v729, 24
      %v731 = vpop.permute.xlu0 %730
      %vm733 = vcmask 257216
      %734 = vst.msk [vmem:[%s227] sm:$0xf] %vm733, %v731
      %p735 = scmp.lt.s32.totalorder %s18, 1
      %s736 = scalar_select %p735, %s18, 1
      %p737 = scmp.lt.s32.totalorder %s19, 0
      %s738 = scalar_select %p737, %s19, 0
      %s739 = sadd.s32 %s738, %s736
      %s740 = smul.addr %s739, 4
      %s741 = scalar_lea.vmem %s3, %s740
      // Predicated region
      $region33: #{transformer_forward.30} parent=31 // pred_check
        %p742 = pneg %p126
      $region34: #{transformer_forward.30} parent=31 // pred_check_branch
        %744 = sbr.rel (%p742) target = $region36
      $region35: #{transformer_forward.30} parent=31 // pred_region
        _
      $region36: #{transformer_forward.30} parent=31 // pred_fallthru
        _
    $region32: #{transformer_forward.30} parent=5 // pred_fallthru
      _
    %p745 = scmp.le.s32.totalorder 2, %s9
    // Predicated region
    $region37: #{transformer_forward.30} parent=5 // pred_check
      %p746 = pneg %p745
    $region38: #{transformer_forward.30} parent=5 // pred_check_branch
      %748 = sbr.rel (%p746) target = $region40
    $region39: #{transformer_forward.30} parent=5 // pred_region
      %s749 = ssub.s32 %s9, 2
      // Predicated region
      $region41: #{transformer_forward.30} parent=39 // pred_check
        %p750 = pneg %p132
      $region42: #{transformer_forward.30} parent=39 // pred_check_branch
        %752 = sbr.rel (%p750) target = $region44
      $region43: #{transformer_forward.30} parent=39 // pred_region
        %p753 = scmp.lt.s32.totalorder %s20, 1
        %s754 = scalar_select %p753, %s20, 1
        %p755 = scmp.lt.s32.totalorder %s21, 0
        %s756 = scalar_select %p755, %s21, 0
        %s757 = sadd.s32 %s756, %s754
        %s758 = smul.addr %s757, 4
        %s759 = scalar_lea.vmem %s3, %s758
      $region44: #{transformer_forward.30} parent=39 // pred_fallthru
        _
    $region40: #{transformer_forward.30} parent=5 // pred_fallthru
      _
  $region6: #{transformer_forward.30} parent=0 // loop_footer
    %s13 = sadd.s32 1, %s9
  $region7: #{transformer_forward.30} parent=0 // loop_footer_branch
    %8 = sbr.rel target = $region3
  $region8: #{transformer_forward.30} parent=0 // loop_exit
    _

// kernel: transformer_forward.32
$region0: #{transformer_forward.32}
  #allocation0 [shape = 'u32[]', space=smem, size = 0x4, offset = 0x4, fixed_abs, tag = 'smem constant byte address 0x4 - core index']
  #allocation1 [shape = 'u32[144,128]{1,0:T(1,128)}', space=vmem, size = 0x12000, scoped, tag = 'internal scratch']
  #allocation2 [shape = 'f32[16,128]{1,0:T(8,128)}', space=vmem, size = 0x2000, scoped, tag = 'scratch operand']
  %s0 = inlined_call_operand.vmem [shape: bf16[16,32], index: 0, kind: input, shape index: {}]
  %s1 = inlined_call_operand.vmem [shape: bf16[32,128], index: 1, kind: input, shape index: {}]
  %s2 = inlined_call_operand.vmem [shape: f32[1,128], index: 2, kind: input, shape index: {}]
  %s3 = inlined_call_operand.vmem [shape: bf16[16,128], index: 3, kind: output, shape index: {}]
  %s4 = sld [smem:[#allocation0]]
  $region30: #{transformer_forward.32} parent=0
    _
  %s6 = ssub.s32 1, %s4
  %s7 = scalar_select 0, %s6, %s4
  // Predicated region
  $region2: #{transformer_forward.32} parent=0 // pred_check
    _
  $region3: #{transformer_forward.32} parent=0 // pred_check_branch
    %9 = sbr.rel (0) target = $region5
  $region4: #{transformer_forward.32} parent=0 // pred_region
    _
  $region5: #{transformer_forward.32} parent=0 // pred_fallthru
    _
  // Predicated region
  $region6: #{transformer_forward.32} parent=0 // pred_check
    _
  $region7: #{transformer_forward.32} parent=0 // pred_check_branch
    %11 = sbr.rel (0) target = $region9
  $region8: #{transformer_forward.32} parent=0 // pred_region
    _
  $region9: #{transformer_forward.32} parent=0 // pred_fallthru
    _
  // Predicated region
  $region10: #{transformer_forward.32} parent=0 // pred_check
    _
  $region11: #{transformer_forward.32} parent=0 // pred_check_branch
    %13 = sbr.rel (0) target = $region13
  $region12: #{transformer_forward.32} parent=0 // pred_region
    _
  $region13: #{transformer_forward.32} parent=0 // pred_fallthru
    _
  %p15 = scmp.eq.s32.totalorder 0, 0
  // Predicated region
  $region14: #{transformer_forward.32} parent=0 // pred_check
    %p16 = pneg %p15
  $region15: #{transformer_forward.32} parent=0 // pred_check_branch
    %18 = sbr.rel (%p16) target = $region17
  $region16: #{transformer_forward.32} parent=0 // pred_region
    %19 = vst [vmem:[#allocation2] sm:$0xff] 0.0
    %20 = vst [vmem:[#allocation2 + $0x8] sm:$0xff] 0.0
  $region17: #{transformer_forward.32} parent=0 // pred_fallthru
    _
  %v21 = vld [vmem:[#allocation2] sm:$0xff]
  %v22 = vld [vmem:[#allocation2 + $0x8] sm:$0xff]
  %v23 = vld [vmem:[%s0] sm:$0xf]
  %v24 = vld [vmem:[%s0 + $0x4] sm:$0xf]
  %v25 = vld [vmem:[%s1] sm:$0xf]
  %v26 = vld [vmem:[%s1 + $0x4] sm:$0xf]
  %v27 = vld [vmem:[%s1 + $0x8] sm:$0xf]
  %v28 = vld [vmem:[%s1 + $0xc] sm:$0xf]
  %v31 = vunpack.c.l.b16 %v23
  %v32 = vunpack.c.l.b16 %v24
  %v33 = vpack.c.b16 %v32, %v31
  %v38 = vunpack.c.l.b16 %v25
  %v39 = vunpack.c.l.b16 %v26
  %v40 = vunpack.c.l.b16 %v27
  %v41 = vunpack.c.l.b16 %v28
  %v42 = vpack.c.b16 %v39, %v38
  %v43 = vpack.c.b16 %v41, %v40
  %vm46 = vcmask 261120
  %v48 = vsel %vm46, %v33, 0
  %50 = vmatprep.subr.bf16.mxu0 0
  %51 = vmatpush1.bf16.msra.mxu0 %v42
  %52 = vmatprep.subr.bf16.mxu0 0
  %53 = vmatpush1.bf16.msra.mxu0 %v43
  %54 = vmatprep.subr.bf16.mxu0 0
  %55 = vmatpush1.bf16.msra.mxu0 0
  %56 = vmatprep.subr.bf16.mxu0 0
  %57 = vmatpush1.bf16.msra.mxu0 0
  %58 = vmatprep.subr.bf16.mxu0 0
  %59 = vmatpush1.bf16.msra.mxu0 0
  %60 = vmatprep.subr.bf16.mxu0 0
  %61 = vmatpush1.bf16.msra.mxu0 0
  %62 = vmatprep.subr.bf16.mxu0 0
  %63 = vmatpush1.bf16.msra.mxu0 0
  %64 = vmatprep.subr.bf16.mxu0 0
  %65 = vmatpush1.bf16.msra.mxu0 0
  %66 = vmatprep.subr.bf16.mxu0 0
  %67 = vmatpush1.bf16.msra.mxu0 0
  %68 = vmatprep.subr.bf16.mxu0 0
  %69 = vmatpush1.bf16.msra.mxu0 0
  %70 = vmatprep.subr.bf16.mxu0 0
  %71 = vmatpush1.bf16.msra.mxu0 0
  %72 = vmatprep.subr.bf16.mxu0 0
  %73 = vmatpush1.bf16.msra.mxu0 0
  %74 = vmatprep.subr.bf16.mxu0 0
  %75 = vmatpush1.bf16.msra.mxu0 0
  %76 = vmatprep.subr.bf16.mxu0 0
  %77 = vmatpush1.bf16.msra.mxu0 0
  %78 = vmatprep.subr.bf16.mxu0 0
  %79 = vmatpush1.bf16.msra.mxu0 0
  %80 = vmatprep.subr.bf16.mxu0 0
  %81 = vmatpush1.bf16.msra.mxu0 0
  %82 = vmatprep.mubr.bf16.mxu0 0
  %83 = vmatmul.mubr.bf16.gmra.mrb[0].mxu0 %v48
  %v84 = vpop.f32.mrb[0].mxu0
  %v85 = vadd.f32 0.0, %v84
  %v86 = vpop.f32.mrb[0].mxu0
  %v87 = vpop.f32.mrb[0].mxu0
  %v88 = vadd.f32 0.0, %v87
  %v89 = vpop.f32.mrb[0].mxu0
  %90 = vdwg.mxu0
  %v91 = vadd.f32 %v21, %v85
  %v92 = vadd.f32 %v22, %v88
  %93 = vst [vmem:[#allocation2] sm:$0xff] %v91
  %94 = vst [vmem:[#allocation2 + $0x8] sm:$0xff] %v92
  // Predicated region
  $region18: #{transformer_forward.32} parent=0 // pred_check
    %p95 = pneg %p15
  $region19: #{transformer_forward.32} parent=0 // pred_check_branch
    %97 = sbr.rel (%p95) target = $region21
  $region20: #{transformer_forward.32} parent=0 // pred_region
    %v98 = vld [vmem:[#allocation2] sm:$0xff]
    %v99 = vld [vmem:[#allocation2 + $0x8] sm:$0xff]
    %v100 = vld [vmem:[%s2] sm:$0x1]
    %v102 = vlaneseq
    %v103 = vshrl.u32 %v102, 7
    %v104 = vsub.s32 0, %v103
    %v105 = vrot.slane %v100, %v104
    %v107 = vadd.f32 %v98, %v105
    %v108 = vadd.f32 %v99, %v105
    %v109 = vmax.f32 %v107, 0.0
    %v110 = vmax.f32 %v108, 0.0
    %v111 = vpack.c.bf16 %v110, %v109
    %v113 = vunpack.c.l.b16 %v111
    %v114 = vunpack.c.h.b16 %v111
    %v115 = vpack.c.b16 %v113, %v113
    %v116 = vpack.c.b16 %v114, %v114
    %119 = vst [vmem:[%s3] sm:$0xf] %v115
    %120 = vst [vmem:[%s3 + $0x4] sm:$0xf] %v116
  $region21: #{transformer_forward.32} parent=0 // pred_fallthru
    _
  // Predicated region
  $region22: #{transformer_forward.32} parent=0 // pred_check
    _
  $region23: #{transformer_forward.32} parent=0 // pred_check_branch
    %122 = sbr.rel (0) target = $region25
  $region24: #{transformer_forward.32} parent=0 // pred_region
    _
  $region25: #{transformer_forward.32} parent=0 // pred_fallthru
    _
  // Predicated region
  $region26: #{transformer_forward.32} parent=0 // pred_check
    _
  $region27: #{transformer_forward.32} parent=0 // pred_check_branch
    %124 = sbr.rel (0) target = $region29
  $region28: #{transformer_forward.32} parent=0 // pred_region
    _
  $region29: #{transformer_forward.32} parent=0 // pred_fallthru
    _

// kernel: transformer_forward.33
$region0: #{transformer_forward.33}
  #allocation0 [shape = 'u32[]', space=smem, size = 0x4, offset = 0x4, fixed_abs, tag = 'smem constant byte address 0x4 - core index']
  #allocation1 [shape = 'u32[144,128]{1,0:T(1,128)}', space=vmem, size = 0x12000, scoped, tag = 'internal scratch']
  #allocation2 [shape = 'f32[16,32]{1,0:T(8,128)}', space=vmem, size = 0x2000, scoped, tag = 'scratch operand']
  %s0 = inlined_call_operand.vmem [shape: bf16[16,64], index: 0, kind: input, shape index: {}]
  %s1 = inlined_call_operand.vmem [shape: bf16[64,32], index: 1, kind: input, shape index: {}]
  %s2 = inlined_call_operand.vmem [shape: f32[1,32], index: 2, kind: input, shape index: {}]
  %s3 = inlined_call_operand.vmem [shape: bf16[16,32], index: 3, kind: input, shape index: {}]
  %s4 = inlined_call_operand.vmem [shape: f32[1,32], index: 4, kind: input, shape index: {}]
  %s5 = inlined_call_operand.vmem [shape: f32[1,32], index: 5, kind: input, shape index: {}]
  %s6 = inlined_call_operand.vmem [shape: bf16[16,32], index: 6, kind: output, shape index: {}]
  %s7 = sld [smem:[#allocation0]]
  $region42: #{transformer_forward.33} parent=0
    _
  %s9 = ssub.s32 1, %s7
  %s10 = scalar_select 0, %s9, %s7
  // Predicated region
  $region2: #{transformer_forward.33} parent=0 // pred_check
    _
  $region3: #{transformer_forward.33} parent=0 // pred_check_branch
    %12 = sbr.rel (0) target = $region5
  $region4: #{transformer_forward.33} parent=0 // pred_region
    _
  $region5: #{transformer_forward.33} parent=0 // pred_fallthru
    _
  // Predicated region
  $region6: #{transformer_forward.33} parent=0 // pred_check
    _
  $region7: #{transformer_forward.33} parent=0 // pred_check_branch
    %14 = sbr.rel (0) target = $region9
  $region8: #{transformer_forward.33} parent=0 // pred_region
    _
  $region9: #{transformer_forward.33} parent=0 // pred_fallthru
    _
  // Predicated region
  $region10: #{transformer_forward.33} parent=0 // pred_check
    _
  $region11: #{transformer_forward.33} parent=0 // pred_check_branch
    %16 = sbr.rel (0) target = $region13
  $region12: #{transformer_forward.33} parent=0 // pred_region
    _
  $region13: #{transformer_forward.33} parent=0 // pred_fallthru
    _
  // Predicated region
  $region14: #{transformer_forward.33} parent=0 // pred_check
    _
  $region15: #{transformer_forward.33} parent=0 // pred_check_branch
    %18 = sbr.rel (0) target = $region17
  $region16: #{transformer_forward.33} parent=0 // pred_region
    _
  $region17: #{transformer_forward.33} parent=0 // pred_fallthru
    _
  // Predicated region
  $region18: #{transformer_forward.33} parent=0 // pred_check
    _
  $region19: #{transformer_forward.33} parent=0 // pred_check_branch
    %20 = sbr.rel (0) target = $region21
  $region20: #{transformer_forward.33} parent=0 // pred_region
    _
  $region21: #{transformer_forward.33} parent=0 // pred_fallthru
    _
  // Predicated region
  $region22: #{transformer_forward.33} parent=0 // pred_check
    _
  $region23: #{transformer_forward.33} parent=0 // pred_check_branch
    %22 = sbr.rel (0) target = $region25
  $region24: #{transformer_forward.33} parent=0 // pred_region
    _
  $region25: #{transformer_forward.33} parent=0 // pred_fallthru
    _
  %p24 = scmp.eq.s32.totalorder 0, 0
  // Predicated region
  $region26: #{transformer_forward.33} parent=0 // pred_check
    %p25 = pneg %p24
  $region27: #{transformer_forward.33} parent=0 // pred_check_branch
    %27 = sbr.rel (%p25) target = $region29
  $region28: #{transformer_forward.33} parent=0 // pred_region
    %vm28 = vcmask 261120
    %29 = vst.msk [vmem:[#allocation2] sm:$0xff] %vm28, 0.0
    %30 = vst.msk [vmem:[#allocation2 + $0x8] sm:$0xff] %vm28, 0.0
  $region29: #{transformer_forward.33} parent=0 // pred_fallthru
    _
  %v31 = vld [vmem:[#allocation2] sm:$0xff]
  %v32 = vld [vmem:[#allocation2 + $0x8] sm:$0xff]
  %v33 = vld [vmem:[%s0] sm:$0xf]
  %v34 = vld [vmem:[%s0 + $0x4] sm:$0xf]
  %v35 = vld [vmem:[%s1] sm:$0xf]
  %v36 = vld [vmem:[%s1 + $0x4] sm:$0xf]
  %v37 = vld [vmem:[%s1 + $0x8] sm:$0xf]
  %v38 = vld [vmem:[%s1 + $0xc] sm:$0xf]
  %v39 = vld [vmem:[%s1 + $0x10] sm:$0xf]
  %v40 = vld [vmem:[%s1 + $0x14] sm:$0xf]
  %v41 = vld [vmem:[%s1 + $0x18] sm:$0xf]
  %v42 = vld [vmem:[%s1 + $0x1c] sm:$0xf]
  %v45 = vunpack.c.l.b16 %v33
  %v46 = vunpack.c.l.b16 %v34
  %v47 = vpack.c.b16 %v46, %v45
  %v56 = vunpack.c.l.b16 %v35
  %v57 = vunpack.c.l.b16 %v36
  %v58 = vunpack.c.l.b16 %v37
  %v59 = vunpack.c.l.b16 %v38
  %v60 = vunpack.c.l.b16 %v39
  %v61 = vunpack.c.l.b16 %v40
  %v62 = vunpack.c.l.b16 %v41
  %v63 = vunpack.c.l.b16 %v42
  %v64 = vpack.c.b16 %v57, %v56
  %v65 = vpack.c.b16 %v59, %v58
  %v66 = vpack.c.b16 %v61, %v60
  %v67 = vpack.c.b16 %v63, %v62
  %vm72 = vcmask 523264
  %v74 = vsel %vm72, %v47, 0
  %76 = vmatprep.subr.bf16.mxu0 0
  %77 = vmatpush1.bf16.msra.mxu0 %v64
  %78 = vmatprep.subr.bf16.mxu0 0
  %79 = vmatpush1.bf16.msra.mxu0 %v65
  %80 = vmatprep.subr.bf16.mxu0 0
  %81 = vmatpush1.bf16.msra.mxu0 %v66
  %82 = vmatprep.subr.bf16.mxu0 0
  %83 = vmatpush1.bf16.msra.mxu0 %v67
  %84 = vmatprep.subr.bf16.mxu0 0
  %85 = vmatpush1.bf16.msra.mxu0 0
  %86 = vmatprep.subr.bf16.mxu0 0
  %87 = vmatpush1.bf16.msra.mxu0 0
  %88 = vmatprep.subr.bf16.mxu0 0
  %89 = vmatpush1.bf16.msra.mxu0 0
  %90 = vmatprep.subr.bf16.mxu0 0
  %91 = vmatpush1.bf16.msra.mxu0 0
  %92 = vmatprep.subr.bf16.mxu0 0
  %93 = vmatpush1.bf16.msra.mxu0 0
  %94 = vmatprep.subr.bf16.mxu0 0
  %95 = vmatpush1.bf16.msra.mxu0 0
  %96 = vmatprep.subr.bf16.mxu0 0
  %97 = vmatpush1.bf16.msra.mxu0 0
  %98 = vmatprep.subr.bf16.mxu0 0
  %99 = vmatpush1.bf16.msra.mxu0 0
  %100 = vmatprep.subr.bf16.mxu0 0
  %101 = vmatpush1.bf16.msra.mxu0 0
  %102 = vmatprep.subr.bf16.mxu0 0
  %103 = vmatpush1.bf16.msra.mxu0 0
  %104 = vmatprep.subr.bf16.mxu0 0
  %105 = vmatpush1.bf16.msra.mxu0 0
  %106 = vmatprep.subr.bf16.mxu0 0
  %107 = vmatpush1.bf16.msra.mxu0 0
  %108 = vmatprep.mubr.bf16.mxu0 0
  %109 = vmatmul.mubr.bf16.gmra.mrb[0].mxu0 %v74
  %v110 = vpop.f32.mrb[0].mxu0
  %v111 = vadd.f32 0.0, %v110
  %v112 = vpop.f32.mrb[0].mxu0
  %v113 = vpop.f32.mrb[0].mxu0
  %v114 = vadd.f32 0.0, %v113
  %v115 = vpop.f32.mrb[0].mxu0
  %116 = vdwg.mxu0
  %v117 = vadd.f32 %v31, %v111
  %v118 = vadd.f32 %v32, %v114
  %vm119 = vcmask 261120
  %120 = vst.msk [vmem:[#allocation2] sm:$0xff] %vm119, %v117
  %121 = vst.msk [vmem:[#allocation2 + $0x8] sm:$0xff] %vm119, %v118
  // Predicated region
  $region30: #{transformer_forward.33} parent=0 // pred_check
    %p122 = pneg %p24
  $region31: #{transformer_forward.33} parent=0 // pred_check_branch
    %124 = sbr.rel (%p122) target = $region33
  $region32: #{transformer_forward.33} parent=0 // pred_region
    %v125 = vld [vmem:[#allocation2] sm:$0xff]
    %v126 = vld [vmem:[#allocation2 + $0x8] sm:$0xff]
    %v127 = vld [vmem:[%s2] sm:$0x1]
    %v129 = vlaneseq
    %v130 = vshrl.u32 %v129, 7
    %v131 = vsub.s32 0, %v130
    %v132 = vrot.slane %v127, %v131
    %v134 = vadd.f32 %v125, %v132
    %v135 = vadd.f32 %v126, %v132
    %v136 = vld [vmem:[%s3] sm:$0xf]
    %v137 = vld [vmem:[%s3 + $0x4] sm:$0xf]
    %v138 = vunpack.c.l.bf16 %v136
    %v139 = vunpack.c.l.bf16 %v137
    %v140 = vadd.f32 %v134, %v138
    %v141 = vadd.f32 %v135, %v139
    %v142 = vsel %vm119, %v140, 0.0
    %143 = vadd.xlane.f32.xlu0 %v142
    %v144 = vpop.xlane.xlu0 %143
    %v145 = vsel %vm119, %v141, 0.0
    %146 = vadd.xlane.f32.xlu0 %v145
    %v147 = vpop.xlane.xlu0 %146
    %v148 = vrcp.pop 32.0
    %v149 = vmul.f32 %v144, %v148
    %v150 = vmul.f32 %v147, %v148
    %v151 = vsub.f32 %v140, %v149
    %v152 = vsub.f32 %v141, %v150
    %v153 = vmul.f32 %v151, %v151
    %v154 = vmul.f32 %v152, %v152
    %v155 = vsel %vm119, %v153, 0.0
    %156 = vadd.xlane.f32.xlu0 %v155
    %v157 = vpop.xlane.xlu0 %156
    %v158 = vsel %vm119, %v154, 0.0
    %159 = vadd.xlane.f32.xlu0 %v158
    %v160 = vpop.xlane.xlu0 %159
    %v161 = vmul.f32 %v157, %v148
    %v162 = vmul.f32 %v160, %v148
    %v163 = vadd.f32 %v161, 1e-05
    %v164 = vadd.f32 %v162, 1e-05
    %v165 = vrsqrt.pop %v163
    %v166 = vrsqrt.pop %v164
    %v167 = vmul.f32 %v151, %v165
    %v168 = vmul.f32 %v152, %v166
    %v169 = vld [vmem:[%s4] sm:$0x1]
    %v171 = vlaneseq
    %v172 = vshrl.u32 %v171, 7
    %v173 = vsub.s32 0, %v172
    %v174 = vrot.slane %v169, %v173
    %v176 = vmul.f32 %v167, %v174
    %v177 = vmul.f32 %v168, %v174
    %v178 = vld [vmem:[%s5] sm:$0x1]
    %v180 = vlaneseq
    %v181 = vshrl.u32 %v180, 7
    %v182 = vsub.s32 0, %v181
    %v183 = vrot.slane %v178, %v182
    %v185 = vadd.f32 %v176, %v183
    %v186 = vadd.f32 %v177, %v183
    %v187 = vpack.c.bf16 %v186, %v185
    %v189 = vunpack.c.l.b16 %v187
    %v190 = vunpack.c.h.b16 %v187
    %v191 = vpack.c.b16 %v189, %v189
    %v192 = vpack.c.b16 %v190, %v190
    %vm195 = vcmask 257024
    %196 = vst.msk [vmem:[%s6] sm:$0xf] %vm195, %v191
    %197 = vst.msk [vmem:[%s6 + $0x4] sm:$0xf] %vm195, %v192
  $region33: #{transformer_forward.33} parent=0 // pred_fallthru
    _
  // Predicated region
  $region34: #{transformer_forward.33} parent=0 // pred_check
    _
  $region35: #{transformer_forward.33} parent=0 // pred_check_branch
    %199 = sbr.rel (0) target = $region37
  $region36: #{transformer_forward.33} parent=0 // pred_region
    _
  $region37: #{transformer_forward.33} parent=0 // pred_fallthru
    _
  // Predicated region
  $region38: #{transformer_forward.33} parent=0 // pred_check
    _
  $region39: #{transformer_forward.33} parent=0 // pred_check_branch
    %201 = sbr.rel (0) target = $region41
  $region40: #{transformer_forward.33} parent=0 // pred_region
    _
  $region41: #{transformer_forward.33} parent=0 // pred_fallthru
    _

// kernel: transformer_forward.57
$region0: #{transformer_forward.57}
  #allocation0 [shape = 'u32[]', space=smem, size = 0x4, offset = 0x4, fixed_abs, tag = 'smem constant byte address 0x4 - core index']
  #allocation1 [shape = 'u32[144,128]{1,0:T(1,128)}', space=vmem, size = 0x12000, scoped, tag = 'internal scratch']
  %s0 = inlined_call_operand.vmem [shape: bf16[16,32], index: 0, kind: input, shape index: {}]
  %s1 = inlined_call_operand.vmem [shape: bf16[32,128], index: 1, kind: input, shape index: {}]
  %s2 = inlined_call_operand.vmem [shape: f32[1,128], index: 2, kind: input, shape index: {}]
  %s3 = inlined_call_operand.vmem [shape: f32[16,128], index: 3, kind: output, shape index: {}]
  %s4 = sld [smem:[#allocation0]]
  $region30: #{transformer_forward.57} parent=0
    _
  %s6 = ssub.s32 1, %s4
  %s7 = scalar_select 0, %s6, %s4
  // Predicated region
  $region2: #{transformer_forward.57} parent=0 // pred_check
    _
  $region3: #{transformer_forward.57} parent=0 // pred_check_branch
    %9 = sbr.rel (0) target = $region5
  $region4: #{transformer_forward.57} parent=0 // pred_region
    _
  $region5: #{transformer_forward.57} parent=0 // pred_fallthru
    _
  // Predicated region
  $region6: #{transformer_forward.57} parent=0 // pred_check
    _
  $region7: #{transformer_forward.57} parent=0 // pred_check_branch
    %11 = sbr.rel (0) target = $region9
  $region8: #{transformer_forward.57} parent=0 // pred_region
    _
  $region9: #{transformer_forward.57} parent=0 // pred_fallthru
    _
  // Predicated region
  $region10: #{transformer_forward.57} parent=0 // pred_check
    _
  $region11: #{transformer_forward.57} parent=0 // pred_check_branch
    %13 = sbr.rel (0) target = $region13
  $region12: #{transformer_forward.57} parent=0 // pred_region
    _
  $region13: #{transformer_forward.57} parent=0 // pred_fallthru
    _
  %p15 = scmp.eq.s32.totalorder 0, 0
  // Predicated region
  $region14: #{transformer_forward.57} parent=0 // pred_check
    %p16 = pneg %p15
  $region15: #{transformer_forward.57} parent=0 // pred_check_branch
    %18 = sbr.rel (%p16) target = $region17
  $region16: #{transformer_forward.57} parent=0 // pred_region
    %19 = vst [vmem:[%s3] sm:$0xff] 0.0
    %20 = vst [vmem:[%s3 + $0x8] sm:$0xff] 0.0
  $region17: #{transformer_forward.57} parent=0 // pred_fallthru
    _
  %v21 = vld [vmem:[%s3] sm:$0xff]
  %v22 = vld [vmem:[%s3 + $0x8] sm:$0xff]
  %v23 = vld [vmem:[%s0] sm:$0xf]
  %v24 = vld [vmem:[%s0 + $0x4] sm:$0xf]
  %v25 = vld [vmem:[%s1] sm:$0xf]
  %v26 = vld [vmem:[%s1 + $0x4] sm:$0xf]
  %v27 = vld [vmem:[%s1 + $0x8] sm:$0xf]
  %v28 = vld [vmem:[%s1 + $0xc] sm:$0xf]
  %v31 = vunpack.c.l.b16 %v23
  %v32 = vunpack.c.l.b16 %v24
  %v33 = vpack.c.b16 %v32, %v31
  %v38 = vunpack.c.l.b16 %v25
  %v39 = vunpack.c.l.b16 %v26
  %v40 = vunpack.c.l.b16 %v27
  %v41 = vunpack.c.l.b16 %v28
  %v42 = vpack.c.b16 %v39, %v38
  %v43 = vpack.c.b16 %v41, %v40
  %vm46 = vcmask 261120
  %v48 = vsel %vm46, %v33, 0
  %50 = vmatprep.subr.bf16.mxu0 0
  %51 = vmatpush1.bf16.msra.mxu0 %v42
  %52 = vmatprep.subr.bf16.mxu0 0
  %53 = vmatpush1.bf16.msra.mxu0 %v43
  %54 = vmatprep.subr.bf16.mxu0 0
  %55 = vmatpush1.bf16.msra.mxu0 0
  %56 = vmatprep.subr.bf16.mxu0 0
  %57 = vmatpush1.bf16.msra.mxu0 0
  %58 = vmatprep.subr.bf16.mxu0 0
  %59 = vmatpush1.bf16.msra.mxu0 0
  %60 = vmatprep.subr.bf16.mxu0 0
  %61 = vmatpush1.bf16.msra.mxu0 0
  %62 = vmatprep.subr.bf16.mxu0 0
  %63 = vmatpush1.bf16.msra.mxu0 0
  %64 = vmatprep.subr.bf16.mxu0 0
  %65 = vmatpush1.bf16.msra.mxu0 0
  %66 = vmatprep.subr.bf16.mxu0 0
  %67 = vmatpush1.bf16.msra.mxu0 0
  %68 = vmatprep.subr.bf16.mxu0 0
  %69 = vmatpush1.bf16.msra.mxu0 0
  %70 = vmatprep.subr.bf16.mxu0 0
  %71 = vmatpush1.bf16.msra.mxu0 0
  %72 = vmatprep.subr.bf16.mxu0 0
  %73 = vmatpush1.bf16.msra.mxu0 0
  %74 = vmatprep.subr.bf16.mxu0 0
  %75 = vmatpush1.bf16.msra.mxu0 0
  %76 = vmatprep.subr.bf16.mxu0 0
  %77 = vmatpush1.bf16.msra.mxu0 0
  %78 = vmatprep.subr.bf16.mxu0 0
  %79 = vmatpush1.bf16.msra.mxu0 0
  %80 = vmatprep.subr.bf16.mxu0 0
  %81 = vmatpush1.bf16.msra.mxu0 0
  %82 = vmatprep.mubr.bf16.mxu0 0
  %83 = vmatmul.mubr.bf16.gmra.mrb[0].mxu0 %v48
  %v84 = vpop.f32.mrb[0].mxu0
  %v85 = vadd.f32 0.0, %v84
  %v86 = vpop.f32.mrb[0].mxu0
  %v87 = vpop.f32.mrb[0].mxu0
  %v88 = vadd.f32 0.0, %v87
  %v89 = vpop.f32.mrb[0].mxu0
  %90 = vdwg.mxu0
  %v91 = vadd.f32 %v21, %v85
  %v92 = vadd.f32 %v22, %v88
  %93 = vst [vmem:[%s3] sm:$0xff] %v91
  %94 = vst [vmem:[%s3 + $0x8] sm:$0xff] %v92
  // Predicated region
  $region18: #{transformer_forward.57} parent=0 // pred_check
    %p95 = pneg %p15
  $region19: #{transformer_forward.57} parent=0 // pred_check_branch
    %97 = sbr.rel (%p95) target = $region21
  $region20: #{transformer_forward.57} parent=0 // pred_region
    %v98 = vld [vmem:[%s3] sm:$0xff]
    %v99 = vld [vmem:[%s3 + $0x8] sm:$0xff]
    %v100 = vld [vmem:[%s2] sm:$0x1]
    %v102 = vlaneseq
    %v103 = vshrl.u32 %v102, 7
    %v104 = vsub.s32 0, %v103
    %v105 = vrot.slane %v100, %v104
    %v107 = vadd.f32 %v98, %v105
    %v108 = vadd.f32 %v99, %v105
    %109 = vst [vmem:[%s3] sm:$0xff] %v107
    %110 = vst [vmem:[%s3 + $0x8] sm:$0xff] %v108
  $region21: #{transformer_forward.57} parent=0 // pred_fallthru
    _
  // Predicated region
  $region22: #{transformer_forward.57} parent=0 // pred_check
    _
  $region23: #{transformer_forward.57} parent=0 // pred_check_branch
    %112 = sbr.rel (0) target = $region25
  $region24: #{transformer_forward.57} parent=0 // pred_region
    _
  $region25: #{transformer_forward.57} parent=0 // pred_fallthru
    _
  // Predicated region
  $region26: #{transformer_forward.57} parent=0 // pred_check
    _
  $region27: #{transformer_forward.57} parent=0 // pred_check_branch
    %114 = sbr.rel (0) target = $region29
  $region28: #{transformer_forward.57} parent=0 // pred_region
    _
  $region29: #{transformer_forward.57} parent=0 // pred_fallthru
    _

// kernel: transformer_forward.44
$region0: #{transformer_forward.44}
  #allocation0 [shape = 'u32[]', space=smem, size = 0x4, offset = 0x4, fixed_abs, tag = 'smem constant byte address 0x4 - core index']
  #allocation1 [shape = 'u32[144,128]{1,0:T(1,128)}', space=vmem, size = 0x12000, scoped, tag = 'internal scratch']
  %s0 = inlined_call_operand.vmem [shape: bf16[2,8,32], index: 0, kind: input, shape index: {}]
  %s1 = inlined_call_operand.vmem [shape: bf16[2,8,64], index: 1, kind: input, shape index: {}]
  %s2 = inlined_call_operand.vmem [shape: f32[2,1,8], index: 2, kind: input, shape index: {}]
  %s3 = inlined_call_operand.vmem [shape: bf16[2,8,32], index: 3, kind: output, shape index: {}]
  %s4 = sld [smem:[#allocation0]]
  $region45: #{transformer_forward.44} parent=0
    _
  %s6 = ssub.s32 1, %s4
  %s7 = scalar_select 0, %s6, %s4
  loop: start=0, step=1, limit=4
  $region2: #{transformer_forward.44} parent=0 // loop_pre_header
    _
  $region3: #{transformer_forward.44} parent=0 // loop_header
    %s9 = sphi 0, %s13
    %p10 = scmp.ge.s32.totalorder %s9, 4
    %s16 = sphi 0, %s28
    %s17 = sphi 0, %s24
    %s18 = sphi 0, %s16
    %s19 = sphi 0, %s17
    %s20 = sphi 0, %s18
    %s21 = sphi 0, %s19
    %s33 = sphi 0, %s35
    %s36 = sphi 0, %s33
    %s37 = sphi 0, %s36
    %s53 = sphi 0, %s37
    %s59 = sphi 0, %s61
    %s62 = sphi 0, %s59
    %s63 = sphi 0, %s62
    %s79 = sphi 0, %s63
    %s85 = sphi 0, %s87
    %s88 = sphi 0, %s85
    %s89 = sphi 0, %s88
    %s105 = sphi 0, %s89
    %s113 = sphi 0, %s115
    %s116 = sphi 0, %s113
    %s117 = sphi 0, %s116
    %s133 = sphi 0, %s117
  $region4: #{transformer_forward.44} parent=0 // loop_header_branch
    %12 = sbr.rel (%p10) target = $region8
  $region5: #{transformer_forward.44} parent=0 // loop_body
    %s14 = ssub.s32 %s9, 1
    %s15 = ssub.s32 %s9, 2
    %s22 = sadd.s32 1, %s17
    %p23 = scmp.ge.s32.totalorder %s22, 1
    %s24 = scalar_select %p23, 0, %s22
    %s25 = sadd.s32 1, %s16
    %s26 = scalar_select %p23, %s25, %s16
    %p27 = scmp.ge.s32.totalorder %s26, 2
    %s28 = scalar_select %p27, 0, %s26
    %s29 = ssub.s32 %s16, %s28
    %s30 = ssub.s32 %s17, %s24
    %s31 = sor.u32 %s29, %s30
    %p32 = scmp.eq.s32.totalorder %s31, 0
    %s34 = sadd.s32 %s33, 1
    %s35 = scalar_select %p32, %s33, %s34
    %p38 = pneg %p32
    %p39 = scmp.eq.s32.totalorder %s9, 1
    %p40 = por %p38, %p39
    %p41 = scmp.ne.s32.totalorder %s33, %s36
    %p42 = scmp.eq.s32.totalorder %s9, 0
    %p43 = por %p41, %p42
    %p44 = scmp.ne.s32.totalorder %s33, %s36
    %p45 = scmp.eq.s32.totalorder %s14, 1
    %p46 = por %p44, %p45
    %p47 = scmp.ne.s32.totalorder %s36, %s37
    %p48 = scmp.eq.s32.totalorder %s14, 0
    %p49 = por %p47, %p48
    %p50 = scmp.ne.s32.totalorder %s36, %s37
    %p51 = scmp.eq.s32.totalorder %s15, 1
    %p52 = por %p50, %p51
    %p54 = scmp.ne.s32.totalorder %s37, %s53
    %p55 = scmp.eq.s32.totalorder %s15, 0
    %p56 = por %p54, %p55
    %s57 = ssub.s32 %s16, %s28
    %p58 = scmp.eq.s32.totalorder %s57, 0
    %s60 = sadd.s32 %s59, 1
    %s61 = scalar_select %p58, %s59, %s60
    %p64 = pneg %p58
    %p65 = scmp.eq.s32.totalorder %s9, 1
    %p66 = por %p64, %p65
    %p67 = scmp.ne.s32.totalorder %s59, %s62
    %p68 = scmp.eq.s32.totalorder %s9, 0
    %p69 = por %p67, %p68
    %p70 = scmp.ne.s32.totalorder %s59, %s62
    %p71 = scmp.eq.s32.totalorder %s14, 1
    %p72 = por %p70, %p71
    %p73 = scmp.ne.s32.totalorder %s62, %s63
    %p74 = scmp.eq.s32.totalorder %s14, 0
    %p75 = por %p73, %p74
    %p76 = scmp.ne.s32.totalorder %s62, %s63
    %p77 = scmp.eq.s32.totalorder %s15, 1
    %p78 = por %p76, %p77
    %p80 = scmp.ne.s32.totalorder %s63, %s79
    %p81 = scmp.eq.s32.totalorder %s15, 0
    %p82 = por %p80, %p81
    %s83 = ssub.s32 %s16, %s28
    %p84 = scmp.eq.s32.totalorder %s83, 0
    %s86 = sadd.s32 %s85, 1
    %s87 = scalar_select %p84, %s85, %s86
    %p90 = pneg %p84
    %p91 = scmp.eq.s32.totalorder %s9, 1
    %p92 = por %p90, %p91
    %p93 = scmp.ne.s32.totalorder %s85, %s88
    %p94 = scmp.eq.s32.totalorder %s9, 0
    %p95 = por %p93, %p94
    %p96 = scmp.ne.s32.totalorder %s85, %s88
    %p97 = scmp.eq.s32.totalorder %s14, 1
    %p98 = por %p96, %p97
    %p99 = scmp.ne.s32.totalorder %s88, %s89
    %p100 = scmp.eq.s32.totalorder %s14, 0
    %p101 = por %p99, %p100
    %p102 = scmp.ne.s32.totalorder %s88, %s89
    %p103 = scmp.eq.s32.totalorder %s15, 1
    %p104 = por %p102, %p103
    %p106 = scmp.ne.s32.totalorder %s89, %s105
    %p107 = scmp.eq.s32.totalorder %s15, 0
    %p108 = por %p106, %p107
    %s109 = ssub.s32 %s16, %s28
    %s110 = ssub.s32 %s17, %s24
    %s111 = sor.u32 %s109, %s110
    %p112 = scmp.eq.s32.totalorder %s111, 0
    %s114 = sadd.s32 %s113, 1
    %s115 = scalar_select %p112, %s113, %s114
    %p118 = pneg %p112
    %p119 = scmp.eq.s32.totalorder %s9, 1
    %p120 = por %p118, %p119
    %p121 = scmp.ne.s32.totalorder %s113, %s116
    %p122 = scmp.eq.s32.totalorder %s9, 0
    %p123 = por %p121, %p122
    %p124 = scmp.ne.s32.totalorder %s113, %s116
    %p125 = scmp.eq.s32.totalorder %s14, 1
    %p126 = por %p124, %p125
    %p127 = scmp.ne.s32.totalorder %s116, %s117
    %p128 = scmp.eq.s32.totalorder %s14, 0
    %p129 = por %p127, %p128
    %p130 = scmp.ne.s32.totalorder %s116, %s117
    %p131 = scmp.eq.s32.totalorder %s15, 1
    %p132 = por %p130, %p131
    %p134 = scmp.ne.s32.totalorder %s117, %s133
    %p135 = scmp.eq.s32.totalorder %s15, 0
    %p136 = por %p134, %p135
    %p137 = scmp.le.s32.totalorder 1, %s9
    %p138 = scmp.lt.s32.totalorder %s9, 3
    %p139 = pnand %p137, %p138
    %p140 = pneg %p139
    // Predicated region
    $region9: #{transformer_forward.44} parent=5 // pred_check
      _
    $region10: #{transformer_forward.44} parent=5 // pred_check_branch
      %142 = sbr.rel (%p139) target = $region12
    $region11: #{transformer_forward.44} parent=5 // pred_region
      %s143 = ssub.s32 %s9, 1
    $region12: #{transformer_forward.44} parent=5 // pred_fallthru
      _
    %p144 = scmp.lt.s32.totalorder %s9, 2
    // Predicated region
    $region13: #{transformer_forward.44} parent=5 // pred_check
      %p145 = pneg %p144
    $region14: #{transformer_forward.44} parent=5 // pred_check_branch
      %147 = sbr.rel (%p145) target = $region16
    $region15: #{transformer_forward.44} parent=5 // pred_region
      // Predicated region
      $region17: #{transformer_forward.44} parent=15 // pred_check
        %p148 = pneg %p43
      $region18: #{transformer_forward.44} parent=15 // pred_check_branch
        %150 = sbr.rel (%p148) target = $region20
      $region19: #{transformer_forward.44} parent=15 // pred_region
        %p151 = scmp.lt.s32.totalorder %s16, 1
        %s152 = scalar_select %p151, %s16, 1
        %p153 = scmp.lt.s32.totalorder %s17, 0
        %s154 = scalar_select %p153, %s17, 0
        %s155 = sadd.s32 %s154, %s152
        %s156 = smul.addr %s155, 4
        %s157 = scalar_lea.vmem %s0, %s156
      $region20: #{transformer_forward.44} parent=15 // pred_fallthru
        _
      // Predicated region
      $region21: #{transformer_forward.44} parent=15 // pred_check
        %p158 = pneg %p69
      $region22: #{transformer_forward.44} parent=15 // pred_check_branch
        %160 = sbr.rel (%p158) target = $region24
      $region23: #{transformer_forward.44} parent=15 // pred_region
        %p161 = scmp.lt.s32.totalorder %s16, 1
        %s162 = scalar_select %p161, %s16, 1
        %s163 = smul.addr %s162, 4
        %s164 = scalar_lea.vmem %s1, %s163
      $region24: #{transformer_forward.44} parent=15 // pred_fallthru
        _
      // Predicated region
      $region25: #{transformer_forward.44} parent=15 // pred_check
        %p165 = pneg %p95
      $region26: #{transformer_forward.44} parent=15 // pred_check_branch
        %167 = sbr.rel (%p165) target = $region28
      $region27: #{transformer_forward.44} parent=15 // pred_region
        %p168 = scmp.lt.s32.totalorder %s16, 1
        %s169 = scalar_select %p168, %s16, 1
        %s170 = scalar_lea.vmem %s2, %s169
      $region28: #{transformer_forward.44} parent=15 // pred_fallthru
        _
    $region16: #{transformer_forward.44} parent=5 // pred_fallthru
      _
    %p171 = scmp.le.s32.totalorder 1, %s9
    %p172 = scmp.lt.s32.totalorder %s9, 3
    %p173 = pnand %p171, %p172
    %p174 = pneg %p173
    // Predicated region
    $region29: #{transformer_forward.44} parent=5 // pred_check
      _
    $region30: #{transformer_forward.44} parent=5 // pred_check_branch
      %176 = sbr.rel (%p173) target = $region32
    $region31: #{transformer_forward.44} parent=5 // pred_region
      %s177 = ssub.s32 %s9, 1
      %p178 = scmp.lt.s32.totalorder %s18, 1
      %s179 = scalar_select %p178, %s18, 1
      %p180 = scmp.lt.s32.totalorder %s19, 0
      %s181 = scalar_select %p180, %s19, 0
      %s182 = sadd.s32 %s181, %s179
      %s183 = smul.addr %s182, 4
      %s184 = scalar_lea.vmem %s0, %s183
      %p185 = pneg %p49
      %p186 = pneg %p46
      %p187 = scmp.lt.s32.totalorder %s18, 1
      %s188 = scalar_select %p187, %s18, 1
      %s189 = smul.addr %s188, 4
      %s190 = scalar_lea.vmem %s1, %s189
      %p191 = pneg %p75
      %p192 = pneg %p72
      %p193 = scmp.lt.s32.totalorder %s18, 1
      %s194 = scalar_select %p193, %s18, 1
      %s195 = scalar_lea.vmem %s2, %s194
      %p196 = pneg %p101
      %p197 = pneg %p98
      %p198 = pneg %p129
      %p199 = pneg %p126
      %p200 = scmp.lt.s32.totalorder %s18, 1
      %s201 = scalar_select %p200, %s18, 1
      %p202 = scmp.lt.s32.totalorder %s19, 0
      %s203 = scalar_select %p202, %s19, 0
      %s204 = sadd.s32 %s203, %s201
      %s205 = smul.addr %s204, 4
      %s206 = scalar_lea.vmem %s3, %s205
      %p207 = scmp.lt.s32.totalorder %s18, 1
      %s208 = scalar_select %p207, %s18, 1
      %p209 = scmp.lt.s32.totalorder %s19, 0
      %s210 = scalar_select %p209, %s19, 0
      %s211 = sadd.s32 %s210, %s208
      %s212 = smul.addr %s211, 4
      %s213 = scalar_lea.vmem %s0, %s212
      %p214 = scmp.lt.s32.totalorder %s18, 1
      %s215 = scalar_select %p214, %s18, 1
      %s216 = smul.addr %s215, 4
      %s217 = scalar_lea.vmem %s1, %s216
      %p218 = scmp.lt.s32.totalorder %s18, 1
      %s219 = scalar_select %p218, %s18, 1
      %s220 = scalar_lea.vmem %s2, %s219
      %p221 = scmp.lt.s32.totalorder %s18, 1
      %s222 = scalar_select %p221, %s18, 1
      %p223 = scmp.lt.s32.totalorder %s19, 0
      %s224 = scalar_select %p223, %s19, 0
      %s225 = sadd.s32 %s224, %s222
      %s226 = smul.addr %s225, 4
      %s227 = scalar_lea.vmem %s3, %s226
      %v229 = vld [vmem:[%s220] sm:$0x1]
      %v231 = vlaneseq
      %v232 = vshrl.u32 %v231, 7
      %v233 = vsub.s32 0, %v232
      %v234 = vrot.slane %v229, %v233
      %v236 = vld [vmem:[%s213] sm:$0xf]
      %v237 = vld [vmem:[%s217] sm:$0xf]
      %vm238 = vcmask 64512
      %v240 = vsel %vm238, %v236, 0
      %v243 = vsel %vm238, %v237, 0
      %245 = vmatprep.subr.bf16.mxu0 0
      %246 = vmatpush1.bf16.xpose.msra.mxu0 %v243
      %247 = vmatprep.subr.bf16.mxu0 0
      %248 = vmatpush1.bf16.xpose.msra.mxu0 0
      %249 = vmatprep.subr.bf16.mxu0 0
      %250 = vmatpush1.bf16.xpose.msra.mxu0 0
      %251 = vmatprep.subr.bf16.mxu0 0
      %252 = vmatpush1.bf16.xpose.msra.mxu0 0
      %253 = vmatprep.subr.bf16.mxu0 0
      %254 = vmatpush1.bf16.xpose.msra.mxu0 0
      %255 = vmatprep.subr.bf16.mxu0 0
      %256 = vmatpush1.bf16.xpose.msra.mxu0 0
      %257 = vmatprep.subr.bf16.mxu0 0
      %258 = vmatpush1.bf16.xpose.msra.mxu0 0
      %259 = vmatprep.subr.bf16.mxu0 0
      %260 = vmatpush1.bf16.xpose.msra.mxu0 0
      %261 = vmatprep.subr.bf16.mxu0 0
      %262 = vmatpush1.bf16.xpose.msra.mxu0 0
      %263 = vmatprep.subr.bf16.mxu0 0
      %264 = vmatpush1.bf16.xpose.msra.mxu0 0
      %265 = vmatprep.subr.bf16.mxu0 0
      %266 = vmatpush1.bf16.xpose.msra.mxu0 0
      %267 = vmatprep.subr.bf16.mxu0 0
      %268 = vmatpush1.bf16.xpose.msra.mxu0 0
      %269 = vmatprep.subr.bf16.mxu0 0
      %270 = vmatpush1.bf16.xpose.msra.mxu0 0
      %271 = vmatprep.subr.bf16.mxu0 0
      %272 = vmatpush1.bf16.xpose.msra.mxu0 0
      %273 = vmatprep.subr.bf16.mxu0 0
      %274 = vmatpush1.bf16.xpose.msra.mxu0 0
      %275 = vmatprep.subr.bf16.mxu0 0
      %276 = vmatpush1.bf16.xpose.msra.mxu0 0
      %277 = vmatprep.mubr.bf16.mxu0 0
      %278 = vmatmul.mubr.bf16.gmra.mrb[0].mxu0 %v240
      %v279 = vpop.f32.mrb[0].mxu0
      %v280 = vadd.f32 %v234, %v279
      %v281 = vpop.f32.mrb[0].mxu0
      %v282 = vpop.f32.mrb[0].mxu0
      %v283 = vpop.f32.mrb[0].mxu0
      %284 = vdwg.mxu0
      %v285 = vsel %vm238, %v280, -inf
      %286 = vmax.xlane.f32.xlu0 %v285
      %v287 = vpop.xlane.xlu0 %286
      %v288 = vsub.f32 %v280, %v287
      %v289 = vmul.f32 %v288, 1.442695
      %v290 = vpow.pop %v289
      %v291 = vsel %vm238, %v290, 0.0
      %292 = vadd.xlane.f32.xlu0 %v291
      %v293 = vpop.xlane.xlu0 %292
      %v294 = vrcp.pop %v293
      %v295 = vmul.f32 %v290, %v294
      %v296 = vpack.c.bf16 %v295, %v295
      %v298 = vunpack.c.l.b16 %v237
      %v299 = vpack.c.b16 %v298, %v298
      %300 = vrot.lane.b32.xlu0 %v299, 96
      %v301 = vpop.permute.xlu0 %300
      %v303 = vsel %vm238, %v296, 0
      %vm305 = vcmask 1043456
      %v307 = vsel %vm305, %v301, 0
      %309 = vmatprep.subr.bf16.mxu0 0
      %310 = vmatpush1.bf16.msra.mxu0 %v307
      %311 = vmatprep.subr.bf16.mxu0 0
      %312 = vmatpush1.bf16.msra.mxu0 0
      %313 = vmatprep.subr.bf16.mxu0 0
      %314 = vmatpush1.bf16.msra.mxu0 0
      %315 = vmatprep.subr.bf16.mxu0 0
      %316 = vmatpush1.bf16.msra.mxu0 0
      %317 = vmatprep.subr.bf16.mxu0 0
      %318 = vmatpush1.bf16.msra.mxu0 0
      %319 = vmatprep.subr.bf16.mxu0 0
      %320 = vmatpush1.bf16.msra.mxu0 0
      %321 = vmatprep.subr.bf16.mxu0 0
      %322 = vmatpush1.bf16.msra.mxu0 0
      %323 = vmatprep.subr.bf16.mxu0 0
      %324 = vmatpush1.bf16.msra.mxu0 0
      %325 = vmatprep.subr.bf16.mxu0 0
      %326 = vmatpush1.bf16.msra.mxu0 0
      %327 = vmatprep.subr.bf16.mxu0 0
      %328 = vmatpush1.bf16.msra.mxu0 0
      %329 = vmatprep.subr.bf16.mxu0 0
      %330 = vmatpush1.bf16.msra.mxu0 0
      %331 = vmatprep.subr.bf16.mxu0 0
      %332 = vmatpush1.bf16.msra.mxu0 0
      %333 = vmatprep.subr.bf16.mxu0 0
      %334 = vmatpush1.bf16.msra.mxu0 0
      %335 = vmatprep.subr.bf16.mxu0 0
      %336 = vmatpush1.bf16.msra.mxu0 0
      %337 = vmatprep.subr.bf16.mxu0 0
      %338 = vmatpush1.bf16.msra.mxu0 0
      %339 = vmatprep.subr.bf16.mxu0 0
      %340 = vmatpush1.bf16.msra.mxu0 0
      %341 = vmatprep.mubr.bf16.mxu0 0
      %342 = vmatmul.mubr.bf16.gmra.mrb[0].mxu0 %v303
      %v343 = vpop.f32.mrb[0].mxu0
      %v344 = vadd.f32 0.0, %v343
      %v345 = vpop.f32.mrb[0].mxu0
      %v346 = vpop.f32.mrb[0].mxu0
      %v347 = vpop.f32.mrb[0].mxu0
      %348 = vdwg.mxu0
      %v349 = vpack.c.bf16 %v344, %v344
      %vm350 = vcmask 60416
      %351 = vst.msk [vmem:[%s227] sm:$0xf] %vm350, %v349
      %v352 = vld [vmem:[%s213] sm:$0xf]
      %v353 = vld [vmem:[%s217] sm:$0xf]
      %v355 = vunpack.c.l.b16 %v352
      %v356 = vpack.c.b16 %v355, %v355
      %357 = vrot.lane.b32.xlu0 %v356, 120
      %v358 = vpop.permute.xlu0 %357
      %v360 = vunpack.c.l.b16 %v353
      %v361 = vpack.c.b16 %v360, %v360
      %362 = vrot.lane.b32.xlu0 %v361, 120
      %v363 = vpop.permute.xlu0 %362
      %v365 = vsel %vm238, %v358, 0
      %v368 = vsel %vm238, %v363, 0
      %370 = vmatprep.subr.bf16.mxu0 0
      %371 = vmatpush1.bf16.xpose.msra.mxu0 %v368
      %372 = vmatprep.subr.bf16.mxu0 0
      %373 = vmatpush1.bf16.xpose.msra.mxu0 0
      %374 = vmatprep.subr.bf16.mxu0 0
      %375 = vmatpush1.bf16.xpose.msra.mxu0 0
      %376 = vmatprep.subr.bf16.mxu0 0
      %377 = vmatpush1.bf16.xpose.msra.mxu0 0
      %378 = vmatprep.subr.bf16.mxu0 0
      %379 = vmatpush1.bf16.xpose.msra.mxu0 0
      %380 = vmatprep.subr.bf16.mxu0 0
      %381 = vmatpush1.bf16.xpose.msra.mxu0 0
      %382 = vmatprep.subr.bf16.mxu0 0
      %383 = vmatpush1.bf16.xpose.msra.mxu0 0
      %384 = vmatprep.subr.bf16.mxu0 0
      %385 = vmatpush1.bf16.xpose.msra.mxu0 0
      %386 = vmatprep.subr.bf16.mxu0 0
      %387 = vmatpush1.bf16.xpose.msra.mxu0 0
      %388 = vmatprep.subr.bf16.mxu0 0
      %389 = vmatpush1.bf16.xpose.msra.mxu0 0
      %390 = vmatprep.subr.bf16.mxu0 0
      %391 = vmatpush1.bf16.xpose.msra.mxu0 0
      %392 = vmatprep.subr.bf16.mxu0 0
      %393 = vmatpush1.bf16.xpose.msra.mxu0 0
      %394 = vmatprep.subr.bf16.mxu0 0
      %395 = vmatpush1.bf16.xpose.msra.mxu0 0
      %396 = vmatprep.subr.bf16.mxu0 0
      %397 = vmatpush1.bf16.xpose.msra.mxu0 0
      %398 = vmatprep.subr.bf16.mxu0 0
      %399 = vmatpush1.bf16.xpose.msra.mxu0 0
      %400 = vmatprep.subr.bf16.mxu0 0
      %401 = vmatpush1.bf16.xpose.msra.mxu0 0
      %402 = vmatprep.mubr.bf16.mxu0 0
      %403 = vmatmul.mubr.bf16.gmra.mrb[0].mxu0 %v365
      %v404 = vpop.f32.mrb[0].mxu0
      %v405 = vadd.f32 %v234, %v404
      %v406 = vpop.f32.mrb[0].mxu0
      %v407 = vpop.f32.mrb[0].mxu0
      %v408 = vpop.f32.mrb[0].mxu0
      %409 = vdwg.mxu0
      %v410 = vsel %vm238, %v405, -inf
      %411 = vmax.xlane.f32.xlu0 %v410
      %v412 = vpop.xlane.xlu0 %411
      %v413 = vsub.f32 %v405, %v412
      %v414 = vmul.f32 %v413, 1.442695
      %v415 = vpow.pop %v414
      %v416 = vsel %vm238, %v415, 0.0
      %417 = vadd.xlane.f32.xlu0 %v416
      %v418 = vpop.xlane.xlu0 %417
      %v419 = vrcp.pop %v418
      %v420 = vmul.f32 %v415, %v419
      %v421 = vpack.c.bf16 %v420, %v420
      %422 = vrot.lane.b32.xlu0 %v361, 88
      %v423 = vpop.permute.xlu0 %422
      %v425 = vsel %vm238, %v421, 0
      %v428 = vsel %vm305, %v423, 0
      %430 = vmatprep.subr.bf16.mxu0 0
      %431 = vmatpush1.bf16.msra.mxu0 %v428
      %432 = vmatprep.subr.bf16.mxu0 0
      %433 = vmatpush1.bf16.msra.mxu0 0
      %434 = vmatprep.subr.bf16.mxu0 0
      %435 = vmatpush1.bf16.msra.mxu0 0
      %436 = vmatprep.subr.bf16.mxu0 0
      %437 = vmatpush1.bf16.msra.mxu0 0
      %438 = vmatprep.subr.bf16.mxu0 0
      %439 = vmatpush1.bf16.msra.mxu0 0
      %440 = vmatprep.subr.bf16.mxu0 0
      %441 = vmatpush1.bf16.msra.mxu0 0
      %442 = vmatprep.subr.bf16.mxu0 0
      %443 = vmatpush1.bf16.msra.mxu0 0
      %444 = vmatprep.subr.bf16.mxu0 0
      %445 = vmatpush1.bf16.msra.mxu0 0
      %446 = vmatprep.subr.bf16.mxu0 0
      %447 = vmatpush1.bf16.msra.mxu0 0
      %448 = vmatprep.subr.bf16.mxu0 0
      %449 = vmatpush1.bf16.msra.mxu0 0
      %450 = vmatprep.subr.bf16.mxu0 0
      %451 = vmatpush1.bf16.msra.mxu0 0
      %452 = vmatprep.subr.bf16.mxu0 0
      %453 = vmatpush1.bf16.msra.mxu0 0
      %454 = vmatprep.subr.bf16.mxu0 0
      %455 = vmatpush1.bf16.msra.mxu0 0
      %456 = vmatprep.subr.bf16.mxu0 0
      %457 = vmatpush1.bf16.msra.mxu0 0
      %458 = vmatprep.subr.bf16.mxu0 0
      %459 = vmatpush1.bf16.msra.mxu0 0
      %460 = vmatprep.subr.bf16.mxu0 0
      %461 = vmatpush1.bf16.msra.mxu0 0
      %462 = vmatprep.mubr.bf16.mxu0 0
      %463 = vmatmul.mubr.bf16.gmra.mrb[0].mxu0 %v425
      %v464 = vpop.f32.mrb[0].mxu0
      %v465 = vadd.f32 0.0, %v464
      %v466 = vpop.f32.mrb[0].mxu0
      %v467 = vpop.f32.mrb[0].mxu0
      %v468 = vpop.f32.mrb[0].mxu0
      %469 = vdwg.mxu0
      %v470 = vpack.c.bf16 %v465, %v465
      %v472 = vunpack.c.l.b16 %v470
      %v473 = vpack.c.b16 %v472, %v472
      %474 = vrot.lane.b32.xlu0 %v473, 8
      %v475 = vpop.permute.xlu0 %474
      %vm477 = vcmask 126016
      %478 = vst.msk [vmem:[%s227] sm:$0xf] %vm477, %v475
      %v479 = vld [vmem:[%s213] sm:$0xf]
      %v480 = vld [vmem:[%s217] sm:$0xf]
      %v482 = vunpack.c.l.b16 %v479
      %v483 = vpack.c.b16 %v482, %v482
      %484 = vrot.lane.b32.xlu0 %v483, 112
      %v485 = vpop.permute.xlu0 %484
      %v487 = vunpack.c.l.b16 %v480
      %v488 = vpack.c.b16 %v487, %v487
      %489 = vrot.lane.b32.xlu0 %v488, 112
      %v490 = vpop.permute.xlu0 %489
      %v492 = vsel %vm238, %v485, 0
      %v495 = vsel %vm238, %v490, 0
      %497 = vmatprep.subr.bf16.mxu0 0
      %498 = vmatpush1.bf16.xpose.msra.mxu0 %v495
      %499 = vmatprep.subr.bf16.mxu0 0
      %500 = vmatpush1.bf16.xpose.msra.mxu0 0
      %501 = vmatprep.subr.bf16.mxu0 0
      %502 = vmatpush1.bf16.xpose.msra.mxu0 0
      %503 = vmatprep.subr.bf16.mxu0 0
      %504 = vmatpush1.bf16.xpose.msra.mxu0 0
      %505 = vmatprep.subr.bf16.mxu0 0
      %506 = vmatpush1.bf16.xpose.msra.mxu0 0
      %507 = vmatprep.subr.bf16.mxu0 0
      %508 = vmatpush1.bf16.xpose.msra.mxu0 0
      %509 = vmatprep.subr.bf16.mxu0 0
      %510 = vmatpush1.bf16.xpose.msra.mxu0 0
      %511 = vmatprep.subr.bf16.mxu0 0
      %512 = vmatpush1.bf16.xpose.msra.mxu0 0
      %513 = vmatprep.subr.bf16.mxu0 0
      %514 = vmatpush1.bf16.xpose.msra.mxu0 0
      %515 = vmatprep.subr.bf16.mxu0 0
      %516 = vmatpush1.bf16.xpose.msra.mxu0 0
      %517 = vmatprep.subr.bf16.mxu0 0
      %518 = vmatpush1.bf16.xpose.msra.mxu0 0
      %519 = vmatprep.subr.bf16.mxu0 0
      %520 = vmatpush1.bf16.xpose.msra.mxu0 0
      %521 = vmatprep.subr.bf16.mxu0 0
      %522 = vmatpush1.bf16.xpose.msra.mxu0 0
      %523 = vmatprep.subr.bf16.mxu0 0
      %524 = vmatpush1.bf16.xpose.msra.mxu0 0
      %525 = vmatprep.subr.bf16.mxu0 0
      %526 = vmatpush1.bf16.xpose.msra.mxu0 0
      %527 = vmatprep.subr.bf16.mxu0 0
      %528 = vmatpush1.bf16.xpose.msra.mxu0 0
      %529 = vmatprep.mubr.bf16.mxu0 0
      %530 = vmatmul.mubr.bf16.gmra.mrb[0].mxu0 %v492
      %v531 = vpop.f32.mrb[0].mxu0
      %v532 = vadd.f32 %v234, %v531
      %v533 = vpop.f32.mrb[0].mxu0
      %v534 = vpop.f32.mrb[0].mxu0
      %v535 = vpop.f32.mrb[0].mxu0
      %536 = vdwg.mxu0
      %v537 = vsel %vm238, %v532, -inf
      %538 = vmax.xlane.f32.xlu0 %v537
      %v539 = vpop.xlane.xlu0 %538
      %v540 = vsub.f32 %v532, %v539
      %v541 = vmul.f32 %v540, 1.442695
      %v542 = vpow.pop %v541
      %v543 = vsel %vm238, %v542, 0.0
      %544 = vadd.xlane.f32.xlu0 %v543
      %v545 = vpop.xlane.xlu0 %544
      %v546 = vrcp.pop %v545
      %v547 = vmul.f32 %v542, %v546
      %v548 = vpack.c.bf16 %v547, %v547
      %549 = vrot.lane.b32.xlu0 %v488, 80
      %v550 = vpop.permute.xlu0 %549
      %v552 = vsel %vm238, %v548, 0
      %v555 = vsel %vm305, %v550, 0
      %557 = vmatprep.subr.bf16.mxu0 0
      %558 = vmatpush1.bf16.msra.mxu0 %v555
      %559 = vmatprep.subr.bf16.mxu0 0
      %560 = vmatpush1.bf16.msra.mxu0 0
      %561 = vmatprep.subr.bf16.mxu0 0
      %562 = vmatpush1.bf16.msra.mxu0 0
      %563 = vmatprep.subr.bf16.mxu0 0
      %564 = vmatpush1.bf16.msra.mxu0 0
      %565 = vmatprep.subr.bf16.mxu0 0
      %566 = vmatpush1.bf16.msra.mxu0 0
      %567 = vmatprep.subr.bf16.mxu0 0
      %568 = vmatpush1.bf16.msra.mxu0 0
      %569 = vmatprep.subr.bf16.mxu0 0
      %570 = vmatpush1.bf16.msra.mxu0 0
      %571 = vmatprep.subr.bf16.mxu0 0
      %572 = vmatpush1.bf16.msra.mxu0 0
      %573 = vmatprep.subr.bf16.mxu0 0
      %574 = vmatpush1.bf16.msra.mxu0 0
      %575 = vmatprep.subr.bf16.mxu0 0
      %576 = vmatpush1.bf16.msra.mxu0 0
      %577 = vmatprep.subr.bf16.mxu0 0
      %578 = vmatpush1.bf16.msra.mxu0 0
      %579 = vmatprep.subr.bf16.mxu0 0
      %580 = vmatpush1.bf16.msra.mxu0 0
      %581 = vmatprep.subr.bf16.mxu0 0
      %582 = vmatpush1.bf16.msra.mxu0 0
      %583 = vmatprep.subr.bf16.mxu0 0
      %584 = vmatpush1.bf16.msra.mxu0 0
      %585 = vmatprep.subr.bf16.mxu0 0
      %586 = vmatpush1.bf16.msra.mxu0 0
      %587 = vmatprep.subr.bf16.mxu0 0
      %588 = vmatpush1.bf16.msra.mxu0 0
      %589 = vmatprep.mubr.bf16.mxu0 0
      %590 = vmatmul.mubr.bf16.gmra.mrb[0].mxu0 %v552
      %v591 = vpop.f32.mrb[0].mxu0
      %v592 = vadd.f32 0.0, %v591
      %v593 = vpop.f32.mrb[0].mxu0
      %v594 = vpop.f32.mrb[0].mxu0
      %v595 = vpop.f32.mrb[0].mxu0
      %596 = vdwg.mxu0
      %v597 = vpack.c.bf16 %v592, %v592
      %v599 = vunpack.c.l.b16 %v597
      %v600 = vpack.c.b16 %v599, %v599
      %601 = vrot.lane.b32.xlu0 %v600, 16
      %v602 = vpop.permute.xlu0 %601
      %vm604 = vcmask 191616
      %605 = vst.msk [vmem:[%s227] sm:$0xf] %vm604, %v602
      %v606 = vld [vmem:[%s213] sm:$0xf]
      %v607 = vld [vmem:[%s217] sm:$0xf]
      %v609 = vunpack.c.l.b16 %v606
      %v610 = vpack.c.b16 %v609, %v609
      %611 = vrot.lane.b32.xlu0 %v610, 104
      %v612 = vpop.permute.xlu0 %611
      %v614 = vunpack.c.l.b16 %v607
      %v615 = vpack.c.b16 %v614, %v614
      %616 = vrot.lane.b32.xlu0 %v615, 104
      %v617 = vpop.permute.xlu0 %616
      %v619 = vsel %vm238, %v612, 0
      %v622 = vsel %vm238, %v617, 0
      %624 = vmatprep.subr.bf16.mxu0 0
      %625 = vmatpush1.bf16.xpose.msra.mxu0 %v622
      %626 = vmatprep.subr.bf16.mxu0 0
      %627 = vmatpush1.bf16.xpose.msra.mxu0 0
      %628 = vmatprep.subr.bf16.mxu0 0
      %629 = vmatpush1.bf16.xpose.msra.mxu0 0
      %630 = vmatprep.subr.bf16.mxu0 0
      %631 = vmatpush1.bf16.xpose.msra.mxu0 0
      %632 = vmatprep.subr.bf16.mxu0 0
      %633 = vmatpush1.bf16.xpose.msra.mxu0 0
      %634 = vmatprep.subr.bf16.mxu0 0
      %635 = vmatpush1.bf16.xpose.msra.mxu0 0
      %636 = vmatprep.subr.bf16.mxu0 0
      %637 = vmatpush1.bf16.xpose.msra.mxu0 0
      %638 = vmatprep.subr.bf16.mxu0 0
      %639 = vmatpush1.bf16.xpose.msra.mxu0 0
      %640 = vmatprep.subr.bf16.mxu0 0
      %641 = vmatpush1.bf16.xpose.msra.mxu0 0
      %642 = vmatprep.subr.bf16.mxu0 0
      %643 = vmatpush1.bf16.xpose.msra.mxu0 0
      %644 = vmatprep.subr.bf16.mxu0 0
      %645 = vmatpush1.bf16.xpose.msra.mxu0 0
      %646 = vmatprep.subr.bf16.mxu0 0
      %647 = vmatpush1.bf16.xpose.msra.mxu0 0
      %648 = vmatprep.subr.bf16.mxu0 0
      %649 = vmatpush1.bf16.xpose.msra.mxu0 0
      %650 = vmatprep.subr.bf16.mxu0 0
      %651 = vmatpush1.bf16.xpose.msra.mxu0 0
      %652 = vmatprep.subr.bf16.mxu0 0
      %653 = vmatpush1.bf16.xpose.msra.mxu0 0
      %654 = vmatprep.subr.bf16.mxu0 0
      %655 = vmatpush1.bf16.xpose.msra.mxu0 0
      %656 = vmatprep.mubr.bf16.mxu0 0
      %657 = vmatmul.mubr.bf16.gmra.mrb[0].mxu0 %v619
      %v658 = vpop.f32.mrb[0].mxu0
      %v659 = vadd.f32 %v234, %v658
      %v660 = vpop.f32.mrb[0].mxu0
      %v661 = vpop.f32.mrb[0].mxu0
      %v662 = vpop.f32.mrb[0].mxu0
      %663 = vdwg.mxu0
      %v664 = vsel %vm238, %v659, -inf
      %665 = vmax.xlane.f32.xlu0 %v664
      %v666 = vpop.xlane.xlu0 %665
      %v667 = vsub.f32 %v659, %v666
      %v668 = vmul.f32 %v667, 1.442695
      %v669 = vpow.pop %v668
      %v670 = vsel %vm238, %v669, 0.0
      %671 = vadd.xlane.f32.xlu0 %v670
      %v672 = vpop.xlane.xlu0 %671
      %v673 = vrcp.pop %v672
      %v674 = vmul.f32 %v669, %v673
      %v675 = vpack.c.bf16 %v674, %v674
      %676 = vrot.lane.b32.xlu0 %v615, 72
      %v677 = vpop.permute.xlu0 %676
      %v679 = vsel %vm238, %v675, 0
      %v682 = vsel %vm305, %v677, 0
      %684 = vmatprep.subr.bf16.mxu0 0
      %685 = vmatpush1.bf16.msra.mxu0 %v682
      %686 = vmatprep.subr.bf16.mxu0 0
      %687 = vmatpush1.bf16.msra.mxu0 0
      %688 = vmatprep.subr.bf16.mxu0 0
      %689 = vmatpush1.bf16.msra.mxu0 0
      %690 = vmatprep.subr.bf16.mxu0 0
      %691 = vmatpush1.bf16.msra.mxu0 0
      %692 = vmatprep.subr.bf16.mxu0 0
      %693 = vmatpush1.bf16.msra.mxu0 0
      %694 = vmatprep.subr.bf16.mxu0 0
      %695 = vmatpush1.bf16.msra.mxu0 0
      %696 = vmatprep.subr.bf16.mxu0 0
      %697 = vmatpush1.bf16.msra.mxu0 0
      %698 = vmatprep.subr.bf16.mxu0 0
      %699 = vmatpush1.bf16.msra.mxu0 0
      %700 = vmatprep.subr.bf16.mxu0 0
      %701 = vmatpush1.bf16.msra.mxu0 0
      %702 = vmatprep.subr.bf16.mxu0 0
      %703 = vmatpush1.bf16.msra.mxu0 0
      %704 = vmatprep.subr.bf16.mxu0 0
      %705 = vmatpush1.bf16.msra.mxu0 0
      %706 = vmatprep.subr.bf16.mxu0 0
      %707 = vmatpush1.bf16.msra.mxu0 0
      %708 = vmatprep.subr.bf16.mxu0 0
      %709 = vmatpush1.bf16.msra.mxu0 0
      %710 = vmatprep.subr.bf16.mxu0 0
      %711 = vmatpush1.bf16.msra.mxu0 0
      %712 = vmatprep.subr.bf16.mxu0 0
      %713 = vmatpush1.bf16.msra.mxu0 0
      %714 = vmatprep.subr.bf16.mxu0 0
      %715 = vmatpush1.bf16.msra.mxu0 0
      %716 = vmatprep.mubr.bf16.mxu0 0
      %717 = vmatmul.mubr.bf16.gmra.mrb[0].mxu0 %v679
      %v718 = vpop.f32.mrb[0].mxu0
      %v719 = vadd.f32 0.0, %v718
      %v720 = vpop.f32.mrb[0].mxu0
      %v721 = vpop.f32.mrb[0].mxu0
      %v722 = vpop.f32.mrb[0].mxu0
      %723 = vdwg.mxu0
      %v724 = vpack.c.bf16 %v719, %v719
      %v726 = vunpack.c.l.b16 %v724
      %v727 = vpack.c.b16 %v726, %v726
      %728 = vrot.lane.b32.xlu0 %v727, 24
      %v729 = vpop.permute.xlu0 %728
      %vm731 = vcmask 257216
      %732 = vst.msk [vmem:[%s227] sm:$0xf] %vm731, %v729
      %p733 = scmp.lt.s32.totalorder %s18, 1
      %s734 = scalar_select %p733, %s18, 1
      %p735 = scmp.lt.s32.totalorder %s19, 0
      %s736 = scalar_select %p735, %s19, 0
      %s737 = sadd.s32 %s736, %s734
      %s738 = smul.addr %s737, 4
      %s739 = scalar_lea.vmem %s3, %s738
      // Predicated region
      $region33: #{transformer_forward.44} parent=31 // pred_check
        %p740 = pneg %p126
      $region34: #{transformer_forward.44} parent=31 // pred_check_branch
        %742 = sbr.rel (%p740) target = $region36
      $region35: #{transformer_forward.44} parent=31 // pred_region
        _
      $region36: #{transformer_forward.44} parent=31 // pred_fallthru
        _
    $region32: #{transformer_forward.44} parent=5 // pred_fallthru
      _
    %p743 = scmp.le.s32.totalorder 2, %s9
    // Predicated region
    $region37: #{transformer_forward.44} parent=5 // pred_check
      %p744 = pneg %p743
    $region38: #{transformer_forward.44} parent=5 // pred_check_branch
      %746 = sbr.rel (%p744) target = $region40
    $region39: #{transformer_forward.44} parent=5 // pred_region
      %s747 = ssub.s32 %s9, 2
      // Predicated region
      $region41: #{transformer_forward.44} parent=39 // pred_check
        %p748 = pneg %p132
      $region42: #{transformer_forward.44} parent=39 // pred_check_branch
        %750 = sbr.rel (%p748) target = $region44
      $region43: #{transformer_forward.44} parent=39 // pred_region
        %p751 = scmp.lt.s32.totalorder %s20, 1
        %s752 = scalar_select %p751, %s20, 1
        %p753 = scmp.lt.s32.totalorder %s21, 0
        %s754 = scalar_select %p753, %s21, 0
        %s755 = sadd.s32 %s754, %s752
        %s756 = smul.addr %s755, 4
        %s757 = scalar_lea.vmem %s3, %s756
      $region44: #{transformer_forward.44} parent=39 // pred_fallthru
        _
    $region40: #{transformer_forward.44} parent=5 // pred_fallthru
      _
  $region6: #{transformer_forward.44} parent=0 // loop_footer
    %s13 = sadd.s32 1, %s9
  $region7: #{transformer_forward.44} parent=0 // loop_footer_branch
    %8 = sbr.rel target = $region3
  $region8: #{transformer_forward.44} parent=0 // loop_exit
    _

</llo_original>
